<compile_context>
chip_gen: v7x
topology: tpu7x:2x2x1
jax: 0.10.0
libtpu: 0.0.40
codegen_flags: <defaults>
</compile_context>

<pallas_src>
import math
import functools

import jax
import jax.numpy as jnp
from jax.experimental import pallas as pl
from jax.experimental.pallas import tpu as pltpu


# ---------------------------------------------------------------------------
# In-kernel helpers
# ---------------------------------------------------------------------------

def _norm(x, alpha, bias, eps=1e-6):
    """PyTorch-style Norm: alpha * (x - mean) / (std_unbiased + eps) + bias."""
    mean = jnp.mean(x, axis=-1, keepdims=True)
    c = x - mean
    var = jnp.sum(c * c, axis=-1, keepdims=True) * (1.0 / (x.shape[-1] - 1))
    inv = pl.reciprocal(jnp.sqrt(var) + eps, approx=False)
    return alpha * c * inv + bias


# ---------------------------------------------------------------------------
# Fused kernel: all encoder layers + final Norm + EdgeClassify head
# ---------------------------------------------------------------------------

def _fused_encoder_edge_kernel(
        x0_ref, mask_ref, ln_ref,
        wqkv_ref, bqkv_ref, wo_ref, bo_ref,
        w1_ref, b1_ref, w2_ref, b2_ref,
        fnorm_ref, wll_ref, bll_ref, wfl_ref, bfl_ref,
        o_ref, x_scratch, *, heads):
    layer = pl.program_id(0)
    n_layers = pl.num_programs(0)

    M, D = x_scratch.shape
    B, S = mask_ref.shape
    H = heads
    dk = D // H
    scale = 1.0 / math.sqrt(dk)

    # Load the embedded input into the resident activation on the first step.
    @pl.when(layer == 0)
    def _():
        x_scratch[...] = x0_ref[...]

    x = x_scratch[...]                         # (M, D) residual stream
    ln = ln_ref[0]                             # (4, D): [a1, b1, a2, b2]
    mask_vals = mask_ref[...]                  # (B, S) float, 0.0 = masked key

    # ---------------- self-attention sub-block ----------------
    x2 = _norm(x, ln[0:1], ln[1:2])
    qkv = jnp.dot(x2, wqkv_ref[0], preferred_element_type=jnp.float32) + bqkv_ref[0]
    q = qkv[:, 0 * D:1 * D]
    k = qkv[:, 1 * D:2 * D]
    v = qkv[:, 2 * D:3 * D]

    batch_rows = []
    for b in range(B):                         # B, H are tiny & static: unrolled
        mrow = mask_vals[b:b + 1, :]           # (1, S) over key positions
        q_b = q[b * S:(b + 1) * S, :]
        k_b = k[b * S:(b + 1) * S, :]
        v_b = v[b * S:(b + 1) * S, :]
        head_outs = []
        for h in range(H):
            lo, hi = h * dk, (h + 1) * dk
            q_bh = q_b[:, lo:hi]
            k_bh = k_b[:, lo:hi]
            v_bh = v_b[:, lo:hi]
            scores = jax.lax.dot_general(
                q_bh, k_bh, (((1,), (1,)), ((), ())),
                preferred_element_type=jnp.float32) * scale      # (S, S)
            scores = jnp.where(mrow == 0.0, -1e9, scores)        # masked_fill
            smax = jnp.max(scores, axis=-1, keepdims=True)
            p = jnp.exp(scores - smax)
            denom = jnp.sum(p, axis=-1, keepdims=True)
            ctx = jnp.dot(p, v_bh, preferred_element_type=jnp.float32)
            head_outs.append(ctx * pl.reciprocal(denom, approx=False))
        batch_rows.append(jnp.concatenate(head_outs, axis=-1))   # (S, D)
    attn = jnp.concatenate(batch_rows, axis=0)                   # (M, D)
    attn = jnp.dot(attn, wo_ref[0], preferred_element_type=jnp.float32) + bo_ref[0]
    x = x + attn

    # ---------------- feed-forward sub-block ----------------
    x2 = _norm(x, ln[2:3], ln[3:4])
    h1 = jnp.maximum(
        jnp.dot(x2, w1_ref[0], preferred_element_type=jnp.float32) + b1_ref[0], 0.0)
    h2 = jnp.dot(h1, w2_ref[0], preferred_element_type=jnp.float32) + b2_ref[0]
    x = x + h2
    x_scratch[...] = x

    # ---------------- final Norm + EdgeClassify head (last layer only) ----
    @pl.when(layer == n_layers - 1)
    def _():
        fn = fnorm_ref[...]                    # (2, D): [alpha, bias]
        e = _norm(x, fn[0:1, :], fn[1:2, :])   # encoder output, (M, D)
        wll = wll_ref[...]                     # (A, S)
        bll = bll_ref[...]                     # (A, 1)  bias per atom row
        wfl = wfl_ref[...]                     # (2D, nb)
        bfl = bfl_ref[...]                     # (1, nb)
        for b in range(B):
            e_b = e[b * S:(b + 1) * S, :]                                    # (S, D)
            red = jnp.dot(wll, e_b, preferred_element_type=jnp.float32) + bll  # (A, D)
            # final_e[b, i, j, :] = concat(reduce_e[b, i], reduce_e[b, i]) (j-independent)
            feat = jnp.concatenate([red, red], axis=-1)                      # (A, 2D)
            o_ref[b] = jnp.dot(feat, wfl, preferred_element_type=jnp.float32) + bfl


# ---------------------------------------------------------------------------
# Parameter init (deterministic, in-script, stacked per-layer for the fused call)
# ---------------------------------------------------------------------------

def init_params(key, *, vocab_size, d_model, n_layers, d_ff,
                msp_len, max_atoms, num_bonds):
    D, F, L = d_model, d_ff, n_layers
    ks = jax.random.split(key, 13)

    def rnd(k, shape, scale):
        return jax.random.normal(k, shape, jnp.float32) * scale

    ln_pattern = jnp.array([1.0, 0.0, 1.0, 0.0], jnp.float32)   # [a1, b1, a2, b2]
    params = {
        "embed": rnd(ks[0], (vocab_size, D), 0.1),
        "ln": jnp.tile(ln_pattern[None, :, None], (L, 1, D)),           # (L, 4, D)
        "wqkv": rnd(ks[1], (L, D, 3 * D), 1.0 / math.sqrt(D)),
        "bqkv": rnd(ks[2], (L, 1, 3 * D), 0.01),
        "wo": rnd(ks[3], (L, D, D), 1.0 / math.sqrt(D)),
        "bo": rnd(ks[4], (L, 1, D), 0.01),
        "w1": rnd(ks[5], (L, D, F), 1.0 / math.sqrt(D)),
        "b1": rnd(ks[6], (L, 1, F), 0.01),
        "w2": rnd(ks[7], (L, F, D), 1.0 / math.sqrt(F)),
        "b2": rnd(ks[8], (L, 1, D), 0.01),
        "fnorm": jnp.stack([jnp.ones((D,), jnp.float32),
                            jnp.zeros((D,), jnp.float32)]),              # (2, D)
        # EdgeClassify: ll = Linear(msp_len, max_atoms); fl = Linear(2*d_model, num_bonds)
        "wll": rnd(ks[9], (max_atoms, msp_len), 1.0 / math.sqrt(msp_len)),
        "bll": rnd(ks[10], (max_atoms, 1), 0.01),
        "wfl": rnd(ks[11], (2 * D, num_bonds), 1.0 / math.sqrt(2 * D)),
        "bfl": rnd(ks[12], (1, num_bonds), 0.01),
    }
    return params


# ---------------------------------------------------------------------------
# Forward pass: embedding/PE glue in JAX, everything else in one pallas_call
# ---------------------------------------------------------------------------

def encoder_edge_classify_forward(params, src, mask, *, heads, max_atoms):
    B, S = src.shape
    D = params["embed"].shape[1]
    L = params["wqkv"].shape[0]
    F = params["w1"].shape[-1]
    nb = params["bfl"].shape[-1]
    A = max_atoms
    M = B * S

    # --- Embedder + PositionalEncoder (gather + sin/cos table: JAX glue) ---
    # TODO(synk): embedding gather + sinusoidal PE table kept in plain JAX glue.
    x = params["embed"][src]                                   # (B, S, D)
    position = jnp.arange(S, dtype=jnp.float32)[:, None]
    div = jnp.exp(jnp.arange(0, D, 2, dtype=jnp.float32) * (-math.log(10000.0) / D))
    pe = jnp.zeros((S, D), jnp.float32)
    pe = pe.at[:, 0::2].set(jnp.sin(position * div))
    pe = pe.at[:, 1::2].set(jnp.cos(position * div))
    x0 = (x * math.sqrt(D) + pe[None]).reshape(M, D)           # dropout = identity

    mask_f = mask.astype(jnp.float32).reshape(B, S)

    kernel = functools.partial(_fused_encoder_edge_kernel, heads=heads)

    const2 = lambda l: (0, 0)
    const3 = lambda l: (0, 0, 0)
    layer3 = lambda l: (l, 0, 0)

    reduced = pl.pallas_call(
        kernel,
        out_shape=jax.ShapeDtypeStruct((B, A, nb), jnp.float32),
        grid=(L,),
        in_specs=[
            pl.BlockSpec((M, D), const2),            # x0 (embedded input)
            pl.BlockSpec((B, S), const2),            # key mask
            pl.BlockSpec((1, 4, D), layer3),         # per-layer norm params
            pl.BlockSpec((1, D, 3 * D), layer3),     # fused Wq|Wk|Wv
            pl.BlockSpec((1, 1, 3 * D), layer3),     # fused bq|bk|bv
            pl.BlockSpec((1, D, D), layer3),         # Wo
            pl.BlockSpec((1, 1, D), layer3),         # bo
            pl.BlockSpec((1, D, F), layer3),         # FFN w1
            pl.BlockSpec((1, 1, F), layer3),         # FFN b1
            pl.BlockSpec((1, F, D), layer3),         # FFN w2
            pl.BlockSpec((1, 1, D), layer3),         # FFN b2
            pl.BlockSpec((2, D), const2),            # final encoder Norm
            pl.BlockSpec((A, S), const2),            # EdgeClassify ll weight
            pl.BlockSpec((A, 1), const2),            # EdgeClassify ll bias
            pl.BlockSpec((2 * D, nb), const2),       # EdgeClassify fl weight
            pl.BlockSpec((1, nb), const2),           # EdgeClassify fl bias
        ],
        out_specs=pl.BlockSpec((B, A, nb), const3),
        scratch_shapes=[pltpu.VMEM((M, D), jnp.float32)],       # resident activation
        compiler_params=pltpu.CompilerParams(
            dimension_semantics=("arbitrary",)),                 # sequential layer loop
    )(x0, mask_f, params["ln"], params["wqkv"], params["bqkv"],
      params["wo"], params["bo"], params["w1"], params["b1"],
      params["w2"], params["b2"], params["fnorm"],
      params["wll"], params["bll"], params["wfl"], params["bfl"])

    # final_e[b, i, j, :] is independent of j -> free broadcast outside the kernel
    return jnp.broadcast_to(reduced[:, :, None, :], (B, A, A, nb))


# ---------------------------------------------------------------------------
# Demo
# ---------------------------------------------------------------------------

if __name__ == "__main__":
    vocab_size = 20
    d_model = 32
    n_layers = 2
    heads = 4
    dropout = 0.1          # identity at inference
    msp_len = 16           # sequence length S
    max_atoms = 8
    num_bonds = 5
    d_ff = 64
    B = 2

    key = jax.random.PRNGKey(0)
    pkey, skey = jax.random.split(key)
    params = init_params(pkey, vocab_size=vocab_size, d_model=d_model,
                         n_layers=n_layers, d_ff=d_ff, msp_len=msp_len,
                         max_atoms=max_atoms, num_bonds=num_bonds)

    src = jax.random.randint(skey, (B, msp_len), 0, vocab_size, dtype=jnp.int32)
    mask = jnp.ones((B, 1, msp_len), jnp.int32).at[:, :, -2:].set(0)

    fwd = jax.jit(functools.partial(encoder_edge_classify_forward,
                                    heads=heads, max_atoms=max_atoms))
    out = jax.block_until_ready(fwd(params, src, mask))

    assert out.shape == (B, max_atoms, max_atoms, num_bonds), out.shape
    assert out.dtype == jnp.float32
    assert bool(jnp.all(jnp.isfinite(out)))
    print("KERNEL_OK")
</pallas_src>

<mosaic_0001>
module attributes {stable_mosaic.version = 11 : i64} {
  func.func @_fused_encoder_edge_kernel(%arg0: i32, %arg1: memref<32x32xf32, #tpu.memory_space<vmem>>, %arg2: memref<2x16xf32, #tpu.memory_space<vmem>>, %arg3: memref<1x4x32xf32, #tpu.memory_space<vmem>>, %arg4: memref<1x32x96xf32, #tpu.memory_space<vmem>>, %arg5: memref<1x1x96xf32, #tpu.memory_space<vmem>>, %arg6: memref<1x32x32xf32, #tpu.memory_space<vmem>>, %arg7: memref<1x1x32xf32, #tpu.memory_space<vmem>>, %arg8: memref<1x32x64xf32, #tpu.memory_space<vmem>>, %arg9: memref<1x1x64xf32, #tpu.memory_space<vmem>>, %arg10: memref<1x64x32xf32, #tpu.memory_space<vmem>>, %arg11: memref<1x1x32xf32, #tpu.memory_space<vmem>>, %arg12: memref<2x32xf32, #tpu.memory_space<vmem>>, %arg13: memref<8x16xf32, #tpu.memory_space<vmem>>, %arg14: memref<8x1xf32, #tpu.memory_space<vmem>>, %arg15: memref<64x5xf32, #tpu.memory_space<vmem>>, %arg16: memref<1x5xf32, #tpu.memory_space<vmem>>, %arg17: memref<2x8x5xf32, #tpu.memory_space<vmem>>, %arg18: memref<32x32xf32, #tpu.memory_space<vmem>>) attributes {dimension_semantics = [#tpu.dimension_semantics<arbitrary>], iteration_bounds = array<i64: 2>, scalar_prefetch = 0 : i64, scratch_operands = 1 : i64, tpu.core_type = #tpu.core_type<tc>, window_params = [{pipeline_mode = #tpu.pipeline_mode<synchronous>, transform_indices = @transform_0, window_bounds = array<i64: 32, 32>}, {pipeline_mode = #tpu.pipeline_mode<synchronous>, transform_indices = @transform_1, window_bounds = array<i64: 2, 16>}, {transform_indices = @transform_2, window_bounds = array<i64: 1, 4, 32>}, {transform_indices = @transform_3, window_bounds = array<i64: 1, 32, 96>}, {transform_indices = @transform_4, window_bounds = array<i64: 1, 1, 96>}, {transform_indices = @transform_5, window_bounds = array<i64: 1, 32, 32>}, {transform_indices = @transform_6, window_bounds = array<i64: 1, 1, 32>}, {transform_indices = @transform_7, window_bounds = array<i64: 1, 32, 64>}, {transform_indices = @transform_8, window_bounds = array<i64: 1, 1, 64>}, {transform_indices = @transform_9, window_bounds = array<i64: 1, 64, 32>}, {transform_indices = @transform_10, window_bounds = array<i64: 1, 1, 32>}, {pipeline_mode = #tpu.pipeline_mode<synchronous>, transform_indices = @transform_11, window_bounds = array<i64: 2, 32>}, {pipeline_mode = #tpu.pipeline_mode<synchronous>, transform_indices = @transform_12, window_bounds = array<i64: 8, 16>}, {pipeline_mode = #tpu.pipeline_mode<synchronous>, transform_indices = @transform_13, window_bounds = array<i64: 8, 1>}, {pipeline_mode = #tpu.pipeline_mode<synchronous>, transform_indices = @transform_14, window_bounds = array<i64: 64, 5>}, {pipeline_mode = #tpu.pipeline_mode<synchronous>, transform_indices = @transform_15, window_bounds = array<i64: 1, 5>}, {pipeline_mode = #tpu.pipeline_mode<synchronous>, transform_indices = @transform_16, window_bounds = array<i64: 2, 8, 5>}]} {
    %c0_i32 = arith.constant 0 : i32
    %0 = arith.cmpi eq, %arg0, %c0_i32 : i32
    %1 = arith.extui %0 : i1 to i32
    %c0_i32_0 = arith.constant 0 : i32
    %2 = arith.cmpi ne, %1, %c0_i32_0 : i32
    scf.if %2 {
      %c0_104 = arith.constant 0 : index
      %c0_105 = arith.constant 0 : index
      %287 = vector.load %arg1[%c0_104, %c0_105] : memref<32x32xf32, #tpu.memory_space<vmem>>, vector<32x32xf32>
      %c0_106 = arith.constant 0 : index
      %c0_107 = arith.constant 0 : index
      %288 = vector.load %arg18[%c0_106, %c0_107] : memref<32x32xf32, #tpu.memory_space<vmem>>, vector<32x32xf32>
      tpu.vector_store %arg18[%c0_106, %c0_107], %287 {strides = array<i32>} : memref<32x32xf32, #tpu.memory_space<vmem>>, vector<32x32xf32>,
    } else {
    }
    %c0 = arith.constant 0 : index
    %c0_1 = arith.constant 0 : index
    %3 = vector.load %arg18[%c0, %c0_1] : memref<32x32xf32, #tpu.memory_space<vmem>>, vector<32x32xf32>
    %c0_2 = arith.constant 0 : index
    %c0_3 = arith.constant 0 : index
    %c0_4 = arith.constant 0 : index
    %4 = vector.load %arg3[%c0_2, %c0_3, %c0_4] : memref<1x4x32xf32, #tpu.memory_space<vmem>>, vector<1x4x32xf32>
    %5 = vector.shape_cast %4 : vector<1x4x32xf32> to vector<4x32xf32>
    %c0_5 = arith.constant 0 : index
    %c0_6 = arith.constant 0 : index
    %6 = vector.load %arg2[%c0_5, %c0_6] : memref<2x16xf32, #tpu.memory_space<vmem>>, vector<2x16xf32>
    %7 = vector.extract_strided_slice %5 {offsets = [0, 0], sizes = [1, 32], strides = [1, 1]} : vector<4x32xf32> to vector<1x32xf32>
    %8 = vector.extract_strided_slice %5 {offsets = [1, 0], sizes = [1, 32], strides = [1, 1]} : vector<4x32xf32> to vector<1x32xf32>
    %cst = arith.constant dense<0.000000e+00> : vector<32xf32>
    %9 = vector.multi_reduction <add>, %3, %cst [1] : vector<32x32xf32> to vector<32xf32>
    %10 = vector.shape_cast %9 : vector<32xf32> to vector<32x1xf32>
    %cst_7 = arith.constant 3.200000e+01 : f32
    %11 = vector.broadcast %cst_7 : f32 to vector<32x1xf32>
    %12 = arith.divf %10, %11 : vector<32x1xf32>
    %13 = vector.broadcast %12 : vector<32x1xf32> to vector<32x32xf32>
    %14 = arith.subf %3, %13 : vector<32x32xf32>
    %15 = arith.mulf %14, %14 : vector<32x32xf32>
    %cst_8 = arith.constant dense<0.000000e+00> : vector<32xf32>
    %16 = vector.multi_reduction <add>, %15, %cst_8 [1] : vector<32x32xf32> to vector<32xf32>
    %17 = vector.shape_cast %16 : vector<32xf32> to vector<32x1xf32>
    %cst_9 = arith.constant 0.0322580636 : f32
    %18 = vector.broadcast %cst_9 : f32 to vector<32x1xf32>
    %19 = arith.mulf %17, %18 : vector<32x1xf32>
    %20 = math.sqrt %19 : vector<32x1xf32>
    %cst_10 = arith.constant 9.99999997E-7 : f32
    %21 = vector.broadcast %cst_10 : f32 to vector<32x1xf32>
    %22 = arith.addf %20, %21 : vector<32x1xf32>
    %23 = tpu.reciprocal %22 : vector<32x1xf32> -> vector<32x1xf32>
    %24 = vector.broadcast %7 : vector<1x32xf32> to vector<32x32xf32>
    %25 = arith.mulf %24, %14 : vector<32x32xf32>
    %26 = vector.broadcast %23 : vector<32x1xf32> to vector<32x32xf32>
    %27 = arith.mulf %25, %26 : vector<32x32xf32>
    %28 = vector.broadcast %8 : vector<1x32xf32> to vector<32x32xf32>
    %29 = arith.addf %27, %28 : vector<32x32xf32>
    %c0_11 = arith.constant 0 : index
    %c0_12 = arith.constant 0 : index
    %c0_13 = arith.constant 0 : index
    %30 = vector.load %arg4[%c0_11, %c0_12, %c0_13] : memref<1x32x96xf32, #tpu.memory_space<vmem>>, vector<1x32x96xf32>
    %31 = vector.shape_cast %30 : vector<1x32x96xf32> to vector<32x96xf32>
    %cst_14 = arith.constant dense<0.000000e+00> : vector<32x96xf32>
    %32 = tpu.matmul %29, %31, %cst_14 {dimension_numbers = #tpu.dot_dimension_numbers<[1], [0], [0], [1], [0, 0, 1, 1], [], []>} : vector<32x32xf32>, vector<32x96xf32>, vector<32x96xf32> -> vector<32x96xf32>
    %c0_15 = arith.constant 0 : index
    %c0_16 = arith.constant 0 : index
    %c0_17 = arith.constant 0 : index
    %33 = vector.load %arg5[%c0_15, %c0_16, %c0_17] : memref<1x1x96xf32, #tpu.memory_space<vmem>>, vector<1x1x96xf32>
    %34 = vector.shape_cast %33 : vector<1x1x96xf32> to vector<1x96xf32>
    %35 = vector.broadcast %34 : vector<1x96xf32> to vector<32x96xf32>
    %36 = arith.addf %32, %35 : vector<32x96xf32>
    %37 = vector.extract_strided_slice %36 {offsets = [0, 0], sizes = [32, 32], strides = [1, 1]} : vector<32x96xf32> to vector<32x32xf32>
    %38 = vector.extract_strided_slice %36 {offsets = [0, 32], sizes = [32, 32], strides = [1, 1]} : vector<32x96xf32> to vector<32x32xf32>
    %39 = vector.extract_strided_slice %36 {offsets = [0, 64], sizes = [32, 32], strides = [1, 1]} : vector<32x96xf32> to vector<32x32xf32>
    %40 = vector.extract_strided_slice %6 {offsets = [0, 0], sizes = [1, 16], strides = [1, 1]} : vector<2x16xf32> to vector<1x16xf32>
    %41 = vector.extract_strided_slice %37 {offsets = [0, 0], sizes = [16, 32], strides = [1, 1]} : vector<32x32xf32> to vector<16x32xf32>
    %42 = vector.extract_strided_slice %38 {offsets = [0, 0], sizes = [16, 32], strides = [1, 1]} : vector<32x32xf32> to vector<16x32xf32>
    %43 = vector.extract_strided_slice %39 {offsets = [0, 0], sizes = [16, 32], strides = [1, 1]} : vector<32x32xf32> to vector<16x32xf32>
    %44 = vector.extract_strided_slice %41 {offsets = [0, 0], sizes = [16, 8], strides = [1, 1]} : vector<16x32xf32> to vector<16x8xf32>
    %45 = vector.extract_strided_slice %42 {offsets = [0, 0], sizes = [16, 8], strides = [1, 1]} : vector<16x32xf32> to vector<16x8xf32>
    %46 = vector.extract_strided_slice %43 {offsets = [0, 0], sizes = [16, 8], strides = [1, 1]} : vector<16x32xf32> to vector<16x8xf32>
    %cst_18 = arith.constant dense<0.000000e+00> : vector<16x16xf32>
    %47 = tpu.matmul %44, %45, %cst_18 {dimension_numbers = #tpu.dot_dimension_numbers<[1], [1], [0], [0], [0, 0, 1, 0], [], []>} : vector<16x8xf32>, vector<16x8xf32>, vector<16x16xf32> -> vector<16x16xf32>
    %cst_19 = arith.constant 0.353553385 : f32
    %48 = vector.broadcast %cst_19 : f32 to vector<16x16xf32>
    %49 = arith.mulf %47, %48 : vector<16x16xf32>
    %cst_20 = arith.constant 0.000000e+00 : f32
    %50 = vector.broadcast %cst_20 : f32 to vector<1x16xf32>
    %51 = arith.cmpf oeq, %40, %50 : vector<1x16xf32>
    %cst_21 = arith.constant -1.000000e+09 : f32
    %52 = vector.shape_cast %51 : vector<1x16xi1> to vector<1x16xi1>
    %53 = vector.broadcast %52 : vector<1x16xi1> to vector<16x16xi1>
    %54 = vector.broadcast %cst_21 : f32 to vector<16x16xf32>
    %55 = arith.select %53, %54, %49 : vector<16x16xi1>, vector<16x16xf32>
    %cst_22 = arith.constant dense<0xFF800000> : vector<16xf32>
    %56 = vector.multi_reduction <maximumf>, %55, %cst_22 [1] : vector<16x16xf32> to vector<16xf32>
    %57 = vector.shape_cast %56 : vector<16xf32> to vector<16x1xf32>
    %58 = vector.broadcast %57 : vector<16x1xf32> to vector<16x16xf32>
    %59 = arith.subf %55, %58 : vector<16x16xf32>
    %60 = math.exp %59 : vector<16x16xf32>
    %cst_23 = arith.constant dense<0.000000e+00> : vector<16xf32>
    %61 = vector.multi_reduction <add>, %60, %cst_23 [1] : vector<16x16xf32> to vector<16xf32>
    %62 = vector.shape_cast %61 : vector<16xf32> to vector<16x1xf32>
    %cst_24 = arith.constant dense<0.000000e+00> : vector<16x8xf32>
    %63 = tpu.matmul %60, %46, %cst_24 {dimension_numbers = #tpu.dot_dimension_numbers<[1], [0], [0], [1], [0, 0, 1, 1], [], []>} : vector<16x16xf32>, vector<16x8xf32>, vector<16x8xf32> -> vector<16x8xf32>
    %64 = tpu.reciprocal %62 : vector<16x1xf32> -> vector<16x1xf32>
    %65 = vector.broadcast %64 : vector<16x1xf32> to vector<16x8xf32>
    %66 = arith.mulf %63, %65 : vector<16x8xf32>
    %67 = vector.extract_strided_slice %41 {offsets = [0, 8], sizes = [16, 8], strides = [1, 1]} : vector<16x32xf32> to vector<16x8xf32>
    %68 = vector.extract_strided_slice %42 {offsets = [0, 8], sizes = [16, 8], strides = [1, 1]} : vector<16x32xf32> to vector<16x8xf32>
    %69 = vector.extract_strided_slice %43 {offsets = [0, 8], sizes = [16, 8], strides = [1, 1]} : vector<16x32xf32> to vector<16x8xf32>
    %cst_25 = arith.constant dense<0.000000e+00> : vector<16x16xf32>
    %70 = tpu.matmul %67, %68, %cst_25 {dimension_numbers = #tpu.dot_dimension_numbers<[1], [1], [0], [0], [0, 0, 1, 0], [], []>} : vector<16x8xf32>, vector<16x8xf32>, vector<16x16xf32> -> vector<16x16xf32>
    %cst_26 = arith.constant 0.353553385 : f32
    %71 = vector.broadcast %cst_26 : f32 to vector<16x16xf32>
    %72 = arith.mulf %70, %71 : vector<16x16xf32>
    %cst_27 = arith.constant 0.000000e+00 : f32
    %73 = vector.broadcast %cst_27 : f32 to vector<1x16xf32>
    %74 = arith.cmpf oeq, %40, %73 : vector<1x16xf32>
    %cst_28 = arith.constant -1.000000e+09 : f32
    %75 = vector.shape_cast %74 : vector<1x16xi1> to vector<1x16xi1>
    %76 = vector.broadcast %75 : vector<1x16xi1> to vector<16x16xi1>
    %77 = vector.broadcast %cst_28 : f32 to vector<16x16xf32>
    %78 = arith.select %76, %77, %72 : vector<16x16xi1>, vector<16x16xf32>
    %cst_29 = arith.constant dense<0xFF800000> : vector<16xf32>
    %79 = vector.multi_reduction <maximumf>, %78, %cst_29 [1] : vector<16x16xf32> to vector<16xf32>
    %80 = vector.shape_cast %79 : vector<16xf32> to vector<16x1xf32>
    %81 = vector.broadcast %80 : vector<16x1xf32> to vector<16x16xf32>
    %82 = arith.subf %78, %81 : vector<16x16xf32>
    %83 = math.exp %82 : vector<16x16xf32>
    %cst_30 = arith.constant dense<0.000000e+00> : vector<16xf32>
    %84 = vector.multi_reduction <add>, %83, %cst_30 [1] : vector<16x16xf32> to vector<16xf32>
    %85 = vector.shape_cast %84 : vector<16xf32> to vector<16x1xf32>
    %cst_31 = arith.constant dense<0.000000e+00> : vector<16x8xf32>
    %86 = tpu.matmul %83, %69, %cst_31 {dimension_numbers = #tpu.dot_dimension_numbers<[1], [0], [0], [1], [0, 0, 1, 1], [], []>} : vector<16x16xf32>, vector<16x8xf32>, vector<16x8xf32> -> vector<16x8xf32>
    %87 = tpu.reciprocal %85 : vector<16x1xf32> -> vector<16x1xf32>
    %88 = vector.broadcast %87 : vector<16x1xf32> to vector<16x8xf32>
    %89 = arith.mulf %86, %88 : vector<16x8xf32>
    %90 = vector.extract_strided_slice %41 {offsets = [0, 16], sizes = [16, 8], strides = [1, 1]} : vector<16x32xf32> to vector<16x8xf32>
    %91 = vector.extract_strided_slice %42 {offsets = [0, 16], sizes = [16, 8], strides = [1, 1]} : vector<16x32xf32> to vector<16x8xf32>
    %92 = vector.extract_strided_slice %43 {offsets = [0, 16], sizes = [16, 8], strides = [1, 1]} : vector<16x32xf32> to vector<16x8xf32>
    %cst_32 = arith.constant dense<0.000000e+00> : vector<16x16xf32>
    %93 = tpu.matmul %90, %91, %cst_32 {dimension_numbers = #tpu.dot_dimension_numbers<[1], [1], [0], [0], [0, 0, 1, 0], [], []>} : vector<16x8xf32>, vector<16x8xf32>, vector<16x16xf32> -> vector<16x16xf32>
    %cst_33 = arith.constant 0.353553385 : f32
    %94 = vector.broadcast %cst_33 : f32 to vector<16x16xf32>
    %95 = arith.mulf %93, %94 : vector<16x16xf32>
    %cst_34 = arith.constant 0.000000e+00 : f32
    %96 = vector.broadcast %cst_34 : f32 to vector<1x16xf32>
    %97 = arith.cmpf oeq, %40, %96 : vector<1x16xf32>
    %cst_35 = arith.constant -1.000000e+09 : f32
    %98 = vector.shape_cast %97 : vector<1x16xi1> to vector<1x16xi1>
    %99 = vector.broadcast %98 : vector<1x16xi1> to vector<16x16xi1>
    %100 = vector.broadcast %cst_35 : f32 to vector<16x16xf32>
    %101 = arith.select %99, %100, %95 : vector<16x16xi1>, vector<16x16xf32>
    %cst_36 = arith.constant dense<0xFF800000> : vector<16xf32>
    %102 = vector.multi_reduction <maximumf>, %101, %cst_36 [1] : vector<16x16xf32> to vector<16xf32>
    %103 = vector.shape_cast %102 : vector<16xf32> to vector<16x1xf32>
    %104 = vector.broadcast %103 : vector<16x1xf32> to vector<16x16xf32>
    %105 = arith.subf %101, %104 : vector<16x16xf32>
    %106 = math.exp %105 : vector<16x16xf32>
    %cst_37 = arith.constant dense<0.000000e+00> : vector<16xf32>
    %107 = vector.multi_reduction <add>, %106, %cst_37 [1] : vector<16x16xf32> to vector<16xf32>
    %108 = vector.shape_cast %107 : vector<16xf32> to vector<16x1xf32>
    %cst_38 = arith.constant dense<0.000000e+00> : vector<16x8xf32>
    %109 = tpu.matmul %106, %92, %cst_38 {dimension_numbers = #tpu.dot_dimension_numbers<[1], [0], [0], [1], [0, 0, 1, 1], [], []>} : vector<16x16xf32>, vector<16x8xf32>, vector<16x8xf32> -> vector<16x8xf32>
    %110 = tpu.reciprocal %108 : vector<16x1xf32> -> vector<16x1xf32>
    %111 = vector.broadcast %110 : vector<16x1xf32> to vector<16x8xf32>
    %112 = arith.mulf %109, %111 : vector<16x8xf32>
    %113 = vector.extract_strided_slice %41 {offsets = [0, 24], sizes = [16, 8], strides = [1, 1]} : vector<16x32xf32> to vector<16x8xf32>
    %114 = vector.extract_strided_slice %42 {offsets = [0, 24], sizes = [16, 8], strides = [1, 1]} : vector<16x32xf32> to vector<16x8xf32>
    %115 = vector.extract_strided_slice %43 {offsets = [0, 24], sizes = [16, 8], strides = [1, 1]} : vector<16x32xf32> to vector<16x8xf32>
    %cst_39 = arith.constant dense<0.000000e+00> : vector<16x16xf32>
    %116 = tpu.matmul %113, %114, %cst_39 {dimension_numbers = #tpu.dot_dimension_numbers<[1], [1], [0], [0], [0, 0, 1, 0], [], []>} : vector<16x8xf32>, vector<16x8xf32>, vector<16x16xf32> -> vector<16x16xf32>
    %cst_40 = arith.constant 0.353553385 : f32
    %117 = vector.broadcast %cst_40 : f32 to vector<16x16xf32>
    %118 = arith.mulf %116, %117 : vector<16x16xf32>
    %cst_41 = arith.constant 0.000000e+00 : f32
    %119 = vector.broadcast %cst_41 : f32 to vector<1x16xf32>
    %120 = arith.cmpf oeq, %40, %119 : vector<1x16xf32>
    %cst_42 = arith.constant -1.000000e+09 : f32
    %121 = vector.shape_cast %120 : vector<1x16xi1> to vector<1x16xi1>
    %122 = vector.broadcast %121 : vector<1x16xi1> to vector<16x16xi1>
    %123 = vector.broadcast %cst_42 : f32 to vector<16x16xf32>
    %124 = arith.select %122, %123, %118 : vector<16x16xi1>, vector<16x16xf32>
    %cst_43 = arith.constant dense<0xFF800000> : vector<16xf32>
    %125 = vector.multi_reduction <maximumf>, %124, %cst_43 [1] : vector<16x16xf32> to vector<16xf32>
    %126 = vector.shape_cast %125 : vector<16xf32> to vector<16x1xf32>
    %127 = vector.broadcast %126 : vector<16x1xf32> to vector<16x16xf32>
    %128 = arith.subf %124, %127 : vector<16x16xf32>
    %129 = math.exp %128 : vector<16x16xf32>
    %cst_44 = arith.constant dense<0.000000e+00> : vector<16xf32>
    %130 = vector.multi_reduction <add>, %129, %cst_44 [1] : vector<16x16xf32> to vector<16xf32>
    %131 = vector.shape_cast %130 : vector<16xf32> to vector<16x1xf32>
    %cst_45 = arith.constant dense<0.000000e+00> : vector<16x8xf32>
    %132 = tpu.matmul %129, %115, %cst_45 {dimension_numbers = #tpu.dot_dimension_numbers<[1], [0], [0], [1], [0, 0, 1, 1], [], []>} : vector<16x16xf32>, vector<16x8xf32>, vector<16x8xf32> -> vector<16x8xf32>
    %133 = tpu.reciprocal %131 : vector<16x1xf32> -> vector<16x1xf32>
    %134 = vector.broadcast %133 : vector<16x1xf32> to vector<16x8xf32>
    %135 = arith.mulf %132, %134 : vector<16x8xf32>
    %136 = tpu.concatenate %66, %89, %112, %135 in 1 : vector<16x8xf32>, vector<16x8xf32>, vector<16x8xf32>, vector<16x8xf32> -> vector<16x32xf32>
    %137 = vector.extract_strided_slice %6 {offsets = [1, 0], sizes = [1, 16], strides = [1, 1]} : vector<2x16xf32> to vector<1x16xf32>
    %138 = vector.extract_strided_slice %37 {offsets = [16, 0], sizes = [16, 32], strides = [1, 1]} : vector<32x32xf32> to vector<16x32xf32>
    %139 = vector.extract_strided_slice %38 {offsets = [16, 0], sizes = [16, 32], strides = [1, 1]} : vector<32x32xf32> to vector<16x32xf32>
    %140 = vector.extract_strided_slice %39 {offsets = [16, 0], sizes = [16, 32], strides = [1, 1]} : vector<32x32xf32> to vector<16x32xf32>
    %141 = vector.extract_strided_slice %138 {offsets = [0, 0], sizes = [16, 8], strides = [1, 1]} : vector<16x32xf32> to vector<16x8xf32>
    %142 = vector.extract_strided_slice %139 {offsets = [0, 0], sizes = [16, 8], strides = [1, 1]} : vector<16x32xf32> to vector<16x8xf32>
    %143 = vector.extract_strided_slice %140 {offsets = [0, 0], sizes = [16, 8], strides = [1, 1]} : vector<16x32xf32> to vector<16x8xf32>
    %cst_46 = arith.constant dense<0.000000e+00> : vector<16x16xf32>
    %144 = tpu.matmul %141, %142, %cst_46 {dimension_numbers = #tpu.dot_dimension_numbers<[1], [1], [0], [0], [0, 0, 1, 0], [], []>} : vector<16x8xf32>, vector<16x8xf32>, vector<16x16xf32> -> vector<16x16xf32>
    %cst_47 = arith.constant 0.353553385 : f32
    %145 = vector.broadcast %cst_47 : f32 to vector<16x16xf32>
    %146 = arith.mulf %144, %145 : vector<16x16xf32>
    %cst_48 = arith.constant 0.000000e+00 : f32
    %147 = vector.broadcast %cst_48 : f32 to vector<1x16xf32>
    %148 = arith.cmpf oeq, %137, %147 : vector<1x16xf32>
    %cst_49 = arith.constant -1.000000e+09 : f32
    %149 = vector.shape_cast %148 : vector<1x16xi1> to vector<1x16xi1>
    %150 = vector.broadcast %149 : vector<1x16xi1> to vector<16x16xi1>
    %151 = vector.broadcast %cst_49 : f32 to vector<16x16xf32>
    %152 = arith.select %150, %151, %146 : vector<16x16xi1>, vector<16x16xf32>
    %cst_50 = arith.constant dense<0xFF800000> : vector<16xf32>
    %153 = vector.multi_reduction <maximumf>, %152, %cst_50 [1] : vector<16x16xf32> to vector<16xf32>
    %154 = vector.shape_cast %153 : vector<16xf32> to vector<16x1xf32>
    %155 = vector.broadcast %154 : vector<16x1xf32> to vector<16x16xf32>
    %156 = arith.subf %152, %155 : vector<16x16xf32>
    %157 = math.exp %156 : vector<16x16xf32>
    %cst_51 = arith.constant dense<0.000000e+00> : vector<16xf32>
    %158 = vector.multi_reduction <add>, %157, %cst_51 [1] : vector<16x16xf32> to vector<16xf32>
    %159 = vector.shape_cast %158 : vector<16xf32> to vector<16x1xf32>
    %cst_52 = arith.constant dense<0.000000e+00> : vector<16x8xf32>
    %160 = tpu.matmul %157, %143, %cst_52 {dimension_numbers = #tpu.dot_dimension_numbers<[1], [0], [0], [1], [0, 0, 1, 1], [], []>} : vector<16x16xf32>, vector<16x8xf32>, vector<16x8xf32> -> vector<16x8xf32>
    %161 = tpu.reciprocal %159 : vector<16x1xf32> -> vector<16x1xf32>
    %162 = vector.broadcast %161 : vector<16x1xf32> to vector<16x8xf32>
    %163 = arith.mulf %160, %162 : vector<16x8xf32>
    %164 = vector.extract_strided_slice %138 {offsets = [0, 8], sizes = [16, 8], strides = [1, 1]} : vector<16x32xf32> to vector<16x8xf32>
    %165 = vector.extract_strided_slice %139 {offsets = [0, 8], sizes = [16, 8], strides = [1, 1]} : vector<16x32xf32> to vector<16x8xf32>
    %166 = vector.extract_strided_slice %140 {offsets = [0, 8], sizes = [16, 8], strides = [1, 1]} : vector<16x32xf32> to vector<16x8xf32>
    %cst_53 = arith.constant dense<0.000000e+00> : vector<16x16xf32>
    %167 = tpu.matmul %164, %165, %cst_53 {dimension_numbers = #tpu.dot_dimension_numbers<[1], [1], [0], [0], [0, 0, 1, 0], [], []>} : vector<16x8xf32>, vector<16x8xf32>, vector<16x16xf32> -> vector<16x16xf32>
    %cst_54 = arith.constant 0.353553385 : f32
    %168 = vector.broadcast %cst_54 : f32 to vector<16x16xf32>
    %169 = arith.mulf %167, %168 : vector<16x16xf32>
    %cst_55 = arith.constant 0.000000e+00 : f32
    %170 = vector.broadcast %cst_55 : f32 to vector<1x16xf32>
    %171 = arith.cmpf oeq, %137, %170 : vector<1x16xf32>
    %cst_56 = arith.constant -1.000000e+09 : f32
    %172 = vector.shape_cast %171 : vector<1x16xi1> to vector<1x16xi1>
    %173 = vector.broadcast %172 : vector<1x16xi1> to vector<16x16xi1>
    %174 = vector.broadcast %cst_56 : f32 to vector<16x16xf32>
    %175 = arith.select %173, %174, %169 : vector<16x16xi1>, vector<16x16xf32>
    %cst_57 = arith.constant dense<0xFF800000> : vector<16xf32>
    %176 = vector.multi_reduction <maximumf>, %175, %cst_57 [1] : vector<16x16xf32> to vector<16xf32>
    %177 = vector.shape_cast %176 : vector<16xf32> to vector<16x1xf32>
    %178 = vector.broadcast %177 : vector<16x1xf32> to vector<16x16xf32>
    %179 = arith.subf %175, %178 : vector<16x16xf32>
    %180 = math.exp %179 : vector<16x16xf32>
    %cst_58 = arith.constant dense<0.000000e+00> : vector<16xf32>
    %181 = vector.multi_reduction <add>, %180, %cst_58 [1] : vector<16x16xf32> to vector<16xf32>
    %182 = vector.shape_cast %181 : vector<16xf32> to vector<16x1xf32>
    %cst_59 = arith.constant dense<0.000000e+00> : vector<16x8xf32>
    %183 = tpu.matmul %180, %166, %cst_59 {dimension_numbers = #tpu.dot_dimension_numbers<[1], [0], [0], [1], [0, 0, 1, 1], [], []>} : vector<16x16xf32>, vector<16x8xf32>, vector<16x8xf32> -> vector<16x8xf32>
    %184 = tpu.reciprocal %182 : vector<16x1xf32> -> vector<16x1xf32>
    %185 = vector.broadcast %184 : vector<16x1xf32> to vector<16x8xf32>
    %186 = arith.mulf %183, %185 : vector<16x8xf32>
    %187 = vector.extract_strided_slice %138 {offsets = [0, 16], sizes = [16, 8], strides = [1, 1]} : vector<16x32xf32> to vector<16x8xf32>
    %188 = vector.extract_strided_slice %139 {offsets = [0, 16], sizes = [16, 8], strides = [1, 1]} : vector<16x32xf32> to vector<16x8xf32>
    %189 = vector.extract_strided_slice %140 {offsets = [0, 16], sizes = [16, 8], strides = [1, 1]} : vector<16x32xf32> to vector<16x8xf32>
    %cst_60 = arith.constant dense<0.000000e+00> : vector<16x16xf32>
    %190 = tpu.matmul %187, %188, %cst_60 {dimension_numbers = #tpu.dot_dimension_numbers<[1], [1], [0], [0], [0, 0, 1, 0], [], []>} : vector<16x8xf32>, vector<16x8xf32>, vector<16x16xf32> -> vector<16x16xf32>
    %cst_61 = arith.constant 0.353553385 : f32
    %191 = vector.broadcast %cst_61 : f32 to vector<16x16xf32>
    %192 = arith.mulf %190, %191 : vector<16x16xf32>
    %cst_62 = arith.constant 0.000000e+00 : f32
    %193 = vector.broadcast %cst_62 : f32 to vector<1x16xf32>
    %194 = arith.cmpf oeq, %137, %193 : vector<1x16xf32>
    %cst_63 = arith.constant -1.000000e+09 : f32
    %195 = vector.shape_cast %194 : vector<1x16xi1> to vector<1x16xi1>
    %196 = vector.broadcast %195 : vector<1x16xi1> to vector<16x16xi1>
    %197 = vector.broadcast %cst_63 : f32 to vector<16x16xf32>
    %198 = arith.select %196, %197, %192 : vector<16x16xi1>, vector<16x16xf32>
    %cst_64 = arith.constant dense<0xFF800000> : vector<16xf32>
    %199 = vector.multi_reduction <maximumf>, %198, %cst_64 [1] : vector<16x16xf32> to vector<16xf32>
    %200 = vector.shape_cast %199 : vector<16xf32> to vector<16x1xf32>
    %201 = vector.broadcast %200 : vector<16x1xf32> to vector<16x16xf32>
    %202 = arith.subf %198, %201 : vector<16x16xf32>
    %203 = math.exp %202 : vector<16x16xf32>
    %cst_65 = arith.constant dense<0.000000e+00> : vector<16xf32>
    %204 = vector.multi_reduction <add>, %203, %cst_65 [1] : vector<16x16xf32> to vector<16xf32>
    %205 = vector.shape_cast %204 : vector<16xf32> to vector<16x1xf32>
    %cst_66 = arith.constant dense<0.000000e+00> : vector<16x8xf32>
    %206 = tpu.matmul %203, %189, %cst_66 {dimension_numbers = #tpu.dot_dimension_numbers<[1], [0], [0], [1], [0, 0, 1, 1], [], []>} : vector<16x16xf32>, vector<16x8xf32>, vector<16x8xf32> -> vector<16x8xf32>
    %207 = tpu.reciprocal %205 : vector<16x1xf32> -> vector<16x1xf32>
    %208 = vector.broadcast %207 : vector<16x1xf32> to vector<16x8xf32>
    %209 = arith.mulf %206, %208 : vector<16x8xf32>
    %210 = vector.extract_strided_slice %138 {offsets = [0, 24], sizes = [16, 8], strides = [1, 1]} : vector<16x32xf32> to vector<16x8xf32>
    %211 = vector.extract_strided_slice %139 {offsets = [0, 24], sizes = [16, 8], strides = [1, 1]} : vector<16x32xf32> to vector<16x8xf32>
    %212 = vector.extract_strided_slice %140 {offsets = [0, 24], sizes = [16, 8], strides = [1, 1]} : vector<16x32xf32> to vector<16x8xf32>
    %cst_67 = arith.constant dense<0.000000e+00> : vector<16x16xf32>
    %213 = tpu.matmul %210, %211, %cst_67 {dimension_numbers = #tpu.dot_dimension_numbers<[1], [1], [0], [0], [0, 0, 1, 0], [], []>} : vector<16x8xf32>, vector<16x8xf32>, vector<16x16xf32> -> vector<16x16xf32>
    %cst_68 = arith.constant 0.353553385 : f32
    %214 = vector.broadcast %cst_68 : f32 to vector<16x16xf32>
    %215 = arith.mulf %213, %214 : vector<16x16xf32>
    %cst_69 = arith.constant 0.000000e+00 : f32
    %216 = vector.broadcast %cst_69 : f32 to vector<1x16xf32>
    %217 = arith.cmpf oeq, %137, %216 : vector<1x16xf32>
    %cst_70 = arith.constant -1.000000e+09 : f32
    %218 = vector.shape_cast %217 : vector<1x16xi1> to vector<1x16xi1>
    %219 = vector.broadcast %218 : vector<1x16xi1> to vector<16x16xi1>
    %220 = vector.broadcast %cst_70 : f32 to vector<16x16xf32>
    %221 = arith.select %219, %220, %215 : vector<16x16xi1>, vector<16x16xf32>
    %cst_71 = arith.constant dense<0xFF800000> : vector<16xf32>
    %222 = vector.multi_reduction <maximumf>, %221, %cst_71 [1] : vector<16x16xf32> to vector<16xf32>
    %223 = vector.shape_cast %222 : vector<16xf32> to vector<16x1xf32>
    %224 = vector.broadcast %223 : vector<16x1xf32> to vector<16x16xf32>
    %225 = arith.subf %221, %224 : vector<16x16xf32>
    %226 = math.exp %225 : vector<16x16xf32>
    %cst_72 = arith.constant dense<0.000000e+00> : vector<16xf32>
    %227 = vector.multi_reduction <add>, %226, %cst_72 [1] : vector<16x16xf32> to vector<16xf32>
    %228 = vector.shape_cast %227 : vector<16xf32> to vector<16x1xf32>
    %cst_73 = arith.constant dense<0.000000e+00> : vector<16x8xf32>
    %229 = tpu.matmul %226, %212, %cst_73 {dimension_numbers = #tpu.dot_dimension_numbers<[1], [0], [0], [1], [0, 0, 1, 1], [], []>} : vector<16x16xf32>, vector<16x8xf32>, vector<16x8xf32> -> vector<16x8xf32>
    %230 = tpu.reciprocal %228 : vector<16x1xf32> -> vector<16x1xf32>
    %231 = vector.broadcast %230 : vector<16x1xf32> to vector<16x8xf32>
    %232 = arith.mulf %229, %231 : vector<16x8xf32>
    %233 = tpu.concatenate %163, %186, %209, %232 in 1 : vector<16x8xf32>, vector<16x8xf32>, vector<16x8xf32>, vector<16x8xf32> -> vector<16x32xf32>
    %234 = tpu.concatenate %136, %233 in 0 : vector<16x32xf32>, vector<16x32xf32> -> vector<32x32xf32>
    %c0_74 = arith.constant 0 : index
    %c0_75 = arith.constant 0 : index
    %c0_76 = arith.constant 0 : index
    %235 = vector.load %arg6[%c0_74, %c0_75, %c0_76] : memref<1x32x32xf32, #tpu.memory_space<vmem>>, vector<1x32x32xf32>
    %236 = vector.shape_cast %235 : vector<1x32x32xf32> to vector<32x32xf32>
    %cst_77 = arith.constant dense<0.000000e+00> : vector<32x32xf32>
    %237 = tpu.matmul %234, %236, %cst_77 {dimension_numbers = #tpu.dot_dimension_numbers<[1], [0], [0], [1], [0, 0, 1, 1], [], []>} : vector<32x32xf32>, vector<32x32xf32>, vector<32x32xf32> -> vector<32x32xf32>
    %c0_78 = arith.constant 0 : index
    %c0_79 = arith.constant 0 : index
    %c0_80 = arith.constant 0 : index
    %238 = vector.load %arg7[%c0_78, %c0_79, %c0_80] : memref<1x1x32xf32, #tpu.memory_space<vmem>>, vector<1x1x32xf32>
    %239 = vector.shape_cast %238 : vector<1x1x32xf32> to vector<1x32xf32>
    %240 = vector.broadcast %239 : vector<1x32xf32> to vector<32x32xf32>
    %241 = arith.addf %237, %240 : vector<32x32xf32>
    %242 = arith.addf %3, %241 : vector<32x32xf32>
    %243 = vector.extract_strided_slice %5 {offsets = [2, 0], sizes = [1, 32], strides = [1, 1]} : vector<4x32xf32> to vector<1x32xf32>
    %244 = vector.extract_strided_slice %5 {offsets = [3, 0], sizes = [1, 32], strides = [1, 1]} : vector<4x32xf32> to vector<1x32xf32>
    %cst_81 = arith.constant dense<0.000000e+00> : vector<32xf32>
    %245 = vector.multi_reduction <add>, %242, %cst_81 [1] : vector<32x32xf32> to vector<32xf32>
    %246 = vector.shape_cast %245 : vector<32xf32> to vector<32x1xf32>
    %cst_82 = arith.constant 3.200000e+01 : f32
    %247 = vector.broadcast %cst_82 : f32 to vector<32x1xf32>
    %248 = arith.divf %246, %247 : vector<32x1xf32>
    %249 = vector.broadcast %248 : vector<32x1xf32> to vector<32x32xf32>
    %250 = arith.subf %242, %249 : vector<32x32xf32>
    %251 = arith.mulf %250, %250 : vector<32x32xf32>
    %cst_83 = arith.constant dense<0.000000e+00> : vector<32xf32>
    %252 = vector.multi_reduction <add>, %251, %cst_83 [1] : vector<32x32xf32> to vector<32xf32>
    %253 = vector.shape_cast %252 : vector<32xf32> to vector<32x1xf32>
    %cst_84 = arith.constant 0.0322580636 : f32
    %254 = vector.broadcast %cst_84 : f32 to vector<32x1xf32>
    %255 = arith.mulf %253, %254 : vector<32x1xf32>
    %256 = math.sqrt %255 : vector<32x1xf32>
    %cst_85 = arith.constant 9.99999997E-7 : f32
    %257 = vector.broadcast %cst_85 : f32 to vector<32x1xf32>
    %258 = arith.addf %256, %257 : vector<32x1xf32>
    %259 = tpu.reciprocal %258 : vector<32x1xf32> -> vector<32x1xf32>
    %260 = vector.broadcast %243 : vector<1x32xf32> to vector<32x32xf32>
    %261 = arith.mulf %260, %250 : vector<32x32xf32>
    %262 = vector.broadcast %259 : vector<32x1xf32> to vector<32x32xf32>
    %263 = arith.mulf %261, %262 : vector<32x32xf32>
    %264 = vector.broadcast %244 : vector<1x32xf32> to vector<32x32xf32>
    %265 = arith.addf %263, %264 : vector<32x32xf32>
    %c0_86 = arith.constant 0 : index
    %c0_87 = arith.constant 0 : index
    %c0_88 = arith.constant 0 : index
    %266 = vector.load %arg8[%c0_86, %c0_87, %c0_88] : memref<1x32x64xf32, #tpu.memory_space<vmem>>, vector<1x32x64xf32>
    %267 = vector.shape_cast %266 : vector<1x32x64xf32> to vector<32x64xf32>
    %cst_89 = arith.constant dense<0.000000e+00> : vector<32x64xf32>
    %268 = tpu.matmul %265, %267, %cst_89 {dimension_numbers = #tpu.dot_dimension_numbers<[1], [0], [0], [1], [0, 0, 1, 1], [], []>} : vector<32x32xf32>, vector<32x64xf32>, vector<32x64xf32> -> vector<32x64xf32>
    %c0_90 = arith.constant 0 : index
    %c0_91 = arith.constant 0 : index
    %c0_92 = arith.constant 0 : index
    %269 = vector.load %arg9[%c0_90, %c0_91, %c0_92] : memref<1x1x64xf32, #tpu.memory_space<vmem>>, vector<1x1x64xf32>
    %270 = vector.shape_cast %269 : vector<1x1x64xf32> to vector<1x64xf32>
    %271 = vector.broadcast %270 : vector<1x64xf32> to vector<32x64xf32>
    %272 = arith.addf %268, %271 : vector<32x64xf32>
    %cst_93 = arith.constant 0.000000e+00 : f32
    %273 = vector.broadcast %cst_93 : f32 to vector<32x64xf32>
    %274 = arith.maximumf %272, %273 : vector<32x64xf32>
    %c0_94 = arith.constant 0 : index
    %c0_95 = arith.constant 0 : index
    %c0_96 = arith.constant 0 : index
    %275 = vector.load %arg10[%c0_94, %c0_95, %c0_96] : memref<1x64x32xf32, #tpu.memory_space<vmem>>, vector<1x64x32xf32>
    %276 = vector.shape_cast %275 : vector<1x64x32xf32> to vector<64x32xf32>
    %cst_97 = arith.constant dense<0.000000e+00> : vector<32x32xf32>
    %277 = tpu.matmul %274, %276, %cst_97 {dimension_numbers = #tpu.dot_dimension_numbers<[1], [0], [0], [1], [0, 0, 1, 1], [], []>} : vector<32x64xf32>, vector<64x32xf32>, vector<32x32xf32> -> vector<32x32xf32>
    %c0_98 = arith.constant 0 : index
    %c0_99 = arith.constant 0 : index
    %c0_100 = arith.constant 0 : index
    %278 = vector.load %arg11[%c0_98, %c0_99, %c0_100] : memref<1x1x32xf32, #tpu.memory_space<vmem>>, vector<1x1x32xf32>
    %279 = vector.shape_cast %278 : vector<1x1x32xf32> to vector<1x32xf32>
    %280 = vector.broadcast %279 : vector<1x32xf32> to vector<32x32xf32>
    %281 = arith.addf %277, %280 : vector<32x32xf32>
    %282 = arith.addf %242, %281 : vector<32x32xf32>
    %c0_101 = arith.constant 0 : index
    %c0_102 = arith.constant 0 : index
    %283 = vector.load %arg18[%c0_101, %c0_102] : memref<32x32xf32, #tpu.memory_space<vmem>>, vector<32x32xf32>
    tpu.vector_store %arg18[%c0_101, %c0_102], %282 {strides = array<i32>} : memref<32x32xf32, #tpu.memory_space<vmem>>, vector<32x32xf32>,
    %c1_i32 = arith.constant 1 : i32
    %284 = arith.cmpi eq, %arg0, %c1_i32 : i32
    %285 = arith.extui %284 : i1 to i32
    %c0_i32_103 = arith.constant 0 : i32
    %286 = arith.cmpi ne, %285, %c0_i32_103 : i32
    scf.if %286 {
      %c0_104 = arith.constant 0 : index
      %c0_105 = arith.constant 0 : index
      %287 = vector.load %arg12[%c0_104, %c0_105] : memref<2x32xf32, #tpu.memory_space<vmem>>, vector<2x32xf32>
      %288 = vector.extract_strided_slice %287 {offsets = [0, 0], sizes = [1, 32], strides = [1, 1]} : vector<2x32xf32> to vector<1x32xf32>
      %289 = vector.extract_strided_slice %287 {offsets = [1, 0], sizes = [1, 32], strides = [1, 1]} : vector<2x32xf32> to vector<1x32xf32>
      %cst_106 = arith.constant dense<0.000000e+00> : vector<32xf32>
      %290 = vector.multi_reduction <add>, %282, %cst_106 [1] : vector<32x32xf32> to vector<32xf32>
      %291 = vector.shape_cast %290 : vector<32xf32> to vector<32x1xf32>
      %cst_107 = arith.constant 3.200000e+01 : f32
      %292 = vector.broadcast %cst_107 : f32 to vector<32x1xf32>
      %293 = arith.divf %291, %292 : vector<32x1xf32>
      %294 = vector.broadcast %293 : vector<32x1xf32> to vector<32x32xf32>
      %295 = arith.subf %282, %294 : vector<32x32xf32>
      %296 = arith.mulf %295, %295 : vector<32x32xf32>
      %cst_108 = arith.constant dense<0.000000e+00> : vector<32xf32>
      %297 = vector.multi_reduction <add>, %296, %cst_108 [1] : vector<32x32xf32> to vector<32xf32>
      %298 = vector.shape_cast %297 : vector<32xf32> to vector<32x1xf32>
      %cst_109 = arith.constant 0.0322580636 : f32
      %299 = vector.broadcast %cst_109 : f32 to vector<32x1xf32>
      %300 = arith.mulf %298, %299 : vector<32x1xf32>
      %301 = math.sqrt %300 : vector<32x1xf32>
      %cst_110 = arith.constant 9.99999997E-7 : f32
      %302 = vector.broadcast %cst_110 : f32 to vector<32x1xf32>
      %303 = arith.addf %301, %302 : vector<32x1xf32>
      %304 = tpu.reciprocal %303 : vector<32x1xf32> -> vector<32x1xf32>
      %305 = vector.broadcast %288 : vector<1x32xf32> to vector<32x32xf32>
      %306 = arith.mulf %305, %295 : vector<32x32xf32>
      %307 = vector.broadcast %304 : vector<32x1xf32> to vector<32x32xf32>
      %308 = arith.mulf %306, %307 : vector<32x32xf32>
      %309 = vector.broadcast %289 : vector<1x32xf32> to vector<32x32xf32>
      %310 = arith.addf %308, %309 : vector<32x32xf32>
      %c0_111 = arith.constant 0 : index
      %c0_112 = arith.constant 0 : index
      %311 = vector.load %arg13[%c0_111, %c0_112] : memref<8x16xf32, #tpu.memory_space<vmem>>, vector<8x16xf32>
      %c0_113 = arith.constant 0 : index
      %c0_114 = arith.constant 0 : index
      %312 = vector.load %arg14[%c0_113, %c0_114] : memref<8x1xf32, #tpu.memory_space<vmem>>, vector<8x1xf32>
      %c0_115 = arith.constant 0 : index
      %c0_116 = arith.constant 0 : index
      %313 = vector.load %arg15[%c0_115, %c0_116] : memref<64x5xf32, #tpu.memory_space<vmem>>, vector<64x5xf32>
      %c0_117 = arith.constant 0 : index
      %c0_118 = arith.constant 0 : index
      %314 = vector.load %arg16[%c0_117, %c0_118] : memref<1x5xf32, #tpu.memory_space<vmem>>, vector<1x5xf32>
      %315 = vector.extract_strided_slice %310 {offsets = [0, 0], sizes = [16, 32], strides = [1, 1]} : vector<32x32xf32> to vector<16x32xf32>
      %cst_119 = arith.constant dense<0.000000e+00> : vector<8x32xf32>
      %316 = tpu.matmul %311, %315, %cst_119 {dimension_numbers = #tpu.dot_dimension_numbers<[1], [0], [0], [1], [0, 0, 1, 1], [], []>} : vector<8x16xf32>, vector<16x32xf32>, vector<8x32xf32> -> vector<8x32xf32>
      %317 = vector.broadcast %312 : vector<8x1xf32> to vector<8x32xf32>
      %318 = arith.addf %316, %317 : vector<8x32xf32>
      %319 = tpu.concatenate %318, %318 in 1 : vector<8x32xf32>, vector<8x32xf32> -> vector<8x64xf32>
      %cst_120 = arith.constant dense<0.000000e+00> : vector<8x5xf32>
      %320 = tpu.matmul %319, %313, %cst_120 {dimension_numbers = #tpu.dot_dimension_numbers<[1], [0], [0], [1], [0, 0, 1, 1], [], []>} : vector<8x64xf32>, vector<64x5xf32>, vector<8x5xf32> -> vector<8x5xf32>
      %321 = vector.broadcast %314 : vector<1x5xf32> to vector<8x5xf32>
      %322 = arith.addf %320, %321 : vector<8x5xf32>
      %c0_121 = arith.constant 0 : index
      %c0_122 = arith.constant 0 : index
      %c0_123 = arith.constant 0 : index
      %323 = vector.load %arg17[%c0_121, %c0_122, %c0_123] : memref<2x8x5xf32, #tpu.memory_space<vmem>>, vector<1x8x5xf32>
      %324 = vector.shape_cast %323 : vector<1x8x5xf32> to vector<8x5xf32>
      %325 = vector.shape_cast %322 : vector<8x5xf32> to vector<1x8x5xf32>
      tpu.vector_store %arg17[%c0_121, %c0_122, %c0_123], %325 {strides = array<i32>} : memref<2x8x5xf32, #tpu.memory_space<vmem>>, vector<1x8x5xf32>,
      %326 = vector.extract_strided_slice %310 {offsets = [16, 0], sizes = [16, 32], strides = [1, 1]} : vector<32x32xf32> to vector<16x32xf32>
      %cst_124 = arith.constant dense<0.000000e+00> : vector<8x32xf32>
      %327 = tpu.matmul %311, %326, %cst_124 {dimension_numbers = #tpu.dot_dimension_numbers<[1], [0], [0], [1], [0, 0, 1, 1], [], []>} : vector<8x16xf32>, vector<16x32xf32>, vector<8x32xf32> -> vector<8x32xf32>
      %328 = vector.broadcast %312 : vector<8x1xf32> to vector<8x32xf32>
      %329 = arith.addf %327, %328 : vector<8x32xf32>
      %330 = tpu.concatenate %329, %329 in 1 : vector<8x32xf32>, vector<8x32xf32> -> vector<8x64xf32>
      %cst_125 = arith.constant dense<0.000000e+00> : vector<8x5xf32>
      %331 = tpu.matmul %330, %313, %cst_125 {dimension_numbers = #tpu.dot_dimension_numbers<[1], [0], [0], [1], [0, 0, 1, 1], [], []>} : vector<8x64xf32>, vector<64x5xf32>, vector<8x5xf32> -> vector<8x5xf32>
      %332 = vector.broadcast %314 : vector<1x5xf32> to vector<8x5xf32>
      %333 = arith.addf %331, %332 : vector<8x5xf32>
      %c1 = arith.constant 1 : index
      %c0_126 = arith.constant 0 : index
      %c0_127 = arith.constant 0 : index
      %334 = vector.load %arg17[%c1, %c0_126, %c0_127] : memref<2x8x5xf32, #tpu.memory_space<vmem>>, vector<1x8x5xf32>
      %335 = vector.shape_cast %334 : vector<1x8x5xf32> to vector<8x5xf32>
      %336 = vector.shape_cast %333 : vector<8x5xf32> to vector<1x8x5xf32>
      tpu.vector_store %arg17[%c1, %c0_126, %c0_127], %336 {strides = array<i32>} : memref<2x8x5xf32, #tpu.memory_space<vmem>>, vector<1x8x5xf32>,
    } else {
    }
    return
  }
  func.func @transform_0(%arg0: i32) -> (i32, i32) {
    %c0_i32 = arith.constant 0 : i32
    %c0_i32_0 = arith.constant 0 : i32
    %c0_i32_1 = arith.constant 0 : i32
    return %c0_i32, %c0_i32_0 : i32, i32
  }
  func.func @transform_1(%arg0: i32) -> (i32, i32) {
    %c0_i32 = arith.constant 0 : i32
    %c0_i32_0 = arith.constant 0 : i32
    %c0_i32_1 = arith.constant 0 : i32
    return %c0_i32, %c0_i32_0 : i32, i32
  }
  func.func @transform_2(%arg0: i32) -> (i32, i32, i32) {
    %c0_i32 = arith.constant 0 : i32
    %c0_i32_0 = arith.constant 0 : i32
    %c0_i32_1 = arith.constant 0 : i32
    return %arg0, %c0_i32, %c0_i32_0 : i32, i32, i32
  }
  func.func @transform_3(%arg0: i32) -> (i32, i32, i32) {
    %c0_i32 = arith.constant 0 : i32
    %c0_i32_0 = arith.constant 0 : i32
    %c0_i32_1 = arith.constant 0 : i32
    return %arg0, %c0_i32, %c0_i32_0 : i32, i32, i32
  }
  func.func @transform_4(%arg0: i32) -> (i32, i32, i32) {
    %c0_i32 = arith.constant 0 : i32
    %c0_i32_0 = arith.constant 0 : i32
    %c0_i32_1 = arith.constant 0 : i32
    return %arg0, %c0_i32, %c0_i32_0 : i32, i32, i32
  }
  func.func @transform_5(%arg0: i32) -> (i32, i32, i32) {
    %c0_i32 = arith.constant 0 : i32
    %c0_i32_0 = arith.constant 0 : i32
    %c0_i32_1 = arith.constant 0 : i32
    return %arg0, %c0_i32, %c0_i32_0 : i32, i32, i32
  }
  func.func @transform_6(%arg0: i32) -> (i32, i32, i32) {
    %c0_i32 = arith.constant 0 : i32
    %c0_i32_0 = arith.constant 0 : i32
    %c0_i32_1 = arith.constant 0 : i32
    return %arg0, %c0_i32, %c0_i32_0 : i32, i32, i32
  }
  func.func @transform_7(%arg0: i32) -> (i32, i32, i32) {
    %c0_i32 = arith.constant 0 : i32
    %c0_i32_0 = arith.constant 0 : i32
    %c0_i32_1 = arith.constant 0 : i32
    return %arg0, %c0_i32, %c0_i32_0 : i32, i32, i32
  }
  func.func @transform_8(%arg0: i32) -> (i32, i32, i32) {
    %c0_i32 = arith.constant 0 : i32
    %c0_i32_0 = arith.constant 0 : i32
    %c0_i32_1 = arith.constant 0 : i32
    return %arg0, %c0_i32, %c0_i32_0 : i32, i32, i32
  }
  func.func @transform_9(%arg0: i32) -> (i32, i32, i32) {
    %c0_i32 = arith.constant 0 : i32
    %c0_i32_0 = arith.constant 0 : i32
    %c0_i32_1 = arith.constant 0 : i32
    return %arg0, %c0_i32, %c0_i32_0 : i32, i32, i32
  }
  func.func @transform_10(%arg0: i32) -> (i32, i32, i32) {
    %c0_i32 = arith.constant 0 : i32
    %c0_i32_0 = arith.constant 0 : i32
    %c0_i32_1 = arith.constant 0 : i32
    return %arg0, %c0_i32, %c0_i32_0 : i32, i32, i32
  }
  func.func @transform_11(%arg0: i32) -> (i32, i32) {
    %c0_i32 = arith.constant 0 : i32
    %c0_i32_0 = arith.constant 0 : i32
    %c0_i32_1 = arith.constant 0 : i32
    return %c0_i32, %c0_i32_0 : i32, i32
  }
  func.func @transform_12(%arg0: i32) -> (i32, i32) {
    %c0_i32 = arith.constant 0 : i32
    %c0_i32_0 = arith.constant 0 : i32
    %c0_i32_1 = arith.constant 0 : i32
    return %c0_i32, %c0_i32_0 : i32, i32
  }
  func.func @transform_13(%arg0: i32) -> (i32, i32) {
    %c0_i32 = arith.constant 0 : i32
    %c0_i32_0 = arith.constant 0 : i32
    %c0_i32_1 = arith.constant 0 : i32
    return %c0_i32, %c0_i32_0 : i32, i32
  }
  func.func @transform_14(%arg0: i32) -> (i32, i32) {
    %c0_i32 = arith.constant 0 : i32
    %c0_i32_0 = arith.constant 0 : i32
    %c0_i32_1 = arith.constant 0 : i32
    return %c0_i32, %c0_i32_0 : i32, i32
  }
  func.func @transform_15(%arg0: i32) -> (i32, i32) {
    %c0_i32 = arith.constant 0 : i32
    %c0_i32_0 = arith.constant 0 : i32
    %c0_i32_1 = arith.constant 0 : i32
    return %c0_i32, %c0_i32_0 : i32, i32
  }
  func.func @transform_16(%arg0: i32) -> (i32, i32, i32) {
    %c0_i32 = arith.constant 0 : i32
    %c0_i32_0 = arith.constant 0 : i32
    %c0_i32_1 = arith.constant 0 : i32
    %c0_i32_2 = arith.constant 0 : i32
    return %c0_i32, %c0_i32_0, %c0_i32_1 : i32, i32, i32
  }
}

</mosaic_0001>

<llo_original>
// kernel: encoder_edge_classify_forward.1
$region0: #{encoder_edge_classify_forward.1}
  #allocation0 [shape = 'u32[]', space=smem, size = 0x4, offset = 0x4, fixed_abs, tag = 'smem constant byte address 0x4 - core index']
  #allocation1 [shape = 'u32[144,128]{1,0:T(1,128)}', space=vmem, size = 0x12000, scoped, tag = 'internal scratch']
  #allocation2 [shape = 'f32[32,32]{1,0:T(8,128)}', space=vmem, size = 0x4000, scoped, tag = 'scratch operand']
  %s0 = inlined_call_operand.vmem [shape: f32[32,32], index: 0, kind: input, shape index: {}]
  %s1 = inlined_call_operand.vmem [shape: f32[2,16], index: 1, kind: input, shape index: {}]
  %s2 = inlined_call_operand.vmem [shape: f32[2,4,32], index: 2, kind: input, shape index: {}]
  %s3 = inlined_call_operand.vmem [shape: f32[2,32,96], index: 3, kind: input, shape index: {}]
  %s4 = inlined_call_operand.vmem [shape: f32[2,1,96], index: 4, kind: input, shape index: {}]
  %s5 = inlined_call_operand.vmem [shape: f32[2,32,32], index: 5, kind: input, shape index: {}]
  %s6 = inlined_call_operand.vmem [shape: f32[2,1,32], index: 6, kind: input, shape index: {}]
  %s7 = inlined_call_operand.vmem [shape: f32[2,32,64], index: 7, kind: input, shape index: {}]
  %s8 = inlined_call_operand.vmem [shape: f32[2,1,64], index: 8, kind: input, shape index: {}]
  %s9 = inlined_call_operand.vmem [shape: f32[2,64,32], index: 9, kind: input, shape index: {}]
  %s10 = inlined_call_operand.vmem [shape: f32[2,1,32], index: 10, kind: input, shape index: {}]
  %s11 = inlined_call_operand.vmem [shape: f32[2,32], index: 11, kind: input, shape index: {}]
  %s12 = inlined_call_operand.vmem [shape: f32[8,16], index: 12, kind: input, shape index: {}]
  %s13 = inlined_call_operand.vmem [shape: f32[8,1], index: 13, kind: input, shape index: {}]
  %s14 = inlined_call_operand.vmem [shape: f32[64,5], index: 14, kind: input, shape index: {}]
  %s15 = inlined_call_operand.vmem [shape: f32[1,5], index: 15, kind: input, shape index: {}]
  %s16 = inlined_call_operand.vmem [shape: f32[2,8,5], index: 16, kind: output, shape index: {}]
  %s17 = sld [smem:[#allocation0]]
  $region105: #{encoder_edge_classify_forward.1} parent=0
    _
  %s19 = ssub.s32 1, %s17
  %s20 = scalar_select 0, %s19, %s17
  loop: start=0, step=1, limit=4
  $region2: #{encoder_edge_classify_forward.1} parent=0 // loop_pre_header
    _
  $region3: #{encoder_edge_classify_forward.1} parent=0 // loop_header
    %s22 = sphi 0, %s26
    %p23 = scmp.ge.s32.totalorder %s22, 4
    %s30 = sphi 0, %s30
    %s32 = sphi 0, %s30
    %s33 = sphi 0, %s32
    %s47 = sphi 0, %s33
    %s51 = sphi 0, %s51
    %s53 = sphi 0, %s51
    %s54 = sphi 0, %s53
    %s68 = sphi 0, %s54
    %s74 = sphi 0, %s76
    %s77 = sphi 0, %s74
    %s78 = sphi 0, %s77
    %s94 = sphi 0, %s78
    %s100 = sphi 0, %s102
    %s103 = sphi 0, %s100
    %s104 = sphi 0, %s103
    %s120 = sphi 0, %s104
    %s126 = sphi 0, %s128
    %s129 = sphi 0, %s126
    %s130 = sphi 0, %s129
    %s146 = sphi 0, %s130
    %s152 = sphi 0, %s154
    %s155 = sphi 0, %s152
    %s156 = sphi 0, %s155
    %s172 = sphi 0, %s156
    %s178 = sphi 0, %s180
    %s181 = sphi 0, %s178
    %s182 = sphi 0, %s181
    %s198 = sphi 0, %s182
    %s204 = sphi 0, %s206
    %s207 = sphi 0, %s204
    %s208 = sphi 0, %s207
    %s224 = sphi 0, %s208
    %s230 = sphi 0, %s232
    %s233 = sphi 0, %s230
    %s234 = sphi 0, %s233
    %s250 = sphi 0, %s234
    %s256 = sphi 0, %s258
    %s259 = sphi 0, %s256
    %s260 = sphi 0, %s259
    %s276 = sphi 0, %s260
    %s282 = sphi 0, %s284
    %s285 = sphi 0, %s282
    %s286 = sphi 0, %s285
    %s302 = sphi 0, %s286
    %s306 = sphi 0, %s306
    %s308 = sphi 0, %s306
    %s309 = sphi 0, %s308
    %s323 = sphi 0, %s309
    %s327 = sphi 0, %s327
    %s329 = sphi 0, %s327
    %s330 = sphi 0, %s329
    %s344 = sphi 0, %s330
    %s348 = sphi 0, %s348
    %s350 = sphi 0, %s348
    %s351 = sphi 0, %s350
    %s365 = sphi 0, %s351
    %s369 = sphi 0, %s369
    %s371 = sphi 0, %s369
    %s372 = sphi 0, %s371
    %s386 = sphi 0, %s372
    %s390 = sphi 0, %s390
    %s392 = sphi 0, %s390
    %s393 = sphi 0, %s392
    %s407 = sphi 0, %s393
    %s411 = sphi 0, %s411
    %s413 = sphi 0, %s411
    %s414 = sphi 0, %s413
    %s428 = sphi 0, %s414
  $region4: #{encoder_edge_classify_forward.1} parent=0 // loop_header_branch
    %25 = sbr.rel (%p23) target = $region8
  $region5: #{encoder_edge_classify_forward.1} parent=0 // loop_body
    %s27 = ssub.s32 %s22, 1
    %s28 = ssub.s32 %s22, 2
    %s29 = sadd.s32 %s22, 1
    %s31 = sadd.s32 %s30, 1
    %p34 = scmp.eq.s32.totalorder %s22, 1
    %p35 = scmp.ne.s32.totalorder %s30, %s32
    %p36 = scmp.eq.s32.totalorder %s22, 0
    %p37 = por %p35, %p36
    %p38 = scmp.ne.s32.totalorder %s30, %s32
    %p39 = scmp.eq.s32.totalorder %s27, 1
    %p40 = por %p38, %p39
    %p41 = scmp.ne.s32.totalorder %s32, %s33
    %p42 = scmp.eq.s32.totalorder %s27, 0
    %p43 = por %p41, %p42
    %p44 = scmp.ne.s32.totalorder %s32, %s33
    %p45 = scmp.eq.s32.totalorder %s28, 1
    %p46 = por %p44, %p45
    %p48 = scmp.ne.s32.totalorder %s33, %s47
    %p49 = scmp.eq.s32.totalorder %s28, 0
    %p50 = por %p48, %p49
    %s52 = sadd.s32 %s51, 1
    %p55 = scmp.eq.s32.totalorder %s22, 1
    %p56 = scmp.ne.s32.totalorder %s51, %s53
    %p57 = scmp.eq.s32.totalorder %s22, 0
    %p58 = por %p56, %p57
    %p59 = scmp.ne.s32.totalorder %s51, %s53
    %p60 = scmp.eq.s32.totalorder %s27, 1
    %p61 = por %p59, %p60
    %p62 = scmp.ne.s32.totalorder %s53, %s54
    %p63 = scmp.eq.s32.totalorder %s27, 0
    %p64 = por %p62, %p63
    %p65 = scmp.ne.s32.totalorder %s53, %s54
    %p66 = scmp.eq.s32.totalorder %s28, 1
    %p67 = por %p65, %p66
    %p69 = scmp.ne.s32.totalorder %s54, %s68
    %p70 = scmp.eq.s32.totalorder %s28, 0
    %p71 = por %p69, %p70
    %s72 = ssub.s32 %s22, %s29
    %p73 = scmp.eq.s32.totalorder %s72, 0
    %s75 = sadd.s32 %s74, 1
    %s76 = scalar_select %p73, %s74, %s75
    %p79 = pneg %p73
    %p80 = scmp.eq.s32.totalorder %s22, 1
    %p81 = por %p79, %p80
    %p82 = scmp.ne.s32.totalorder %s74, %s77
    %p83 = scmp.eq.s32.totalorder %s22, 0
    %p84 = por %p82, %p83
    %p85 = scmp.ne.s32.totalorder %s74, %s77
    %p86 = scmp.eq.s32.totalorder %s27, 1
    %p87 = por %p85, %p86
    %p88 = scmp.ne.s32.totalorder %s77, %s78
    %p89 = scmp.eq.s32.totalorder %s27, 0
    %p90 = por %p88, %p89
    %p91 = scmp.ne.s32.totalorder %s77, %s78
    %p92 = scmp.eq.s32.totalorder %s28, 1
    %p93 = por %p91, %p92
    %p95 = scmp.ne.s32.totalorder %s78, %s94
    %p96 = scmp.eq.s32.totalorder %s28, 0
    %p97 = por %p95, %p96
    %s98 = ssub.s32 %s22, %s29
    %p99 = scmp.eq.s32.totalorder %s98, 0
    %s101 = sadd.s32 %s100, 1
    %s102 = scalar_select %p99, %s100, %s101
    %p105 = pneg %p99
    %p106 = scmp.eq.s32.totalorder %s22, 1
    %p107 = por %p105, %p106
    %p108 = scmp.ne.s32.totalorder %s100, %s103
    %p109 = scmp.eq.s32.totalorder %s22, 0
    %p110 = por %p108, %p109
    %p111 = scmp.ne.s32.totalorder %s100, %s103
    %p112 = scmp.eq.s32.totalorder %s27, 1
    %p113 = por %p111, %p112
    %p114 = scmp.ne.s32.totalorder %s103, %s104
    %p115 = scmp.eq.s32.totalorder %s27, 0
    %p116 = por %p114, %p115
    %p117 = scmp.ne.s32.totalorder %s103, %s104
    %p118 = scmp.eq.s32.totalorder %s28, 1
    %p119 = por %p117, %p118
    %p121 = scmp.ne.s32.totalorder %s104, %s120
    %p122 = scmp.eq.s32.totalorder %s28, 0
    %p123 = por %p121, %p122
    %s124 = ssub.s32 %s22, %s29
    %p125 = scmp.eq.s32.totalorder %s124, 0
    %s127 = sadd.s32 %s126, 1
    %s128 = scalar_select %p125, %s126, %s127
    %p131 = pneg %p125
    %p132 = scmp.eq.s32.totalorder %s22, 1
    %p133 = por %p131, %p132
    %p134 = scmp.ne.s32.totalorder %s126, %s129
    %p135 = scmp.eq.s32.totalorder %s22, 0
    %p136 = por %p134, %p135
    %p137 = scmp.ne.s32.totalorder %s126, %s129
    %p138 = scmp.eq.s32.totalorder %s27, 1
    %p139 = por %p137, %p138
    %p140 = scmp.ne.s32.totalorder %s129, %s130
    %p141 = scmp.eq.s32.totalorder %s27, 0
    %p142 = por %p140, %p141
    %p143 = scmp.ne.s32.totalorder %s129, %s130
    %p144 = scmp.eq.s32.totalorder %s28, 1
    %p145 = por %p143, %p144
    %p147 = scmp.ne.s32.totalorder %s130, %s146
    %p148 = scmp.eq.s32.totalorder %s28, 0
    %p149 = por %p147, %p148
    %s150 = ssub.s32 %s22, %s29
    %p151 = scmp.eq.s32.totalorder %s150, 0
    %s153 = sadd.s32 %s152, 1
    %s154 = scalar_select %p151, %s152, %s153
    %p157 = pneg %p151
    %p158 = scmp.eq.s32.totalorder %s22, 1
    %p159 = por %p157, %p158
    %p160 = scmp.ne.s32.totalorder %s152, %s155
    %p161 = scmp.eq.s32.totalorder %s22, 0
    %p162 = por %p160, %p161
    %p163 = scmp.ne.s32.totalorder %s152, %s155
    %p164 = scmp.eq.s32.totalorder %s27, 1
    %p165 = por %p163, %p164
    %p166 = scmp.ne.s32.totalorder %s155, %s156
    %p167 = scmp.eq.s32.totalorder %s27, 0
    %p168 = por %p166, %p167
    %p169 = scmp.ne.s32.totalorder %s155, %s156
    %p170 = scmp.eq.s32.totalorder %s28, 1
    %p171 = por %p169, %p170
    %p173 = scmp.ne.s32.totalorder %s156, %s172
    %p174 = scmp.eq.s32.totalorder %s28, 0
    %p175 = por %p173, %p174
    %s176 = ssub.s32 %s22, %s29
    %p177 = scmp.eq.s32.totalorder %s176, 0
    %s179 = sadd.s32 %s178, 1
    %s180 = scalar_select %p177, %s178, %s179
    %p183 = pneg %p177
    %p184 = scmp.eq.s32.totalorder %s22, 1
    %p185 = por %p183, %p184
    %p186 = scmp.ne.s32.totalorder %s178, %s181
    %p187 = scmp.eq.s32.totalorder %s22, 0
    %p188 = por %p186, %p187
    %p189 = scmp.ne.s32.totalorder %s178, %s181
    %p190 = scmp.eq.s32.totalorder %s27, 1
    %p191 = por %p189, %p190
    %p192 = scmp.ne.s32.totalorder %s181, %s182
    %p193 = scmp.eq.s32.totalorder %s27, 0
    %p194 = por %p192, %p193
    %p195 = scmp.ne.s32.totalorder %s181, %s182
    %p196 = scmp.eq.s32.totalorder %s28, 1
    %p197 = por %p195, %p196
    %p199 = scmp.ne.s32.totalorder %s182, %s198
    %p200 = scmp.eq.s32.totalorder %s28, 0
    %p201 = por %p199, %p200
    %s202 = ssub.s32 %s22, %s29
    %p203 = scmp.eq.s32.totalorder %s202, 0
    %s205 = sadd.s32 %s204, 1
    %s206 = scalar_select %p203, %s204, %s205
    %p209 = pneg %p203
    %p210 = scmp.eq.s32.totalorder %s22, 1
    %p211 = por %p209, %p210
    %p212 = scmp.ne.s32.totalorder %s204, %s207
    %p213 = scmp.eq.s32.totalorder %s22, 0
    %p214 = por %p212, %p213
    %p215 = scmp.ne.s32.totalorder %s204, %s207
    %p216 = scmp.eq.s32.totalorder %s27, 1
    %p217 = por %p215, %p216
    %p218 = scmp.ne.s32.totalorder %s207, %s208
    %p219 = scmp.eq.s32.totalorder %s27, 0
    %p220 = por %p218, %p219
    %p221 = scmp.ne.s32.totalorder %s207, %s208
    %p222 = scmp.eq.s32.totalorder %s28, 1
    %p223 = por %p221, %p222
    %p225 = scmp.ne.s32.totalorder %s208, %s224
    %p226 = scmp.eq.s32.totalorder %s28, 0
    %p227 = por %p225, %p226
    %s228 = ssub.s32 %s22, %s29
    %p229 = scmp.eq.s32.totalorder %s228, 0
    %s231 = sadd.s32 %s230, 1
    %s232 = scalar_select %p229, %s230, %s231
    %p235 = pneg %p229
    %p236 = scmp.eq.s32.totalorder %s22, 1
    %p237 = por %p235, %p236
    %p238 = scmp.ne.s32.totalorder %s230, %s233
    %p239 = scmp.eq.s32.totalorder %s22, 0
    %p240 = por %p238, %p239
    %p241 = scmp.ne.s32.totalorder %s230, %s233
    %p242 = scmp.eq.s32.totalorder %s27, 1
    %p243 = por %p241, %p242
    %p244 = scmp.ne.s32.totalorder %s233, %s234
    %p245 = scmp.eq.s32.totalorder %s27, 0
    %p246 = por %p244, %p245
    %p247 = scmp.ne.s32.totalorder %s233, %s234
    %p248 = scmp.eq.s32.totalorder %s28, 1
    %p249 = por %p247, %p248
    %p251 = scmp.ne.s32.totalorder %s234, %s250
    %p252 = scmp.eq.s32.totalorder %s28, 0
    %p253 = por %p251, %p252
    %s254 = ssub.s32 %s22, %s29
    %p255 = scmp.eq.s32.totalorder %s254, 0
    %s257 = sadd.s32 %s256, 1
    %s258 = scalar_select %p255, %s256, %s257
    %p261 = pneg %p255
    %p262 = scmp.eq.s32.totalorder %s22, 1
    %p263 = por %p261, %p262
    %p264 = scmp.ne.s32.totalorder %s256, %s259
    %p265 = scmp.eq.s32.totalorder %s22, 0
    %p266 = por %p264, %p265
    %p267 = scmp.ne.s32.totalorder %s256, %s259
    %p268 = scmp.eq.s32.totalorder %s27, 1
    %p269 = por %p267, %p268
    %p270 = scmp.ne.s32.totalorder %s259, %s260
    %p271 = scmp.eq.s32.totalorder %s27, 0
    %p272 = por %p270, %p271
    %p273 = scmp.ne.s32.totalorder %s259, %s260
    %p274 = scmp.eq.s32.totalorder %s28, 1
    %p275 = por %p273, %p274
    %p277 = scmp.ne.s32.totalorder %s260, %s276
    %p278 = scmp.eq.s32.totalorder %s28, 0
    %p279 = por %p277, %p278
    %s280 = ssub.s32 %s22, %s29
    %p281 = scmp.eq.s32.totalorder %s280, 0
    %s283 = sadd.s32 %s282, 1
    %s284 = scalar_select %p281, %s282, %s283
    %p287 = pneg %p281
    %p288 = scmp.eq.s32.totalorder %s22, 1
    %p289 = por %p287, %p288
    %p290 = scmp.ne.s32.totalorder %s282, %s285
    %p291 = scmp.eq.s32.totalorder %s22, 0
    %p292 = por %p290, %p291
    %p293 = scmp.ne.s32.totalorder %s282, %s285
    %p294 = scmp.eq.s32.totalorder %s27, 1
    %p295 = por %p293, %p294
    %p296 = scmp.ne.s32.totalorder %s285, %s286
    %p297 = scmp.eq.s32.totalorder %s27, 0
    %p298 = por %p296, %p297
    %p299 = scmp.ne.s32.totalorder %s285, %s286
    %p300 = scmp.eq.s32.totalorder %s28, 1
    %p301 = por %p299, %p300
    %p303 = scmp.ne.s32.totalorder %s286, %s302
    %p304 = scmp.eq.s32.totalorder %s28, 0
    %p305 = por %p303, %p304
    %s307 = sadd.s32 %s306, 1
    %p310 = scmp.eq.s32.totalorder %s22, 1
    %p311 = scmp.ne.s32.totalorder %s306, %s308
    %p312 = scmp.eq.s32.totalorder %s22, 0
    %p313 = por %p311, %p312
    %p314 = scmp.ne.s32.totalorder %s306, %s308
    %p315 = scmp.eq.s32.totalorder %s27, 1
    %p316 = por %p314, %p315
    %p317 = scmp.ne.s32.totalorder %s308, %s309
    %p318 = scmp.eq.s32.totalorder %s27, 0
    %p319 = por %p317, %p318
    %p320 = scmp.ne.s32.totalorder %s308, %s309
    %p321 = scmp.eq.s32.totalorder %s28, 1
    %p322 = por %p320, %p321
    %p324 = scmp.ne.s32.totalorder %s309, %s323
    %p325 = scmp.eq.s32.totalorder %s28, 0
    %p326 = por %p324, %p325
    %s328 = sadd.s32 %s327, 1
    %p331 = scmp.eq.s32.totalorder %s22, 1
    %p332 = scmp.ne.s32.totalorder %s327, %s329
    %p333 = scmp.eq.s32.totalorder %s22, 0
    %p334 = por %p332, %p333
    %p335 = scmp.ne.s32.totalorder %s327, %s329
    %p336 = scmp.eq.s32.totalorder %s27, 1
    %p337 = por %p335, %p336
    %p338 = scmp.ne.s32.totalorder %s329, %s330
    %p339 = scmp.eq.s32.totalorder %s27, 0
    %p340 = por %p338, %p339
    %p341 = scmp.ne.s32.totalorder %s329, %s330
    %p342 = scmp.eq.s32.totalorder %s28, 1
    %p343 = por %p341, %p342
    %p345 = scmp.ne.s32.totalorder %s330, %s344
    %p346 = scmp.eq.s32.totalorder %s28, 0
    %p347 = por %p345, %p346
    %s349 = sadd.s32 %s348, 1
    %p352 = scmp.eq.s32.totalorder %s22, 1
    %p353 = scmp.ne.s32.totalorder %s348, %s350
    %p354 = scmp.eq.s32.totalorder %s22, 0
    %p355 = por %p353, %p354
    %p356 = scmp.ne.s32.totalorder %s348, %s350
    %p357 = scmp.eq.s32.totalorder %s27, 1
    %p358 = por %p356, %p357
    %p359 = scmp.ne.s32.totalorder %s350, %s351
    %p360 = scmp.eq.s32.totalorder %s27, 0
    %p361 = por %p359, %p360
    %p362 = scmp.ne.s32.totalorder %s350, %s351
    %p363 = scmp.eq.s32.totalorder %s28, 1
    %p364 = por %p362, %p363
    %p366 = scmp.ne.s32.totalorder %s351, %s365
    %p367 = scmp.eq.s32.totalorder %s28, 0
    %p368 = por %p366, %p367
    %s370 = sadd.s32 %s369, 1
    %p373 = scmp.eq.s32.totalorder %s22, 1
    %p374 = scmp.ne.s32.totalorder %s369, %s371
    %p375 = scmp.eq.s32.totalorder %s22, 0
    %p376 = por %p374, %p375
    %p377 = scmp.ne.s32.totalorder %s369, %s371
    %p378 = scmp.eq.s32.totalorder %s27, 1
    %p379 = por %p377, %p378
    %p380 = scmp.ne.s32.totalorder %s371, %s372
    %p381 = scmp.eq.s32.totalorder %s27, 0
    %p382 = por %p380, %p381
    %p383 = scmp.ne.s32.totalorder %s371, %s372
    %p384 = scmp.eq.s32.totalorder %s28, 1
    %p385 = por %p383, %p384
    %p387 = scmp.ne.s32.totalorder %s372, %s386
    %p388 = scmp.eq.s32.totalorder %s28, 0
    %p389 = por %p387, %p388
    %s391 = sadd.s32 %s390, 1
    %p394 = scmp.eq.s32.totalorder %s22, 1
    %p395 = scmp.ne.s32.totalorder %s390, %s392
    %p396 = scmp.eq.s32.totalorder %s22, 0
    %p397 = por %p395, %p396
    %p398 = scmp.ne.s32.totalorder %s390, %s392
    %p399 = scmp.eq.s32.totalorder %s27, 1
    %p400 = por %p398, %p399
    %p401 = scmp.ne.s32.totalorder %s392, %s393
    %p402 = scmp.eq.s32.totalorder %s27, 0
    %p403 = por %p401, %p402
    %p404 = scmp.ne.s32.totalorder %s392, %s393
    %p405 = scmp.eq.s32.totalorder %s28, 1
    %p406 = por %p404, %p405
    %p408 = scmp.ne.s32.totalorder %s393, %s407
    %p409 = scmp.eq.s32.totalorder %s28, 0
    %p410 = por %p408, %p409
    %s412 = sadd.s32 %s411, 1
    %p415 = scmp.eq.s32.totalorder %s22, 1
    %p416 = scmp.ne.s32.totalorder %s411, %s413
    %p417 = scmp.eq.s32.totalorder %s22, 0
    %p418 = por %p416, %p417
    %p419 = scmp.ne.s32.totalorder %s411, %s413
    %p420 = scmp.eq.s32.totalorder %s27, 1
    %p421 = por %p419, %p420
    %p422 = scmp.ne.s32.totalorder %s413, %s414
    %p423 = scmp.eq.s32.totalorder %s27, 0
    %p424 = por %p422, %p423
    %p425 = scmp.ne.s32.totalorder %s413, %s414
    %p426 = scmp.eq.s32.totalorder %s28, 1
    %p427 = por %p425, %p426
    %p429 = scmp.ne.s32.totalorder %s414, %s428
    %p430 = scmp.eq.s32.totalorder %s28, 0
    %p431 = por %p429, %p430
    %p432 = scmp.le.s32.totalorder 1, %s22
    %p433 = scmp.lt.s32.totalorder %s22, 3
    %p434 = pnand %p432, %p433
    %p435 = pneg %p434
    // Predicated region
    $region9: #{encoder_edge_classify_forward.1} parent=5 // pred_check
      _
    $region10: #{encoder_edge_classify_forward.1} parent=5 // pred_check_branch
      %437 = sbr.rel (%p434) target = $region12
    $region11: #{encoder_edge_classify_forward.1} parent=5 // pred_region
      %s438 = ssub.s32 %s22, 1
      // Predicated region
      $region13: #{encoder_edge_classify_forward.1} parent=11 // pred_check
        %p439 = pneg %p43
      $region14: #{encoder_edge_classify_forward.1} parent=11 // pred_check_branch
        %441 = sbr.rel (%p439) target = $region16
      $region15: #{encoder_edge_classify_forward.1} parent=11 // pred_region
        _
      $region16: #{encoder_edge_classify_forward.1} parent=11 // pred_fallthru
        _
      // Predicated region
      $region17: #{encoder_edge_classify_forward.1} parent=11 // pred_check
        %p442 = pneg %p64
      $region18: #{encoder_edge_classify_forward.1} parent=11 // pred_check_branch
        %444 = sbr.rel (%p442) target = $region20
      $region19: #{encoder_edge_classify_forward.1} parent=11 // pred_region
        _
      $region20: #{encoder_edge_classify_forward.1} parent=11 // pred_fallthru
        _
      // Predicated region
      $region21: #{encoder_edge_classify_forward.1} parent=11 // pred_check
        %p445 = pneg %p319
      $region22: #{encoder_edge_classify_forward.1} parent=11 // pred_check_branch
        %447 = sbr.rel (%p445) target = $region24
      $region23: #{encoder_edge_classify_forward.1} parent=11 // pred_region
        _
      $region24: #{encoder_edge_classify_forward.1} parent=11 // pred_fallthru
        _
      // Predicated region
      $region25: #{encoder_edge_classify_forward.1} parent=11 // pred_check
        %p448 = pneg %p340
      $region26: #{encoder_edge_classify_forward.1} parent=11 // pred_check_branch
        %450 = sbr.rel (%p448) target = $region28
      $region27: #{encoder_edge_classify_forward.1} parent=11 // pred_region
        _
      $region28: #{encoder_edge_classify_forward.1} parent=11 // pred_fallthru
        _
      // Predicated region
      $region29: #{encoder_edge_classify_forward.1} parent=11 // pred_check
        %p451 = pneg %p361
      $region30: #{encoder_edge_classify_forward.1} parent=11 // pred_check_branch
        %453 = sbr.rel (%p451) target = $region32
      $region31: #{encoder_edge_classify_forward.1} parent=11 // pred_region
        _
      $region32: #{encoder_edge_classify_forward.1} parent=11 // pred_fallthru
        _
      // Predicated region
      $region33: #{encoder_edge_classify_forward.1} parent=11 // pred_check
        %p454 = pneg %p382
      $region34: #{encoder_edge_classify_forward.1} parent=11 // pred_check_branch
        %456 = sbr.rel (%p454) target = $region36
      $region35: #{encoder_edge_classify_forward.1} parent=11 // pred_region
        _
      $region36: #{encoder_edge_classify_forward.1} parent=11 // pred_fallthru
        _
      // Predicated region
      $region37: #{encoder_edge_classify_forward.1} parent=11 // pred_check
        %p457 = pneg %p403
      $region38: #{encoder_edge_classify_forward.1} parent=11 // pred_check_branch
        %459 = sbr.rel (%p457) target = $region40
      $region39: #{encoder_edge_classify_forward.1} parent=11 // pred_region
        _
      $region40: #{encoder_edge_classify_forward.1} parent=11 // pred_fallthru
        _
    $region12: #{encoder_edge_classify_forward.1} parent=5 // pred_fallthru
      _
    %p460 = scmp.lt.s32.totalorder %s22, 2
    // Predicated region
    $region41: #{encoder_edge_classify_forward.1} parent=5 // pred_check
      %p461 = pneg %p460
    $region42: #{encoder_edge_classify_forward.1} parent=5 // pred_check_branch
      %463 = sbr.rel (%p461) target = $region44
    $region43: #{encoder_edge_classify_forward.1} parent=5 // pred_region
      // Predicated region
      $region45: #{encoder_edge_classify_forward.1} parent=43 // pred_check
        %p464 = pneg %p84
      $region46: #{encoder_edge_classify_forward.1} parent=43 // pred_check_branch
        %466 = sbr.rel (%p464) target = $region48
      $region47: #{encoder_edge_classify_forward.1} parent=43 // pred_region
        %p467 = scmp.lt.s32.totalorder %s22, 1
        %s468 = scalar_select %p467, %s22, 1
        %s469 = smul.addr %s468, 4
        %s470 = scalar_lea.vmem %s2, %s469
      $region48: #{encoder_edge_classify_forward.1} parent=43 // pred_fallthru
        _
      // Predicated region
      $region49: #{encoder_edge_classify_forward.1} parent=43 // pred_check
        %p471 = pneg %p110
      $region50: #{encoder_edge_classify_forward.1} parent=43 // pred_check_branch
        %473 = sbr.rel (%p471) target = $region52
      $region51: #{encoder_edge_classify_forward.1} parent=43 // pred_region
        %p474 = scmp.lt.s32.totalorder %s22, 1
        %s475 = scalar_select %p474, %s22, 1
        %s476 = smul.addr %s475, 4
        %s477 = smul.addr %s476, 8
        %s478 = scalar_lea.vmem %s3, %s477
      $region52: #{encoder_edge_classify_forward.1} parent=43 // pred_fallthru
        _
      // Predicated region
      $region53: #{encoder_edge_classify_forward.1} parent=43 // pred_check
        %p479 = pneg %p136
      $region54: #{encoder_edge_classify_forward.1} parent=43 // pred_check_branch
        %481 = sbr.rel (%p479) target = $region56
      $region55: #{encoder_edge_classify_forward.1} parent=43 // pred_region
        %p482 = scmp.lt.s32.totalorder %s22, 1
        %s483 = scalar_select %p482, %s22, 1
        %s484 = scalar_lea.vmem %s4, %s483
      $region56: #{encoder_edge_classify_forward.1} parent=43 // pred_fallthru
        _
      // Predicated region
      $region57: #{encoder_edge_classify_forward.1} parent=43 // pred_check
        %p485 = pneg %p162
      $region58: #{encoder_edge_classify_forward.1} parent=43 // pred_check_branch
        %487 = sbr.rel (%p485) target = $region60
      $region59: #{encoder_edge_classify_forward.1} parent=43 // pred_region
        %p488 = scmp.lt.s32.totalorder %s22, 1
        %s489 = scalar_select %p488, %s22, 1
        %s490 = smul.addr %s489, 4
        %s491 = smul.addr %s490, 8
        %s492 = scalar_lea.vmem %s5, %s491
      $region60: #{encoder_edge_classify_forward.1} parent=43 // pred_fallthru
        _
      // Predicated region
      $region61: #{encoder_edge_classify_forward.1} parent=43 // pred_check
        %p493 = pneg %p188
      $region62: #{encoder_edge_classify_forward.1} parent=43 // pred_check_branch
        %495 = sbr.rel (%p493) target = $region64
      $region63: #{encoder_edge_classify_forward.1} parent=43 // pred_region
        %p496 = scmp.lt.s32.totalorder %s22, 1
        %s497 = scalar_select %p496, %s22, 1
        %s498 = scalar_lea.vmem %s6, %s497
      $region64: #{encoder_edge_classify_forward.1} parent=43 // pred_fallthru
        _
      // Predicated region
      $region65: #{encoder_edge_classify_forward.1} parent=43 // pred_check
        %p499 = pneg %p214
      $region66: #{encoder_edge_classify_forward.1} parent=43 // pred_check_branch
        %501 = sbr.rel (%p499) target = $region68
      $region67: #{encoder_edge_classify_forward.1} parent=43 // pred_region
        %p502 = scmp.lt.s32.totalorder %s22, 1
        %s503 = scalar_select %p502, %s22, 1
        %s504 = smul.addr %s503, 4
        %s505 = smul.addr %s504, 8
        %s506 = scalar_lea.vmem %s7, %s505
      $region68: #{encoder_edge_classify_forward.1} parent=43 // pred_fallthru
        _
      // Predicated region
      $region69: #{encoder_edge_classify_forward.1} parent=43 // pred_check
        %p507 = pneg %p240
      $region70: #{encoder_edge_classify_forward.1} parent=43 // pred_check_branch
        %509 = sbr.rel (%p507) target = $region72
      $region71: #{encoder_edge_classify_forward.1} parent=43 // pred_region
        %p510 = scmp.lt.s32.totalorder %s22, 1
        %s511 = scalar_select %p510, %s22, 1
        %s512 = scalar_lea.vmem %s8, %s511
      $region72: #{encoder_edge_classify_forward.1} parent=43 // pred_fallthru
        _
      // Predicated region
      $region73: #{encoder_edge_classify_forward.1} parent=43 // pred_check
        %p513 = pneg %p266
      $region74: #{encoder_edge_classify_forward.1} parent=43 // pred_check_branch
        %515 = sbr.rel (%p513) target = $region76
      $region75: #{encoder_edge_classify_forward.1} parent=43 // pred_region
        %p516 = scmp.lt.s32.totalorder %s22, 1
        %s517 = scalar_select %p516, %s22, 1
        %s518 = smul.addr %s517, 8
        %s519 = smul.addr %s518, 8
        %s520 = scalar_lea.vmem %s9, %s519
      $region76: #{encoder_edge_classify_forward.1} parent=43 // pred_fallthru
        _
      // Predicated region
      $region77: #{encoder_edge_classify_forward.1} parent=43 // pred_check
        %p521 = pneg %p292
      $region78: #{encoder_edge_classify_forward.1} parent=43 // pred_check_branch
        %523 = sbr.rel (%p521) target = $region80
      $region79: #{encoder_edge_classify_forward.1} parent=43 // pred_region
        %p524 = scmp.lt.s32.totalorder %s22, 1
        %s525 = scalar_select %p524, %s22, 1
        %s526 = scalar_lea.vmem %s10, %s525
      $region80: #{encoder_edge_classify_forward.1} parent=43 // pred_fallthru
        _
    $region44: #{encoder_edge_classify_forward.1} parent=5 // pred_fallthru
      _
    %p527 = scmp.le.s32.totalorder 1, %s22
    %p528 = scmp.lt.s32.totalorder %s22, 3
    %p529 = pnand %p527, %p528
    %p530 = pneg %p529
    // Predicated region
    $region81: #{encoder_edge_classify_forward.1} parent=5 // pred_check
      _
    $region82: #{encoder_edge_classify_forward.1} parent=5 // pred_check_branch
      %532 = sbr.rel (%p529) target = $region84
    $region83: #{encoder_edge_classify_forward.1} parent=5 // pred_region
      %s533 = ssub.s32 %s22, 1
      %p534 = pneg %p43
      %p535 = pneg %p40
      %p536 = pneg %p64
      %p537 = pneg %p61
      %p538 = scmp.lt.s32.totalorder %s27, 1
      %s539 = scalar_select %p538, %s27, 1
      %s540 = smul.addr %s539, 4
      %s541 = scalar_lea.vmem %s2, %s540
      %p542 = pneg %p90
      %p543 = pneg %p87
      %p544 = scmp.lt.s32.totalorder %s27, 1
      %s545 = scalar_select %p544, %s27, 1
      %s546 = smul.addr %s545, 4
      %s547 = smul.addr %s546, 8
      %s548 = scalar_lea.vmem %s3, %s547
      %p549 = pneg %p116
      %p550 = pneg %p113
      %p551 = scmp.lt.s32.totalorder %s27, 1
      %s552 = scalar_select %p551, %s27, 1
      %s553 = scalar_lea.vmem %s4, %s552
      %p554 = pneg %p142
      %p555 = pneg %p139
      %p556 = scmp.lt.s32.totalorder %s27, 1
      %s557 = scalar_select %p556, %s27, 1
      %s558 = smul.addr %s557, 4
      %s559 = smul.addr %s558, 8
      %s560 = scalar_lea.vmem %s5, %s559
      %p561 = pneg %p168
      %p562 = pneg %p165
      %p563 = scmp.lt.s32.totalorder %s27, 1
      %s564 = scalar_select %p563, %s27, 1
      %s565 = scalar_lea.vmem %s6, %s564
      %p566 = pneg %p194
      %p567 = pneg %p191
      %p568 = scmp.lt.s32.totalorder %s27, 1
      %s569 = scalar_select %p568, %s27, 1
      %s570 = smul.addr %s569, 4
      %s571 = smul.addr %s570, 8
      %s572 = scalar_lea.vmem %s7, %s571
      %p573 = pneg %p220
      %p574 = pneg %p217
      %p575 = scmp.lt.s32.totalorder %s27, 1
      %s576 = scalar_select %p575, %s27, 1
      %s577 = scalar_lea.vmem %s8, %s576
      %p578 = pneg %p246
      %p579 = pneg %p243
      %p580 = scmp.lt.s32.totalorder %s27, 1
      %s581 = scalar_select %p580, %s27, 1
      %s582 = smul.addr %s581, 8
      %s583 = smul.addr %s582, 8
      %s584 = scalar_lea.vmem %s9, %s583
      %p585 = pneg %p272
      %p586 = pneg %p269
      %p587 = scmp.lt.s32.totalorder %s27, 1
      %s588 = scalar_select %p587, %s27, 1
      %s589 = scalar_lea.vmem %s10, %s588
      %p590 = pneg %p298
      %p591 = pneg %p295
      %p592 = pneg %p319
      %p593 = pneg %p316
      %p594 = pneg %p340
      %p595 = pneg %p337
      %p596 = pneg %p361
      %p597 = pneg %p358
      %p598 = pneg %p382
      %p599 = pneg %p379
      %p600 = pneg %p403
      %p601 = pneg %p400
      %p602 = pneg %p424
      %p603 = pneg %p421
      %p604 = scmp.lt.s32.totalorder %s27, 1
      %s605 = scalar_select %p604, %s27, 1
      %s606 = smul.addr %s605, 4
      %s607 = scalar_lea.vmem %s2, %s606
      %p608 = scmp.lt.s32.totalorder %s27, 1
      %s609 = scalar_select %p608, %s27, 1
      %s610 = smul.addr %s609, 4
      %s611 = smul.addr %s610, 8
      %s612 = scalar_lea.vmem %s3, %s611
      %p613 = scmp.lt.s32.totalorder %s27, 1
      %s614 = scalar_select %p613, %s27, 1
      %s615 = scalar_lea.vmem %s4, %s614
      %p616 = scmp.lt.s32.totalorder %s27, 1
      %s617 = scalar_select %p616, %s27, 1
      %s618 = smul.addr %s617, 4
      %s619 = smul.addr %s618, 8
      %s620 = scalar_lea.vmem %s5, %s619
      %p621 = scmp.lt.s32.totalorder %s27, 1
      %s622 = scalar_select %p621, %s27, 1
      %s623 = scalar_lea.vmem %s6, %s622
      %p624 = scmp.lt.s32.totalorder %s27, 1
      %s625 = scalar_select %p624, %s27, 1
      %s626 = smul.addr %s625, 4
      %s627 = smul.addr %s626, 8
      %s628 = scalar_lea.vmem %s7, %s627
      %p629 = scmp.lt.s32.totalorder %s27, 1
      %s630 = scalar_select %p629, %s27, 1
      %s631 = scalar_lea.vmem %s8, %s630
      %p632 = scmp.lt.s32.totalorder %s27, 1
      %s633 = scalar_select %p632, %s27, 1
      %s634 = smul.addr %s633, 8
      %s635 = smul.addr %s634, 8
      %s636 = scalar_lea.vmem %s9, %s635
      %p637 = scmp.lt.s32.totalorder %s27, 1
      %s638 = scalar_select %p637, %s27, 1
      %s639 = scalar_lea.vmem %s10, %s638
      %p640 = scmp.eq.s32.totalorder %s27, 0
      // Predicated region
      $region85: #{encoder_edge_classify_forward.1} parent=83 // pred_check
        %p641 = pneg %p640
      $region86: #{encoder_edge_classify_forward.1} parent=83 // pred_check_branch
        %643 = sbr.rel (%p641) target = $region88
      $region87: #{encoder_edge_classify_forward.1} parent=83 // pred_region
        %v644 = vld [vmem:[%s0] sm:$0xff]
        %v645 = vld [vmem:[%s0 + $0x8] sm:$0xff]
        %v646 = vld [vmem:[%s0 + $0x10] sm:$0xff]
        %v647 = vld [vmem:[%s0 + $0x18] sm:$0xff]
        %vm648 = vcmask 261120
        %649 = vst.msk [vmem:[#allocation2] sm:$0xff] %vm648, %v644
        %650 = vst.msk [vmem:[#allocation2 + $0x8] sm:$0xff] %vm648, %v645
        %651 = vst.msk [vmem:[#allocation2 + $0x10] sm:$0xff] %vm648, %v646
        %652 = vst.msk [vmem:[#allocation2 + $0x18] sm:$0xff] %vm648, %v647
      $region88: #{encoder_edge_classify_forward.1} parent=83 // pred_fallthru
        _
      %v653 = vld [vmem:[#allocation2] sm:$0xff]
      %v654 = vld [vmem:[#allocation2 + $0x8] sm:$0xff]
      %v655 = vld [vmem:[#allocation2 + $0x10] sm:$0xff]
      %v656 = vld [vmem:[#allocation2 + $0x18] sm:$0xff]
      %v657 = vld [vmem:[%s607] sm:$0xf]
      %v658 = vld [vmem:[%s1] sm:$0x3]
      %vm659 = vcmask 261120
      %v660 = vsel %vm659, %v653, 0.0
      %661 = vadd.xlane.f32.xlu0 %v660
      %v662 = vpop.xlane.xlu0 %661
      %v663 = vsel %vm659, %v654, 0.0
      %664 = vadd.xlane.f32.xlu0 %v663
      %v665 = vpop.xlane.xlu0 %664
      %v666 = vsel %vm659, %v655, 0.0
      %667 = vadd.xlane.f32.xlu0 %v666
      %v668 = vpop.xlane.xlu0 %667
      %v669 = vsel %vm659, %v656, 0.0
      %670 = vadd.xlane.f32.xlu0 %v669
      %v671 = vpop.xlane.xlu0 %670
      %v672 = vrcp.pop 32.0
      %v673 = vmul.f32 %v662, %v672
      %v674 = vmul.f32 %v665, %v672
      %v675 = vmul.f32 %v668, %v672
      %v676 = vmul.f32 %v671, %v672
      %v677 = vsub.f32 %v653, %v673
      %v678 = vsub.f32 %v654, %v674
      %v679 = vsub.f32 %v655, %v675
      %v680 = vsub.f32 %v656, %v676
      %v681 = vmul.f32 %v677, %v677
      %v682 = vmul.f32 %v678, %v678
      %v683 = vmul.f32 %v679, %v679
      %v684 = vmul.f32 %v680, %v680
      %v685 = vsel %vm659, %v681, 0.0
      %686 = vadd.xlane.f32.xlu0 %v685
      %v687 = vpop.xlane.xlu0 %686
      %v688 = vsel %vm659, %v682, 0.0
      %689 = vadd.xlane.f32.xlu0 %v688
      %v690 = vpop.xlane.xlu0 %689
      %v691 = vsel %vm659, %v683, 0.0
      %692 = vadd.xlane.f32.xlu0 %v691
      %v693 = vpop.xlane.xlu0 %692
      %v694 = vsel %vm659, %v684, 0.0
      %695 = vadd.xlane.f32.xlu0 %v694
      %v696 = vpop.xlane.xlu0 %695
      %v697 = vmul.f32 %v687, 0.032258064
      %v698 = vmul.f32 %v690, 0.032258064
      %v699 = vmul.f32 %v693, 0.032258064
      %v700 = vmul.f32 %v696, 0.032258064
      %v701 = vrsqrt.pop %v697
      %v702 = vmul.f32 %v697, %v701
      %vm703 = vcmp.eq.f32.partialorder %v697, inf
      %v704 = vsel %vm703, %v697, %v702
      %vm705 = vcmp.eq.f32.partialorder %v697, 0.0
      %v706 = vand.u32 %v697, 2147483648
      %v707 = vsel %vm705, %v706, %v704
      %v708 = vrsqrt.pop %v698
      %v709 = vmul.f32 %v698, %v708
      %vm710 = vcmp.eq.f32.partialorder %v698, inf
      %v711 = vsel %vm710, %v698, %v709
      %vm712 = vcmp.eq.f32.partialorder %v698, 0.0
      %v713 = vand.u32 %v698, 2147483648
      %v714 = vsel %vm712, %v713, %v711
      %v715 = vrsqrt.pop %v699
      %v716 = vmul.f32 %v699, %v715
      %vm717 = vcmp.eq.f32.partialorder %v699, inf
      %v718 = vsel %vm717, %v699, %v716
      %vm719 = vcmp.eq.f32.partialorder %v699, 0.0
      %v720 = vand.u32 %v699, 2147483648
      %v721 = vsel %vm719, %v720, %v718
      %v722 = vrsqrt.pop %v700
      %v723 = vmul.f32 %v700, %v722
      %vm724 = vcmp.eq.f32.partialorder %v700, inf
      %v725 = vsel %vm724, %v700, %v723
      %vm726 = vcmp.eq.f32.partialorder %v700, 0.0
      %v727 = vand.u32 %v700, 2147483648
      %v728 = vsel %vm726, %v727, %v725
      %v729 = vadd.f32 %v707, 1e-06
      %v730 = vadd.f32 %v714, 1e-06
      %v731 = vadd.f32 %v721, 1e-06
      %v732 = vadd.f32 %v728, 1e-06
      %v733 = vrcp.pop %v729
      %v734 = vrcp.pop %v730
      %v735 = vrcp.pop %v731
      %v736 = vrcp.pop %v732
      %v737 = vlaneseq
      %v738 = vshrl.u32 %v737, 7
      %v739 = vsub.s32 0, %v738
      %v740 = vrot.slane %v657, %v739
      %v741 = vmul.f32 %v740, %v677
      %v742 = vmul.f32 %v740, %v678
      %v743 = vmul.f32 %v740, %v679
      %v744 = vmul.f32 %v740, %v680
      %v745 = vmul.f32 %v741, %v733
      %v746 = vmul.f32 %v742, %v734
      %v747 = vmul.f32 %v743, %v735
      %v748 = vmul.f32 %v744, %v736
      %v749 = vlaneseq
      %v750 = vshrl.u32 %v749, 7
      %v751 = vsub.s32 1, %v750
      %v752 = vrot.slane %v657, %v751
      %v753 = vadd.f32 %v745, %v752
      %v754 = vadd.f32 %v746, %v752
      %v755 = vadd.f32 %v747, %v752
      %v756 = vadd.f32 %v748, %v752
      %v757 = vld [vmem:[%s612] sm:$0xff]
      %v758 = vld [vmem:[%s612 + $0x8] sm:$0xff]
      %v759 = vld [vmem:[%s612 + $0x10] sm:$0xff]
      %v760 = vld [vmem:[%s612 + $0x18] sm:$0xff]
      %v761 = vld [vmem:[%s615] sm:$0x1]
      %v763 = vlaneseq
      %v764 = vshrl.u32 %v763, 7
      %v765 = vsub.s32 0, %v764
      %v766 = vrot.slane %v761, %v765
      %v769 = vsel %vm659, %v753, 0
      %v772 = vsel %vm659, %v754, 0
      %v775 = vsel %vm659, %v755, 0
      %v778 = vsel %vm659, %v756, 0
      %780 = vmatprep.subr.mxu0 0.0
      %781 = vmatpush1.msra.mxu0 %v757
      %782 = vmatprep.subr.mxu0 0.0
      %783 = vmatpush1.msra.mxu0 %v758
      %784 = vmatprep.subr.mxu0 0.0
      %785 = vmatpush1.msra.mxu0 %v759
      %786 = vmatprep.subr.mxu0 0.0
      %787 = vmatpush1.msra.mxu0 %v760
      %788 = vmatprep.subr.mxu0 0.0
      %789 = vmatpush1.msra.mxu0 0.0
      %790 = vmatprep.subr.mxu0 0.0
      %791 = vmatpush1.msra.mxu0 0.0
      %792 = vmatprep.subr.mxu0 0.0
      %793 = vmatpush1.msra.mxu0 0.0
      %794 = vmatprep.subr.mxu0 0.0
      %795 = vmatpush1.msra.mxu0 0.0
      %796 = vmatprep.subr.mxu0 0.0
      %797 = vmatpush1.msra.mxu0 0.0
      %798 = vmatprep.subr.mxu0 0.0
      %799 = vmatpush1.msra.mxu0 0.0
      %800 = vmatprep.subr.mxu0 0.0
      %801 = vmatpush1.msra.mxu0 0.0
      %802 = vmatprep.subr.mxu0 0.0
      %803 = vmatpush1.msra.mxu0 0.0
      %804 = vmatprep.subr.mxu0 0.0
      %805 = vmatpush1.msra.mxu0 0.0
      %806 = vmatprep.subr.mxu0 0.0
      %807 = vmatpush1.msra.mxu0 0.0
      %808 = vmatprep.subr.mxu0 0.0
      %809 = vmatpush1.msra.mxu0 0.0
      %810 = vmatprep.subr.mxu0 0.0
      %811 = vmatpush1.msra.mxu0 0.0
      %812 = vmatprep.subr.mxu0 0.0
      %813 = vmatpush1.msra.mxu0 0.0
      %814 = vmatprep.subr.mxu0 0.0
      %815 = vmatpush1.msra.mxu0 0.0
      %816 = vmatprep.subr.mxu0 0.0
      %817 = vmatpush1.msra.mxu0 0.0
      %818 = vmatprep.subr.mxu0 0.0
      %819 = vmatpush1.msra.mxu0 0.0
      %820 = vmatprep.subr.mxu0 0.0
      %821 = vmatpush1.msra.mxu0 0.0
      %822 = vmatprep.subr.mxu0 0.0
      %823 = vmatpush1.msra.mxu0 0.0
      %824 = vmatprep.subr.mxu0 0.0
      %825 = vmatpush1.msra.mxu0 0.0
      %826 = vmatprep.subr.mxu0 0.0
      %827 = vmatpush1.msra.mxu0 0.0
      %828 = vmatprep.subr.mxu0 0.0
      %829 = vmatpush1.msra.mxu0 0.0
      %830 = vmatprep.subr.mxu0 0.0
      %831 = vmatpush1.msra.mxu0 0.0
      %832 = vmatprep.subr.mxu0 0.0
      %833 = vmatpush1.msra.mxu0 0.0
      %834 = vmatprep.subr.mxu0 0.0
      %835 = vmatpush1.msra.mxu0 0.0
      %836 = vmatprep.subr.mxu0 0.0
      %837 = vmatpush1.msra.mxu0 0.0
      %838 = vmatprep.subr.mxu0 0.0
      %839 = vmatpush1.msra.mxu0 0.0
      %840 = vmatprep.subr.mxu0 0.0
      %841 = vmatpush1.msra.mxu0 0.0
      %842 = vmatprep.subr.mxu0 0.0
      %843 = vmatpush1.msra.mxu0 0.0
      %844 = vmatprep.mubr.f32.mxu0 0.0
      %845 = vmatmul.mubr.f32.gmra.mrb[0].mxu0 %v769
      %v846 = vpop.f32.mrb[0].mxu0
      %v847 = vadd.f32 %v766, %v846
      %v848 = vpop.f32.mrb[0].mxu0
      %849 = vmatprep.mubr.f32.mxu0 0.0
      %850 = vmatmul.mubr.f32.gmra.mrb[0].mxu0 %v772
      %v851 = vpop.f32.mrb[0].mxu0
      %v852 = vadd.f32 %v766, %v851
      %v853 = vpop.f32.mrb[0].mxu0
      %854 = vmatprep.mubr.f32.mxu0 0.0
      %855 = vmatmul.mubr.f32.gmra.mrb[0].mxu0 %v775
      %v856 = vpop.f32.mrb[0].mxu0
      %v857 = vadd.f32 %v766, %v856
      %v858 = vpop.f32.mrb[0].mxu0
      %859 = vmatprep.mubr.f32.mxu0 0.0
      %860 = vmatmul.mubr.f32.gmra.mrb[0].mxu0 %v778
      %v861 = vpop.f32.mrb[0].mxu0
      %v862 = vadd.f32 %v766, %v861
      %v863 = vpop.f32.mrb[0].mxu0
      %864 = vdwg.mxu0
      %867 = vrot.lane.b32.xlu0 %v847, 96
      %v868 = vpop.permute.xlu0 %867
      %869 = vrot.lane.b32.xlu0 %v852, 96
      %v870 = vpop.permute.xlu0 %869
      %vm871 = vcmask 64512
      %v872 = vsel %vm871, %v847, 0
      %v874 = vsel %vm871, %v852, 0
      %v876 = vsel %vm871, %v868, 0
      %v878 = vsel %vm871, %v870, 0
      %880 = vmatprep.subr.mxu0 0.0
      %881 = vmatpush1.xpose.msra.mxu0 %v876
      %882 = vmatprep.subr.mxu0 0.0
      %883 = vmatpush1.xpose.msra.mxu0 %v878
      %884 = vmatprep.subr.mxu0 0.0
      %885 = vmatpush1.xpose.msra.mxu0 0.0
      %886 = vmatprep.subr.mxu0 0.0
      %887 = vmatpush1.xpose.msra.mxu0 0.0
      %888 = vmatprep.subr.mxu0 0.0
      %889 = vmatpush1.xpose.msra.mxu0 0.0
      %890 = vmatprep.subr.mxu0 0.0
      %891 = vmatpush1.xpose.msra.mxu0 0.0
      %892 = vmatprep.subr.mxu0 0.0
      %893 = vmatpush1.xpose.msra.mxu0 0.0
      %894 = vmatprep.subr.mxu0 0.0
      %895 = vmatpush1.xpose.msra.mxu0 0.0
      %896 = vmatprep.subr.mxu0 0.0
      %897 = vmatpush1.xpose.msra.mxu0 0.0
      %898 = vmatprep.subr.mxu0 0.0
      %899 = vmatpush1.xpose.msra.mxu0 0.0
      %900 = vmatprep.subr.mxu0 0.0
      %901 = vmatpush1.xpose.msra.mxu0 0.0
      %902 = vmatprep.subr.mxu0 0.0
      %903 = vmatpush1.xpose.msra.mxu0 0.0
      %904 = vmatprep.subr.mxu0 0.0
      %905 = vmatpush1.xpose.msra.mxu0 0.0
      %906 = vmatprep.subr.mxu0 0.0
      %907 = vmatpush1.xpose.msra.mxu0 0.0
      %908 = vmatprep.subr.mxu0 0.0
      %909 = vmatpush1.xpose.msra.mxu0 0.0
      %910 = vmatprep.subr.mxu0 0.0
      %911 = vmatpush1.xpose.msra.mxu0 0.0
      %912 = vmatprep.subr.mxu0 0.0
      %913 = vmatpush1.xpose.msra.mxu0 0.0
      %914 = vmatprep.subr.mxu0 0.0
      %915 = vmatpush1.xpose.msra.mxu0 0.0
      %916 = vmatprep.subr.mxu0 0.0
      %917 = vmatpush1.xpose.msra.mxu0 0.0
      %918 = vmatprep.subr.mxu0 0.0
      %919 = vmatpush1.xpose.msra.mxu0 0.0
      %920 = vmatprep.subr.mxu0 0.0
      %921 = vmatpush1.xpose.msra.mxu0 0.0
      %922 = vmatprep.subr.mxu0 0.0
      %923 = vmatpush1.xpose.msra.mxu0 0.0
      %924 = vmatprep.subr.mxu0 0.0
      %925 = vmatpush1.xpose.msra.mxu0 0.0
      %926 = vmatprep.subr.mxu0 0.0
      %927 = vmatpush1.xpose.msra.mxu0 0.0
      %928 = vmatprep.subr.mxu0 0.0
      %929 = vmatpush1.xpose.msra.mxu0 0.0
      %930 = vmatprep.subr.mxu0 0.0
      %931 = vmatpush1.xpose.msra.mxu0 0.0
      %932 = vmatprep.subr.mxu0 0.0
      %933 = vmatpush1.xpose.msra.mxu0 0.0
      %934 = vmatprep.subr.mxu0 0.0
      %935 = vmatpush1.xpose.msra.mxu0 0.0
      %936 = vmatprep.subr.mxu0 0.0
      %937 = vmatpush1.xpose.msra.mxu0 0.0
      %938 = vmatprep.subr.mxu0 0.0
      %939 = vmatpush1.xpose.msra.mxu0 0.0
      %940 = vmatprep.subr.mxu0 0.0
      %941 = vmatpush1.xpose.msra.mxu0 0.0
      %942 = vmatprep.subr.mxu0 0.0
      %943 = vmatpush1.xpose.msra.mxu0 0.0
      %944 = vmatprep.mubr.f32.mxu0 0.0
      %945 = vmatmul.mubr.f32.gmra.mrb[0].mxu0 %v872
      %v946 = vpop.f32.mrb[0].mxu0
      %v947 = vadd.f32 0.0, %v946
      %v948 = vpop.f32.mrb[0].mxu0
      %949 = vmatprep.mubr.f32.mxu0 0.0
      %950 = vmatmul.mubr.f32.gmra.mrb[0].mxu0 %v874
      %v951 = vpop.f32.mrb[0].mxu0
      %v952 = vadd.f32 0.0, %v951
      %v953 = vpop.f32.mrb[0].mxu0
      %954 = vdwg.mxu0
      %v955 = vmul.f32 %v947, 0.35355338
      %v956 = vmul.f32 %v952, 0.35355338
      %vm957 = vcmp.eq.f32.partialorder %v658, 0.0
      %v958 = vsel %vm957, 1, 0
      %v959 = vlaneseq
      %v960 = vshrl.u32 %v959, 7
      %v961 = vsub.s32 0, %v960
      %v962 = vrot.slane %v958, %v961
      %vm963 = vcmp.eq.s32.totalorder %v962, 1
      %v964 = vsel %vm963, -1e+09, %v955
      %v965 = vsel %vm963, -1e+09, %v956
      %vm966 = vcmask 130048
      %v967 = vsel %vm966, %v964, -inf
      %968 = vmax.xlane.f32.xlu0 %v967
      %v969 = vpop.xlane.xlu0 %968
      %v970 = vsel %vm966, %v965, -inf
      %971 = vmax.xlane.f32.xlu0 %v970
      %v972 = vpop.xlane.xlu0 %971
      %v973 = vsub.f32 %v964, %v969
      %v974 = vsub.f32 %v965, %v972
      %v975 = vmul.f32 %v973, 1.442695
      %v976 = vpow.pop %v975
      %v977 = vmul.f32 %v974, 1.442695
      %v978 = vpow.pop %v977
      %v979 = vsel %vm966, %v976, 0.0
      %980 = vadd.xlane.f32.xlu0 %v979
      %v981 = vpop.xlane.xlu0 %980
      %v982 = vsel %vm966, %v978, 0.0
      %983 = vadd.xlane.f32.xlu0 %v982
      %v984 = vpop.xlane.xlu0 %983
      %985 = vrot.lane.b32.xlu0 %v847, 64
      %v986 = vpop.permute.xlu0 %985
      %987 = vrot.lane.b32.xlu0 %v852, 64
      %v988 = vpop.permute.xlu0 %987
      %v992 = vsel %vm966, %v976, 0
      %v995 = vsel %vm966, %v978, 0
      %997 = vmatprep.subr.mxu0 0.0
      %998 = vmatpush1.msra.mxu0 %v986
      %999 = vmatprep.subr.mxu0 0.0
      %1000 = vmatpush1.msra.mxu0 %v988
      %1001 = vmatprep.subr.mxu0 0.0
      %1002 = vmatpush1.msra.mxu0 0.0
      %1003 = vmatprep.subr.mxu0 0.0
      %1004 = vmatpush1.msra.mxu0 0.0
      %1005 = vmatprep.subr.mxu0 0.0
      %1006 = vmatpush1.msra.mxu0 0.0
      %1007 = vmatprep.subr.mxu0 0.0
      %1008 = vmatpush1.msra.mxu0 0.0
      %1009 = vmatprep.subr.mxu0 0.0
      %1010 = vmatpush1.msra.mxu0 0.0
      %1011 = vmatprep.subr.mxu0 0.0
      %1012 = vmatpush1.msra.mxu0 0.0
      %1013 = vmatprep.subr.mxu0 0.0
      %1014 = vmatpush1.msra.mxu0 0.0
      %1015 = vmatprep.subr.mxu0 0.0
      %1016 = vmatpush1.msra.mxu0 0.0
      %1017 = vmatprep.subr.mxu0 0.0
      %1018 = vmatpush1.msra.mxu0 0.0
      %1019 = vmatprep.subr.mxu0 0.0
      %1020 = vmatpush1.msra.mxu0 0.0
      %1021 = vmatprep.subr.mxu0 0.0
      %1022 = vmatpush1.msra.mxu0 0.0
      %1023 = vmatprep.subr.mxu0 0.0
      %1024 = vmatpush1.msra.mxu0 0.0
      %1025 = vmatprep.subr.mxu0 0.0
      %1026 = vmatpush1.msra.mxu0 0.0
      %1027 = vmatprep.subr.mxu0 0.0
      %1028 = vmatpush1.msra.mxu0 0.0
      %1029 = vmatprep.subr.mxu0 0.0
      %1030 = vmatpush1.msra.mxu0 0.0
      %1031 = vmatprep.subr.mxu0 0.0
      %1032 = vmatpush1.msra.mxu0 0.0
      %1033 = vmatprep.subr.mxu0 0.0
      %1034 = vmatpush1.msra.mxu0 0.0
      %1035 = vmatprep.subr.mxu0 0.0
      %1036 = vmatpush1.msra.mxu0 0.0
      %1037 = vmatprep.subr.mxu0 0.0
      %1038 = vmatpush1.msra.mxu0 0.0
      %1039 = vmatprep.subr.mxu0 0.0
      %1040 = vmatpush1.msra.mxu0 0.0
      %1041 = vmatprep.subr.mxu0 0.0
      %1042 = vmatpush1.msra.mxu0 0.0
      %1043 = vmatprep.subr.mxu0 0.0
      %1044 = vmatpush1.msra.mxu0 0.0
      %1045 = vmatprep.subr.mxu0 0.0
      %1046 = vmatpush1.msra.mxu0 0.0
      %1047 = vmatprep.subr.mxu0 0.0
      %1048 = vmatpush1.msra.mxu0 0.0
      %1049 = vmatprep.subr.mxu0 0.0
      %1050 = vmatpush1.msra.mxu0 0.0
      %1051 = vmatprep.subr.mxu0 0.0
      %1052 = vmatpush1.msra.mxu0 0.0
      %1053 = vmatprep.subr.mxu0 0.0
      %1054 = vmatpush1.msra.mxu0 0.0
      %1055 = vmatprep.subr.mxu0 0.0
      %1056 = vmatpush1.msra.mxu0 0.0
      %1057 = vmatprep.subr.mxu0 0.0
      %1058 = vmatpush1.msra.mxu0 0.0
      %1059 = vmatprep.subr.mxu0 0.0
      %1060 = vmatpush1.msra.mxu0 0.0
      %1061 = vmatprep.mubr.f32.mxu0 0.0
      %1062 = vmatmul.mubr.f32.gmra.mrb[0].mxu0 %v992
      %v1063 = vpop.f32.mrb[0].mxu0
      %v1064 = vadd.f32 0.0, %v1063
      %v1065 = vpop.f32.mrb[0].mxu0
      %1066 = vmatprep.mubr.f32.mxu0 0.0
      %1067 = vmatmul.mubr.f32.gmra.mrb[0].mxu0 %v995
      %v1068 = vpop.f32.mrb[0].mxu0
      %v1069 = vadd.f32 0.0, %v1068
      %v1070 = vpop.f32.mrb[0].mxu0
      %1071 = vdwg.mxu0
      %v1072 = vrcp.pop %v981
      %v1073 = vrcp.pop %v984
      %v1074 = vmul.f32 %v1064, %v1072
      %v1075 = vmul.f32 %v1069, %v1073
      %1076 = vrot.lane.b32.xlu0 %v847, 120
      %v1077 = vpop.permute.xlu0 %1076
      %1078 = vrot.lane.b32.xlu0 %v852, 120
      %v1079 = vpop.permute.xlu0 %1078
      %1080 = vrot.lane.b32.xlu0 %v847, 88
      %v1081 = vpop.permute.xlu0 %1080
      %1082 = vrot.lane.b32.xlu0 %v852, 88
      %v1083 = vpop.permute.xlu0 %1082
      %v1084 = vsel %vm871, %v1077, 0
      %v1086 = vsel %vm871, %v1079, 0
      %v1088 = vsel %vm871, %v1081, 0
      %v1090 = vsel %vm871, %v1083, 0
      %1092 = vmatprep.subr.mxu0 0.0
      %1093 = vmatpush1.xpose.msra.mxu0 %v1088
      %1094 = vmatprep.subr.mxu0 0.0
      %1095 = vmatpush1.xpose.msra.mxu0 %v1090
      %1096 = vmatprep.subr.mxu0 0.0
      %1097 = vmatpush1.xpose.msra.mxu0 0.0
      %1098 = vmatprep.subr.mxu0 0.0
      %1099 = vmatpush1.xpose.msra.mxu0 0.0
      %1100 = vmatprep.subr.mxu0 0.0
      %1101 = vmatpush1.xpose.msra.mxu0 0.0
      %1102 = vmatprep.subr.mxu0 0.0
      %1103 = vmatpush1.xpose.msra.mxu0 0.0
      %1104 = vmatprep.subr.mxu0 0.0
      %1105 = vmatpush1.xpose.msra.mxu0 0.0
      %1106 = vmatprep.subr.mxu0 0.0
      %1107 = vmatpush1.xpose.msra.mxu0 0.0
      %1108 = vmatprep.subr.mxu0 0.0
      %1109 = vmatpush1.xpose.msra.mxu0 0.0
      %1110 = vmatprep.subr.mxu0 0.0
      %1111 = vmatpush1.xpose.msra.mxu0 0.0
      %1112 = vmatprep.subr.mxu0 0.0
      %1113 = vmatpush1.xpose.msra.mxu0 0.0
      %1114 = vmatprep.subr.mxu0 0.0
      %1115 = vmatpush1.xpose.msra.mxu0 0.0
      %1116 = vmatprep.subr.mxu0 0.0
      %1117 = vmatpush1.xpose.msra.mxu0 0.0
      %1118 = vmatprep.subr.mxu0 0.0
      %1119 = vmatpush1.xpose.msra.mxu0 0.0
      %1120 = vmatprep.subr.mxu0 0.0
      %1121 = vmatpush1.xpose.msra.mxu0 0.0
      %1122 = vmatprep.subr.mxu0 0.0
      %1123 = vmatpush1.xpose.msra.mxu0 0.0
      %1124 = vmatprep.subr.mxu0 0.0
      %1125 = vmatpush1.xpose.msra.mxu0 0.0
      %1126 = vmatprep.subr.mxu0 0.0
      %1127 = vmatpush1.xpose.msra.mxu0 0.0
      %1128 = vmatprep.subr.mxu0 0.0
      %1129 = vmatpush1.xpose.msra.mxu0 0.0
      %1130 = vmatprep.subr.mxu0 0.0
      %1131 = vmatpush1.xpose.msra.mxu0 0.0
      %1132 = vmatprep.subr.mxu0 0.0
      %1133 = vmatpush1.xpose.msra.mxu0 0.0
      %1134 = vmatprep.subr.mxu0 0.0
      %1135 = vmatpush1.xpose.msra.mxu0 0.0
      %1136 = vmatprep.subr.mxu0 0.0
      %1137 = vmatpush1.xpose.msra.mxu0 0.0
      %1138 = vmatprep.subr.mxu0 0.0
      %1139 = vmatpush1.xpose.msra.mxu0 0.0
      %1140 = vmatprep.subr.mxu0 0.0
      %1141 = vmatpush1.xpose.msra.mxu0 0.0
      %1142 = vmatprep.subr.mxu0 0.0
      %1143 = vmatpush1.xpose.msra.mxu0 0.0
      %1144 = vmatprep.subr.mxu0 0.0
      %1145 = vmatpush1.xpose.msra.mxu0 0.0
      %1146 = vmatprep.subr.mxu0 0.0
      %1147 = vmatpush1.xpose.msra.mxu0 0.0
      %1148 = vmatprep.subr.mxu0 0.0
      %1149 = vmatpush1.xpose.msra.mxu0 0.0
      %1150 = vmatprep.subr.mxu0 0.0
      %1151 = vmatpush1.xpose.msra.mxu0 0.0
      %1152 = vmatprep.subr.mxu0 0.0
      %1153 = vmatpush1.xpose.msra.mxu0 0.0
      %1154 = vmatprep.subr.mxu0 0.0
      %1155 = vmatpush1.xpose.msra.mxu0 0.0
      %1156 = vmatprep.mubr.f32.mxu0 0.0
      %1157 = vmatmul.mubr.f32.gmra.mrb[0].mxu0 %v1084
      %v1158 = vpop.f32.mrb[0].mxu0
      %v1159 = vadd.f32 0.0, %v1158
      %v1160 = vpop.f32.mrb[0].mxu0
      %1161 = vmatprep.mubr.f32.mxu0 0.0
      %1162 = vmatmul.mubr.f32.gmra.mrb[0].mxu0 %v1086
      %v1163 = vpop.f32.mrb[0].mxu0
      %v1164 = vadd.f32 0.0, %v1163
      %v1165 = vpop.f32.mrb[0].mxu0
      %1166 = vdwg.mxu0
      %v1167 = vmul.f32 %v1159, 0.35355338
      %v1168 = vmul.f32 %v1164, 0.35355338
      %v1169 = vsel %vm963, -1e+09, %v1167
      %v1170 = vsel %vm963, -1e+09, %v1168
      %v1171 = vsel %vm966, %v1169, -inf
      %1172 = vmax.xlane.f32.xlu0 %v1171
      %v1173 = vpop.xlane.xlu0 %1172
      %v1174 = vsel %vm966, %v1170, -inf
      %1175 = vmax.xlane.f32.xlu0 %v1174
      %v1176 = vpop.xlane.xlu0 %1175
      %v1177 = vsub.f32 %v1169, %v1173
      %v1178 = vsub.f32 %v1170, %v1176
      %v1179 = vmul.f32 %v1177, 1.442695
      %v1180 = vpow.pop %v1179
      %v1181 = vmul.f32 %v1178, 1.442695
      %v1182 = vpow.pop %v1181
      %v1183 = vsel %vm966, %v1180, 0.0
      %1184 = vadd.xlane.f32.xlu0 %v1183
      %v1185 = vpop.xlane.xlu0 %1184
      %v1186 = vsel %vm966, %v1182, 0.0
      %1187 = vadd.xlane.f32.xlu0 %v1186
      %v1188 = vpop.xlane.xlu0 %1187
      %1189 = vrot.lane.b32.xlu0 %v847, 56
      %v1190 = vpop.permute.xlu0 %1189
      %1191 = vrot.lane.b32.xlu0 %v852, 56
      %v1192 = vpop.permute.xlu0 %1191
      %v1196 = vsel %vm966, %v1180, 0
      %v1199 = vsel %vm966, %v1182, 0
      %1201 = vmatprep.subr.mxu0 0.0
      %1202 = vmatpush1.msra.mxu0 %v1190
      %1203 = vmatprep.subr.mxu0 0.0
      %1204 = vmatpush1.msra.mxu0 %v1192
      %1205 = vmatprep.subr.mxu0 0.0
      %1206 = vmatpush1.msra.mxu0 0.0
      %1207 = vmatprep.subr.mxu0 0.0
      %1208 = vmatpush1.msra.mxu0 0.0
      %1209 = vmatprep.subr.mxu0 0.0
      %1210 = vmatpush1.msra.mxu0 0.0
      %1211 = vmatprep.subr.mxu0 0.0
      %1212 = vmatpush1.msra.mxu0 0.0
      %1213 = vmatprep.subr.mxu0 0.0
      %1214 = vmatpush1.msra.mxu0 0.0
      %1215 = vmatprep.subr.mxu0 0.0
      %1216 = vmatpush1.msra.mxu0 0.0
      %1217 = vmatprep.subr.mxu0 0.0
      %1218 = vmatpush1.msra.mxu0 0.0
      %1219 = vmatprep.subr.mxu0 0.0
      %1220 = vmatpush1.msra.mxu0 0.0
      %1221 = vmatprep.subr.mxu0 0.0
      %1222 = vmatpush1.msra.mxu0 0.0
      %1223 = vmatprep.subr.mxu0 0.0
      %1224 = vmatpush1.msra.mxu0 0.0
      %1225 = vmatprep.subr.mxu0 0.0
      %1226 = vmatpush1.msra.mxu0 0.0
      %1227 = vmatprep.subr.mxu0 0.0
      %1228 = vmatpush1.msra.mxu0 0.0
      %1229 = vmatprep.subr.mxu0 0.0
      %1230 = vmatpush1.msra.mxu0 0.0
      %1231 = vmatprep.subr.mxu0 0.0
      %1232 = vmatpush1.msra.mxu0 0.0
      %1233 = vmatprep.subr.mxu0 0.0
      %1234 = vmatpush1.msra.mxu0 0.0
      %1235 = vmatprep.subr.mxu0 0.0
      %1236 = vmatpush1.msra.mxu0 0.0
      %1237 = vmatprep.subr.mxu0 0.0
      %1238 = vmatpush1.msra.mxu0 0.0
      %1239 = vmatprep.subr.mxu0 0.0
      %1240 = vmatpush1.msra.mxu0 0.0
      %1241 = vmatprep.subr.mxu0 0.0
      %1242 = vmatpush1.msra.mxu0 0.0
      %1243 = vmatprep.subr.mxu0 0.0
      %1244 = vmatpush1.msra.mxu0 0.0
      %1245 = vmatprep.subr.mxu0 0.0
      %1246 = vmatpush1.msra.mxu0 0.0
      %1247 = vmatprep.subr.mxu0 0.0
      %1248 = vmatpush1.msra.mxu0 0.0
      %1249 = vmatprep.subr.mxu0 0.0
      %1250 = vmatpush1.msra.mxu0 0.0
      %1251 = vmatprep.subr.mxu0 0.0
      %1252 = vmatpush1.msra.mxu0 0.0
      %1253 = vmatprep.subr.mxu0 0.0
      %1254 = vmatpush1.msra.mxu0 0.0
      %1255 = vmatprep.subr.mxu0 0.0
      %1256 = vmatpush1.msra.mxu0 0.0
      %1257 = vmatprep.subr.mxu0 0.0
      %1258 = vmatpush1.msra.mxu0 0.0
      %1259 = vmatprep.subr.mxu0 0.0
      %1260 = vmatpush1.msra.mxu0 0.0
      %1261 = vmatprep.subr.mxu0 0.0
      %1262 = vmatpush1.msra.mxu0 0.0
      %1263 = vmatprep.subr.mxu0 0.0
      %1264 = vmatpush1.msra.mxu0 0.0
      %1265 = vmatprep.mubr.f32.mxu0 0.0
      %1266 = vmatmul.mubr.f32.gmra.mrb[0].mxu0 %v1196
      %v1267 = vpop.f32.mrb[0].mxu0
      %v1268 = vadd.f32 0.0, %v1267
      %v1269 = vpop.f32.mrb[0].mxu0
      %1270 = vmatprep.mubr.f32.mxu0 0.0
      %1271 = vmatmul.mubr.f32.gmra.mrb[0].mxu0 %v1199
      %v1272 = vpop.f32.mrb[0].mxu0
      %v1273 = vadd.f32 0.0, %v1272
      %v1274 = vpop.f32.mrb[0].mxu0
      %1275 = vdwg.mxu0
      %v1276 = vrcp.pop %v1185
      %v1277 = vrcp.pop %v1188
      %v1278 = vmul.f32 %v1268, %v1276
      %v1279 = vmul.f32 %v1273, %v1277
      %1280 = vrot.lane.b32.xlu0 %v847, 112
      %v1281 = vpop.permute.xlu0 %1280
      %1282 = vrot.lane.b32.xlu0 %v852, 112
      %v1283 = vpop.permute.xlu0 %1282
      %1284 = vrot.lane.b32.xlu0 %v847, 80
      %v1285 = vpop.permute.xlu0 %1284
      %1286 = vrot.lane.b32.xlu0 %v852, 80
      %v1287 = vpop.permute.xlu0 %1286
      %v1288 = vsel %vm871, %v1281, 0
      %v1290 = vsel %vm871, %v1283, 0
      %v1292 = vsel %vm871, %v1285, 0
      %v1294 = vsel %vm871, %v1287, 0
      %1296 = vmatprep.subr.mxu0 0.0
      %1297 = vmatpush1.xpose.msra.mxu0 %v1292
      %1298 = vmatprep.subr.mxu0 0.0
      %1299 = vmatpush1.xpose.msra.mxu0 %v1294
      %1300 = vmatprep.subr.mxu0 0.0
      %1301 = vmatpush1.xpose.msra.mxu0 0.0
      %1302 = vmatprep.subr.mxu0 0.0
      %1303 = vmatpush1.xpose.msra.mxu0 0.0
      %1304 = vmatprep.subr.mxu0 0.0
      %1305 = vmatpush1.xpose.msra.mxu0 0.0
      %1306 = vmatprep.subr.mxu0 0.0
      %1307 = vmatpush1.xpose.msra.mxu0 0.0
      %1308 = vmatprep.subr.mxu0 0.0
      %1309 = vmatpush1.xpose.msra.mxu0 0.0
      %1310 = vmatprep.subr.mxu0 0.0
      %1311 = vmatpush1.xpose.msra.mxu0 0.0
      %1312 = vmatprep.subr.mxu0 0.0
      %1313 = vmatpush1.xpose.msra.mxu0 0.0
      %1314 = vmatprep.subr.mxu0 0.0
      %1315 = vmatpush1.xpose.msra.mxu0 0.0
      %1316 = vmatprep.subr.mxu0 0.0
      %1317 = vmatpush1.xpose.msra.mxu0 0.0
      %1318 = vmatprep.subr.mxu0 0.0
      %1319 = vmatpush1.xpose.msra.mxu0 0.0
      %1320 = vmatprep.subr.mxu0 0.0
      %1321 = vmatpush1.xpose.msra.mxu0 0.0
      %1322 = vmatprep.subr.mxu0 0.0
      %1323 = vmatpush1.xpose.msra.mxu0 0.0
      %1324 = vmatprep.subr.mxu0 0.0
      %1325 = vmatpush1.xpose.msra.mxu0 0.0
      %1326 = vmatprep.subr.mxu0 0.0
      %1327 = vmatpush1.xpose.msra.mxu0 0.0
      %1328 = vmatprep.subr.mxu0 0.0
      %1329 = vmatpush1.xpose.msra.mxu0 0.0
      %1330 = vmatprep.subr.mxu0 0.0
      %1331 = vmatpush1.xpose.msra.mxu0 0.0
      %1332 = vmatprep.subr.mxu0 0.0
      %1333 = vmatpush1.xpose.msra.mxu0 0.0
      %1334 = vmatprep.subr.mxu0 0.0
      %1335 = vmatpush1.xpose.msra.mxu0 0.0
      %1336 = vmatprep.subr.mxu0 0.0
      %1337 = vmatpush1.xpose.msra.mxu0 0.0
      %1338 = vmatprep.subr.mxu0 0.0
      %1339 = vmatpush1.xpose.msra.mxu0 0.0
      %1340 = vmatprep.subr.mxu0 0.0
      %1341 = vmatpush1.xpose.msra.mxu0 0.0
      %1342 = vmatprep.subr.mxu0 0.0
      %1343 = vmatpush1.xpose.msra.mxu0 0.0
      %1344 = vmatprep.subr.mxu0 0.0
      %1345 = vmatpush1.xpose.msra.mxu0 0.0
      %1346 = vmatprep.subr.mxu0 0.0
      %1347 = vmatpush1.xpose.msra.mxu0 0.0
      %1348 = vmatprep.subr.mxu0 0.0
      %1349 = vmatpush1.xpose.msra.mxu0 0.0
      %1350 = vmatprep.subr.mxu0 0.0
      %1351 = vmatpush1.xpose.msra.mxu0 0.0
      %1352 = vmatprep.subr.mxu0 0.0
      %1353 = vmatpush1.xpose.msra.mxu0 0.0
      %1354 = vmatprep.subr.mxu0 0.0
      %1355 = vmatpush1.xpose.msra.mxu0 0.0
      %1356 = vmatprep.subr.mxu0 0.0
      %1357 = vmatpush1.xpose.msra.mxu0 0.0
      %1358 = vmatprep.subr.mxu0 0.0
      %1359 = vmatpush1.xpose.msra.mxu0 0.0
      %1360 = vmatprep.mubr.f32.mxu0 0.0
      %1361 = vmatmul.mubr.f32.gmra.mrb[0].mxu0 %v1288
      %v1362 = vpop.f32.mrb[0].mxu0
      %v1363 = vadd.f32 0.0, %v1362
      %v1364 = vpop.f32.mrb[0].mxu0
      %1365 = vmatprep.mubr.f32.mxu0 0.0
      %1366 = vmatmul.mubr.f32.gmra.mrb[0].mxu0 %v1290
      %v1367 = vpop.f32.mrb[0].mxu0
      %v1368 = vadd.f32 0.0, %v1367
      %v1369 = vpop.f32.mrb[0].mxu0
      %1370 = vdwg.mxu0
      %v1371 = vmul.f32 %v1363, 0.35355338
      %v1372 = vmul.f32 %v1368, 0.35355338
      %v1373 = vsel %vm963, -1e+09, %v1371
      %v1374 = vsel %vm963, -1e+09, %v1372
      %v1375 = vsel %vm966, %v1373, -inf
      %1376 = vmax.xlane.f32.xlu0 %v1375
      %v1377 = vpop.xlane.xlu0 %1376
      %v1378 = vsel %vm966, %v1374, -inf
      %1379 = vmax.xlane.f32.xlu0 %v1378
      %v1380 = vpop.xlane.xlu0 %1379
      %v1381 = vsub.f32 %v1373, %v1377
      %v1382 = vsub.f32 %v1374, %v1380
      %v1383 = vmul.f32 %v1381, 1.442695
      %v1384 = vpow.pop %v1383
      %v1385 = vmul.f32 %v1382, 1.442695
      %v1386 = vpow.pop %v1385
      %v1387 = vsel %vm966, %v1384, 0.0
      %1388 = vadd.xlane.f32.xlu0 %v1387
      %v1389 = vpop.xlane.xlu0 %1388
      %v1390 = vsel %vm966, %v1386, 0.0
      %1391 = vadd.xlane.f32.xlu0 %v1390
      %v1392 = vpop.xlane.xlu0 %1391
      %1393 = vrot.lane.b32.xlu0 %v847, 48
      %v1394 = vpop.permute.xlu0 %1393
      %1395 = vrot.lane.b32.xlu0 %v852, 48
      %v1396 = vpop.permute.xlu0 %1395
      %v1400 = vsel %vm966, %v1384, 0
      %v1403 = vsel %vm966, %v1386, 0
      %1405 = vmatprep.subr.mxu0 0.0
      %1406 = vmatpush1.msra.mxu0 %v1394
      %1407 = vmatprep.subr.mxu0 0.0
      %1408 = vmatpush1.msra.mxu0 %v1396
      %1409 = vmatprep.subr.mxu0 0.0
      %1410 = vmatpush1.msra.mxu0 0.0
      %1411 = vmatprep.subr.mxu0 0.0
      %1412 = vmatpush1.msra.mxu0 0.0
      %1413 = vmatprep.subr.mxu0 0.0
      %1414 = vmatpush1.msra.mxu0 0.0
      %1415 = vmatprep.subr.mxu0 0.0
      %1416 = vmatpush1.msra.mxu0 0.0
      %1417 = vmatprep.subr.mxu0 0.0
      %1418 = vmatpush1.msra.mxu0 0.0
      %1419 = vmatprep.subr.mxu0 0.0
      %1420 = vmatpush1.msra.mxu0 0.0
      %1421 = vmatprep.subr.mxu0 0.0
      %1422 = vmatpush1.msra.mxu0 0.0
      %1423 = vmatprep.subr.mxu0 0.0
      %1424 = vmatpush1.msra.mxu0 0.0
      %1425 = vmatprep.subr.mxu0 0.0
      %1426 = vmatpush1.msra.mxu0 0.0
      %1427 = vmatprep.subr.mxu0 0.0
      %1428 = vmatpush1.msra.mxu0 0.0
      %1429 = vmatprep.subr.mxu0 0.0
      %1430 = vmatpush1.msra.mxu0 0.0
      %1431 = vmatprep.subr.mxu0 0.0
      %1432 = vmatpush1.msra.mxu0 0.0
      %1433 = vmatprep.subr.mxu0 0.0
      %1434 = vmatpush1.msra.mxu0 0.0
      %1435 = vmatprep.subr.mxu0 0.0
      %1436 = vmatpush1.msra.mxu0 0.0
      %1437 = vmatprep.subr.mxu0 0.0
      %1438 = vmatpush1.msra.mxu0 0.0
      %1439 = vmatprep.subr.mxu0 0.0
      %1440 = vmatpush1.msra.mxu0 0.0
      %1441 = vmatprep.subr.mxu0 0.0
      %1442 = vmatpush1.msra.mxu0 0.0
      %1443 = vmatprep.subr.mxu0 0.0
      %1444 = vmatpush1.msra.mxu0 0.0
      %1445 = vmatprep.subr.mxu0 0.0
      %1446 = vmatpush1.msra.mxu0 0.0
      %1447 = vmatprep.subr.mxu0 0.0
      %1448 = vmatpush1.msra.mxu0 0.0
      %1449 = vmatprep.subr.mxu0 0.0
      %1450 = vmatpush1.msra.mxu0 0.0
      %1451 = vmatprep.subr.mxu0 0.0
      %1452 = vmatpush1.msra.mxu0 0.0
      %1453 = vmatprep.subr.mxu0 0.0
      %1454 = vmatpush1.msra.mxu0 0.0
      %1455 = vmatprep.subr.mxu0 0.0
      %1456 = vmatpush1.msra.mxu0 0.0
      %1457 = vmatprep.subr.mxu0 0.0
      %1458 = vmatpush1.msra.mxu0 0.0
      %1459 = vmatprep.subr.mxu0 0.0
      %1460 = vmatpush1.msra.mxu0 0.0
      %1461 = vmatprep.subr.mxu0 0.0
      %1462 = vmatpush1.msra.mxu0 0.0
      %1463 = vmatprep.subr.mxu0 0.0
      %1464 = vmatpush1.msra.mxu0 0.0
      %1465 = vmatprep.subr.mxu0 0.0
      %1466 = vmatpush1.msra.mxu0 0.0
      %1467 = vmatprep.subr.mxu0 0.0
      %1468 = vmatpush1.msra.mxu0 0.0
      %1469 = vmatprep.mubr.f32.mxu0 0.0
      %1470 = vmatmul.mubr.f32.gmra.mrb[0].mxu0 %v1400
      %v1471 = vpop.f32.mrb[0].mxu0
      %v1472 = vadd.f32 0.0, %v1471
      %v1473 = vpop.f32.mrb[0].mxu0
      %1474 = vmatprep.mubr.f32.mxu0 0.0
      %1475 = vmatmul.mubr.f32.gmra.mrb[0].mxu0 %v1403
      %v1476 = vpop.f32.mrb[0].mxu0
      %v1477 = vadd.f32 0.0, %v1476
      %v1478 = vpop.f32.mrb[0].mxu0
      %1479 = vdwg.mxu0
      %v1480 = vrcp.pop %v1389
      %v1481 = vrcp.pop %v1392
      %v1482 = vmul.f32 %v1472, %v1480
      %v1483 = vmul.f32 %v1477, %v1481
      %1484 = vrot.lane.b32.xlu0 %v847, 104
      %v1485 = vpop.permute.xlu0 %1484
      %1486 = vrot.lane.b32.xlu0 %v852, 104
      %v1487 = vpop.permute.xlu0 %1486
      %1488 = vrot.lane.b32.xlu0 %v847, 72
      %v1489 = vpop.permute.xlu0 %1488
      %1490 = vrot.lane.b32.xlu0 %v852, 72
      %v1491 = vpop.permute.xlu0 %1490
      %v1492 = vsel %vm871, %v1485, 0
      %v1494 = vsel %vm871, %v1487, 0
      %v1496 = vsel %vm871, %v1489, 0
      %v1498 = vsel %vm871, %v1491, 0
      %1500 = vmatprep.subr.mxu0 0.0
      %1501 = vmatpush1.xpose.msra.mxu0 %v1496
      %1502 = vmatprep.subr.mxu0 0.0
      %1503 = vmatpush1.xpose.msra.mxu0 %v1498
      %1504 = vmatprep.subr.mxu0 0.0
      %1505 = vmatpush1.xpose.msra.mxu0 0.0
      %1506 = vmatprep.subr.mxu0 0.0
      %1507 = vmatpush1.xpose.msra.mxu0 0.0
      %1508 = vmatprep.subr.mxu0 0.0
      %1509 = vmatpush1.xpose.msra.mxu0 0.0
      %1510 = vmatprep.subr.mxu0 0.0
      %1511 = vmatpush1.xpose.msra.mxu0 0.0
      %1512 = vmatprep.subr.mxu0 0.0
      %1513 = vmatpush1.xpose.msra.mxu0 0.0
      %1514 = vmatprep.subr.mxu0 0.0
      %1515 = vmatpush1.xpose.msra.mxu0 0.0
      %1516 = vmatprep.subr.mxu0 0.0
      %1517 = vmatpush1.xpose.msra.mxu0 0.0
      %1518 = vmatprep.subr.mxu0 0.0
      %1519 = vmatpush1.xpose.msra.mxu0 0.0
      %1520 = vmatprep.subr.mxu0 0.0
      %1521 = vmatpush1.xpose.msra.mxu0 0.0
      %1522 = vmatprep.subr.mxu0 0.0
      %1523 = vmatpush1.xpose.msra.mxu0 0.0
      %1524 = vmatprep.subr.mxu0 0.0
      %1525 = vmatpush1.xpose.msra.mxu0 0.0
      %1526 = vmatprep.subr.mxu0 0.0
      %1527 = vmatpush1.xpose.msra.mxu0 0.0
      %1528 = vmatprep.subr.mxu0 0.0
      %1529 = vmatpush1.xpose.msra.mxu0 0.0
      %1530 = vmatprep.subr.mxu0 0.0
      %1531 = vmatpush1.xpose.msra.mxu0 0.0
      %1532 = vmatprep.subr.mxu0 0.0
      %1533 = vmatpush1.xpose.msra.mxu0 0.0
      %1534 = vmatprep.subr.mxu0 0.0
      %1535 = vmatpush1.xpose.msra.mxu0 0.0
      %1536 = vmatprep.subr.mxu0 0.0
      %1537 = vmatpush1.xpose.msra.mxu0 0.0
      %1538 = vmatprep.subr.mxu0 0.0
      %1539 = vmatpush1.xpose.msra.mxu0 0.0
      %1540 = vmatprep.subr.mxu0 0.0
      %1541 = vmatpush1.xpose.msra.mxu0 0.0
      %1542 = vmatprep.subr.mxu0 0.0
      %1543 = vmatpush1.xpose.msra.mxu0 0.0
      %1544 = vmatprep.subr.mxu0 0.0
      %1545 = vmatpush1.xpose.msra.mxu0 0.0
      %1546 = vmatprep.subr.mxu0 0.0
      %1547 = vmatpush1.xpose.msra.mxu0 0.0
      %1548 = vmatprep.subr.mxu0 0.0
      %1549 = vmatpush1.xpose.msra.mxu0 0.0
      %1550 = vmatprep.subr.mxu0 0.0
      %1551 = vmatpush1.xpose.msra.mxu0 0.0
      %1552 = vmatprep.subr.mxu0 0.0
      %1553 = vmatpush1.xpose.msra.mxu0 0.0
      %1554 = vmatprep.subr.mxu0 0.0
      %1555 = vmatpush1.xpose.msra.mxu0 0.0
      %1556 = vmatprep.subr.mxu0 0.0
      %1557 = vmatpush1.xpose.msra.mxu0 0.0
      %1558 = vmatprep.subr.mxu0 0.0
      %1559 = vmatpush1.xpose.msra.mxu0 0.0
      %1560 = vmatprep.subr.mxu0 0.0
      %1561 = vmatpush1.xpose.msra.mxu0 0.0
      %1562 = vmatprep.subr.mxu0 0.0
      %1563 = vmatpush1.xpose.msra.mxu0 0.0
      %1564 = vmatprep.mubr.f32.mxu0 0.0
      %1565 = vmatmul.mubr.f32.gmra.mrb[0].mxu0 %v1492
      %v1566 = vpop.f32.mrb[0].mxu0
      %v1567 = vadd.f32 0.0, %v1566
      %v1568 = vpop.f32.mrb[0].mxu0
      %1569 = vmatprep.mubr.f32.mxu0 0.0
      %1570 = vmatmul.mubr.f32.gmra.mrb[0].mxu0 %v1494
      %v1571 = vpop.f32.mrb[0].mxu0
      %v1572 = vadd.f32 0.0, %v1571
      %v1573 = vpop.f32.mrb[0].mxu0
      %1574 = vdwg.mxu0
      %v1575 = vmul.f32 %v1567, 0.35355338
      %v1576 = vmul.f32 %v1572, 0.35355338
      %v1577 = vsel %vm963, -1e+09, %v1575
      %v1578 = vsel %vm963, -1e+09, %v1576
      %v1579 = vsel %vm966, %v1577, -inf
      %1580 = vmax.xlane.f32.xlu0 %v1579
      %v1581 = vpop.xlane.xlu0 %1580
      %v1582 = vsel %vm966, %v1578, -inf
      %1583 = vmax.xlane.f32.xlu0 %v1582
      %v1584 = vpop.xlane.xlu0 %1583
      %v1585 = vsub.f32 %v1577, %v1581
      %v1586 = vsub.f32 %v1578, %v1584
      %v1587 = vmul.f32 %v1585, 1.442695
      %v1588 = vpow.pop %v1587
      %v1589 = vmul.f32 %v1586, 1.442695
      %v1590 = vpow.pop %v1589
      %v1591 = vsel %vm966, %v1588, 0.0
      %1592 = vadd.xlane.f32.xlu0 %v1591
      %v1593 = vpop.xlane.xlu0 %1592
      %v1594 = vsel %vm966, %v1590, 0.0
      %1595 = vadd.xlane.f32.xlu0 %v1594
      %v1596 = vpop.xlane.xlu0 %1595
      %1597 = vrot.lane.b32.xlu0 %v847, 40
      %v1598 = vpop.permute.xlu0 %1597
      %1599 = vrot.lane.b32.xlu0 %v852, 40
      %v1600 = vpop.permute.xlu0 %1599
      %v1604 = vsel %vm966, %v1588, 0
      %v1607 = vsel %vm966, %v1590, 0
      %1609 = vmatprep.subr.mxu0 0.0
      %1610 = vmatpush1.msra.mxu0 %v1598
      %1611 = vmatprep.subr.mxu0 0.0
      %1612 = vmatpush1.msra.mxu0 %v1600
      %1613 = vmatprep.subr.mxu0 0.0
      %1614 = vmatpush1.msra.mxu0 0.0
      %1615 = vmatprep.subr.mxu0 0.0
      %1616 = vmatpush1.msra.mxu0 0.0
      %1617 = vmatprep.subr.mxu0 0.0
      %1618 = vmatpush1.msra.mxu0 0.0
      %1619 = vmatprep.subr.mxu0 0.0
      %1620 = vmatpush1.msra.mxu0 0.0
      %1621 = vmatprep.subr.mxu0 0.0
      %1622 = vmatpush1.msra.mxu0 0.0
      %1623 = vmatprep.subr.mxu0 0.0
      %1624 = vmatpush1.msra.mxu0 0.0
      %1625 = vmatprep.subr.mxu0 0.0
      %1626 = vmatpush1.msra.mxu0 0.0
      %1627 = vmatprep.subr.mxu0 0.0
      %1628 = vmatpush1.msra.mxu0 0.0
      %1629 = vmatprep.subr.mxu0 0.0
      %1630 = vmatpush1.msra.mxu0 0.0
      %1631 = vmatprep.subr.mxu0 0.0
      %1632 = vmatpush1.msra.mxu0 0.0
      %1633 = vmatprep.subr.mxu0 0.0
      %1634 = vmatpush1.msra.mxu0 0.0
      %1635 = vmatprep.subr.mxu0 0.0
      %1636 = vmatpush1.msra.mxu0 0.0
      %1637 = vmatprep.subr.mxu0 0.0
      %1638 = vmatpush1.msra.mxu0 0.0
      %1639 = vmatprep.subr.mxu0 0.0
      %1640 = vmatpush1.msra.mxu0 0.0
      %1641 = vmatprep.subr.mxu0 0.0
      %1642 = vmatpush1.msra.mxu0 0.0
      %1643 = vmatprep.subr.mxu0 0.0
      %1644 = vmatpush1.msra.mxu0 0.0
      %1645 = vmatprep.subr.mxu0 0.0
      %1646 = vmatpush1.msra.mxu0 0.0
      %1647 = vmatprep.subr.mxu0 0.0
      %1648 = vmatpush1.msra.mxu0 0.0
      %1649 = vmatprep.subr.mxu0 0.0
      %1650 = vmatpush1.msra.mxu0 0.0
      %1651 = vmatprep.subr.mxu0 0.0
      %1652 = vmatpush1.msra.mxu0 0.0
      %1653 = vmatprep.subr.mxu0 0.0
      %1654 = vmatpush1.msra.mxu0 0.0
      %1655 = vmatprep.subr.mxu0 0.0
      %1656 = vmatpush1.msra.mxu0 0.0
      %1657 = vmatprep.subr.mxu0 0.0
      %1658 = vmatpush1.msra.mxu0 0.0
      %1659 = vmatprep.subr.mxu0 0.0
      %1660 = vmatpush1.msra.mxu0 0.0
      %1661 = vmatprep.subr.mxu0 0.0
      %1662 = vmatpush1.msra.mxu0 0.0
      %1663 = vmatprep.subr.mxu0 0.0
      %1664 = vmatpush1.msra.mxu0 0.0
      %1665 = vmatprep.subr.mxu0 0.0
      %1666 = vmatpush1.msra.mxu0 0.0
      %1667 = vmatprep.subr.mxu0 0.0
      %1668 = vmatpush1.msra.mxu0 0.0
      %1669 = vmatprep.subr.mxu0 0.0
      %1670 = vmatpush1.msra.mxu0 0.0
      %1671 = vmatprep.subr.mxu0 0.0
      %1672 = vmatpush1.msra.mxu0 0.0
      %1673 = vmatprep.mubr.f32.mxu0 0.0
      %1674 = vmatmul.mubr.f32.gmra.mrb[0].mxu0 %v1604
      %v1675 = vpop.f32.mrb[0].mxu0
      %v1676 = vadd.f32 0.0, %v1675
      %v1677 = vpop.f32.mrb[0].mxu0
      %1678 = vmatprep.mubr.f32.mxu0 0.0
      %1679 = vmatmul.mubr.f32.gmra.mrb[0].mxu0 %v1607
      %v1680 = vpop.f32.mrb[0].mxu0
      %v1681 = vadd.f32 0.0, %v1680
      %v1682 = vpop.f32.mrb[0].mxu0
      %1683 = vdwg.mxu0
      %v1684 = vrcp.pop %v1593
      %v1685 = vrcp.pop %v1596
      %v1686 = vmul.f32 %v1676, %v1684
      %v1687 = vmul.f32 %v1681, %v1685
      %1690 = vrot.lane.b32.xlu0 %v1278, 8
      %v1691 = vpop.permute.xlu0 %1690
      %1692 = vrot.lane.b32.xlu0 %v1279, 8
      %v1693 = vpop.permute.xlu0 %1692
      %1698 = vrot.lane.b32.xlu0 %v1482, 16
      %v1699 = vpop.permute.xlu0 %1698
      %1700 = vrot.lane.b32.xlu0 %v1483, 16
      %v1701 = vpop.permute.xlu0 %1700
      %1706 = vrot.lane.b32.xlu0 %v1686, 24
      %v1707 = vpop.permute.xlu0 %1706
      %1708 = vrot.lane.b32.xlu0 %v1687, 24
      %v1709 = vpop.permute.xlu0 %1708
      %v1712 = vsel %vm871, %v1074, %v1691
      %v1713 = vsel %vm871, %v1075, %v1693
      %v1714 = vsel %vm966, %v1712, %v1699
      %v1715 = vsel %vm966, %v1713, %v1701
      %vm1716 = vcmask 195584
      %v1717 = vsel %vm1716, %v1714, %v1707
      %v1718 = vsel %vm1716, %v1715, %v1709
      %1721 = vrot.lane.b32.xlu0 %v857, 96
      %v1722 = vpop.permute.xlu0 %1721
      %1723 = vrot.lane.b32.xlu0 %v862, 96
      %v1724 = vpop.permute.xlu0 %1723
      %v1725 = vsel %vm871, %v857, 0
      %v1727 = vsel %vm871, %v862, 0
      %v1729 = vsel %vm871, %v1722, 0
      %v1731 = vsel %vm871, %v1724, 0
      %1733 = vmatprep.subr.mxu0 0.0
      %1734 = vmatpush1.xpose.msra.mxu0 %v1729
      %1735 = vmatprep.subr.mxu0 0.0
      %1736 = vmatpush1.xpose.msra.mxu0 %v1731
      %1737 = vmatprep.subr.mxu0 0.0
      %1738 = vmatpush1.xpose.msra.mxu0 0.0
      %1739 = vmatprep.subr.mxu0 0.0
      %1740 = vmatpush1.xpose.msra.mxu0 0.0
      %1741 = vmatprep.subr.mxu0 0.0
      %1742 = vmatpush1.xpose.msra.mxu0 0.0
      %1743 = vmatprep.subr.mxu0 0.0
      %1744 = vmatpush1.xpose.msra.mxu0 0.0
      %1745 = vmatprep.subr.mxu0 0.0
      %1746 = vmatpush1.xpose.msra.mxu0 0.0
      %1747 = vmatprep.subr.mxu0 0.0
      %1748 = vmatpush1.xpose.msra.mxu0 0.0
      %1749 = vmatprep.subr.mxu0 0.0
      %1750 = vmatpush1.xpose.msra.mxu0 0.0
      %1751 = vmatprep.subr.mxu0 0.0
      %1752 = vmatpush1.xpose.msra.mxu0 0.0
      %1753 = vmatprep.subr.mxu0 0.0
      %1754 = vmatpush1.xpose.msra.mxu0 0.0
      %1755 = vmatprep.subr.mxu0 0.0
      %1756 = vmatpush1.xpose.msra.mxu0 0.0
      %1757 = vmatprep.subr.mxu0 0.0
      %1758 = vmatpush1.xpose.msra.mxu0 0.0
      %1759 = vmatprep.subr.mxu0 0.0
      %1760 = vmatpush1.xpose.msra.mxu0 0.0
      %1761 = vmatprep.subr.mxu0 0.0
      %1762 = vmatpush1.xpose.msra.mxu0 0.0
      %1763 = vmatprep.subr.mxu0 0.0
      %1764 = vmatpush1.xpose.msra.mxu0 0.0
      %1765 = vmatprep.subr.mxu0 0.0
      %1766 = vmatpush1.xpose.msra.mxu0 0.0
      %1767 = vmatprep.subr.mxu0 0.0
      %1768 = vmatpush1.xpose.msra.mxu0 0.0
      %1769 = vmatprep.subr.mxu0 0.0
      %1770 = vmatpush1.xpose.msra.mxu0 0.0
      %1771 = vmatprep.subr.mxu0 0.0
      %1772 = vmatpush1.xpose.msra.mxu0 0.0
      %1773 = vmatprep.subr.mxu0 0.0
      %1774 = vmatpush1.xpose.msra.mxu0 0.0
      %1775 = vmatprep.subr.mxu0 0.0
      %1776 = vmatpush1.xpose.msra.mxu0 0.0
      %1777 = vmatprep.subr.mxu0 0.0
      %1778 = vmatpush1.xpose.msra.mxu0 0.0
      %1779 = vmatprep.subr.mxu0 0.0
      %1780 = vmatpush1.xpose.msra.mxu0 0.0
      %1781 = vmatprep.subr.mxu0 0.0
      %1782 = vmatpush1.xpose.msra.mxu0 0.0
      %1783 = vmatprep.subr.mxu0 0.0
      %1784 = vmatpush1.xpose.msra.mxu0 0.0
      %1785 = vmatprep.subr.mxu0 0.0
      %1786 = vmatpush1.xpose.msra.mxu0 0.0
      %1787 = vmatprep.subr.mxu0 0.0
      %1788 = vmatpush1.xpose.msra.mxu0 0.0
      %1789 = vmatprep.subr.mxu0 0.0
      %1790 = vmatpush1.xpose.msra.mxu0 0.0
      %1791 = vmatprep.subr.mxu0 0.0
      %1792 = vmatpush1.xpose.msra.mxu0 0.0
      %1793 = vmatprep.subr.mxu0 0.0
      %1794 = vmatpush1.xpose.msra.mxu0 0.0
      %1795 = vmatprep.subr.mxu0 0.0
      %1796 = vmatpush1.xpose.msra.mxu0 0.0
      %1797 = vmatprep.mubr.f32.mxu0 0.0
      %1798 = vmatmul.mubr.f32.gmra.mrb[0].mxu0 %v1725
      %v1799 = vpop.f32.mrb[0].mxu0
      %v1800 = vadd.f32 0.0, %v1799
      %v1801 = vpop.f32.mrb[0].mxu0
      %1802 = vmatprep.mubr.f32.mxu0 0.0
      %1803 = vmatmul.mubr.f32.gmra.mrb[0].mxu0 %v1727
      %v1804 = vpop.f32.mrb[0].mxu0
      %v1805 = vadd.f32 0.0, %v1804
      %v1806 = vpop.f32.mrb[0].mxu0
      %1807 = vdwg.mxu0
      %v1808 = vmul.f32 %v1800, 0.35355338
      %v1809 = vmul.f32 %v1805, 0.35355338
      %v1810 = vlaneseq
      %v1811 = vshrl.u32 %v1810, 7
      %v1812 = vsub.s32 1, %v1811
      %v1813 = vrot.slane %v958, %v1812
      %vm1814 = vcmp.eq.s32.totalorder %v1813, 1
      %v1815 = vsel %vm1814, -1e+09, %v1808
      %v1816 = vsel %vm1814, -1e+09, %v1809
      %v1817 = vsel %vm966, %v1815, -inf
      %1818 = vmax.xlane.f32.xlu0 %v1817
      %v1819 = vpop.xlane.xlu0 %1818
      %v1820 = vsel %vm966, %v1816, -inf
      %1821 = vmax.xlane.f32.xlu0 %v1820
      %v1822 = vpop.xlane.xlu0 %1821
      %v1823 = vsub.f32 %v1815, %v1819
      %v1824 = vsub.f32 %v1816, %v1822
      %v1825 = vmul.f32 %v1823, 1.442695
      %v1826 = vpow.pop %v1825
      %v1827 = vmul.f32 %v1824, 1.442695
      %v1828 = vpow.pop %v1827
      %v1829 = vsel %vm966, %v1826, 0.0
      %1830 = vadd.xlane.f32.xlu0 %v1829
      %v1831 = vpop.xlane.xlu0 %1830
      %v1832 = vsel %vm966, %v1828, 0.0
      %1833 = vadd.xlane.f32.xlu0 %v1832
      %v1834 = vpop.xlane.xlu0 %1833
      %1835 = vrot.lane.b32.xlu0 %v857, 64
      %v1836 = vpop.permute.xlu0 %1835
      %1837 = vrot.lane.b32.xlu0 %v862, 64
      %v1838 = vpop.permute.xlu0 %1837
      %v1842 = vsel %vm966, %v1826, 0
      %v1845 = vsel %vm966, %v1828, 0
      %1847 = vmatprep.subr.mxu0 0.0
      %1848 = vmatpush1.msra.mxu0 %v1836
      %1849 = vmatprep.subr.mxu0 0.0
      %1850 = vmatpush1.msra.mxu0 %v1838
      %1851 = vmatprep.subr.mxu0 0.0
      %1852 = vmatpush1.msra.mxu0 0.0
      %1853 = vmatprep.subr.mxu0 0.0
      %1854 = vmatpush1.msra.mxu0 0.0
      %1855 = vmatprep.subr.mxu0 0.0
      %1856 = vmatpush1.msra.mxu0 0.0
      %1857 = vmatprep.subr.mxu0 0.0
      %1858 = vmatpush1.msra.mxu0 0.0
      %1859 = vmatprep.subr.mxu0 0.0
      %1860 = vmatpush1.msra.mxu0 0.0
      %1861 = vmatprep.subr.mxu0 0.0
      %1862 = vmatpush1.msra.mxu0 0.0
      %1863 = vmatprep.subr.mxu0 0.0
      %1864 = vmatpush1.msra.mxu0 0.0
      %1865 = vmatprep.subr.mxu0 0.0
      %1866 = vmatpush1.msra.mxu0 0.0
      %1867 = vmatprep.subr.mxu0 0.0
      %1868 = vmatpush1.msra.mxu0 0.0
      %1869 = vmatprep.subr.mxu0 0.0
      %1870 = vmatpush1.msra.mxu0 0.0
      %1871 = vmatprep.subr.mxu0 0.0
      %1872 = vmatpush1.msra.mxu0 0.0
      %1873 = vmatprep.subr.mxu0 0.0
      %1874 = vmatpush1.msra.mxu0 0.0
      %1875 = vmatprep.subr.mxu0 0.0
      %1876 = vmatpush1.msra.mxu0 0.0
      %1877 = vmatprep.subr.mxu0 0.0
      %1878 = vmatpush1.msra.mxu0 0.0
      %1879 = vmatprep.subr.mxu0 0.0
      %1880 = vmatpush1.msra.mxu0 0.0
      %1881 = vmatprep.subr.mxu0 0.0
      %1882 = vmatpush1.msra.mxu0 0.0
      %1883 = vmatprep.subr.mxu0 0.0
      %1884 = vmatpush1.msra.mxu0 0.0
      %1885 = vmatprep.subr.mxu0 0.0
      %1886 = vmatpush1.msra.mxu0 0.0
      %1887 = vmatprep.subr.mxu0 0.0
      %1888 = vmatpush1.msra.mxu0 0.0
      %1889 = vmatprep.subr.mxu0 0.0
      %1890 = vmatpush1.msra.mxu0 0.0
      %1891 = vmatprep.subr.mxu0 0.0
      %1892 = vmatpush1.msra.mxu0 0.0
      %1893 = vmatprep.subr.mxu0 0.0
      %1894 = vmatpush1.msra.mxu0 0.0
      %1895 = vmatprep.subr.mxu0 0.0
      %1896 = vmatpush1.msra.mxu0 0.0
      %1897 = vmatprep.subr.mxu0 0.0
      %1898 = vmatpush1.msra.mxu0 0.0
      %1899 = vmatprep.subr.mxu0 0.0
      %1900 = vmatpush1.msra.mxu0 0.0
      %1901 = vmatprep.subr.mxu0 0.0
      %1902 = vmatpush1.msra.mxu0 0.0
      %1903 = vmatprep.subr.mxu0 0.0
      %1904 = vmatpush1.msra.mxu0 0.0
      %1905 = vmatprep.subr.mxu0 0.0
      %1906 = vmatpush1.msra.mxu0 0.0
      %1907 = vmatprep.subr.mxu0 0.0
      %1908 = vmatpush1.msra.mxu0 0.0
      %1909 = vmatprep.subr.mxu0 0.0
      %1910 = vmatpush1.msra.mxu0 0.0
      %1911 = vmatprep.mubr.f32.mxu0 0.0
      %1912 = vmatmul.mubr.f32.gmra.mrb[0].mxu0 %v1842
      %v1913 = vpop.f32.mrb[0].mxu0
      %v1914 = vadd.f32 0.0, %v1913
      %v1915 = vpop.f32.mrb[0].mxu0
      %1916 = vmatprep.mubr.f32.mxu0 0.0
      %1917 = vmatmul.mubr.f32.gmra.mrb[0].mxu0 %v1845
      %v1918 = vpop.f32.mrb[0].mxu0
      %v1919 = vadd.f32 0.0, %v1918
      %v1920 = vpop.f32.mrb[0].mxu0
      %1921 = vdwg.mxu0
      %v1922 = vrcp.pop %v1831
      %v1923 = vrcp.pop %v1834
      %v1924 = vmul.f32 %v1914, %v1922
      %v1925 = vmul.f32 %v1919, %v1923
      %1926 = vrot.lane.b32.xlu0 %v857, 120
      %v1927 = vpop.permute.xlu0 %1926
      %1928 = vrot.lane.b32.xlu0 %v862, 120
      %v1929 = vpop.permute.xlu0 %1928
      %1930 = vrot.lane.b32.xlu0 %v857, 88
      %v1931 = vpop.permute.xlu0 %1930
      %1932 = vrot.lane.b32.xlu0 %v862, 88
      %v1933 = vpop.permute.xlu0 %1932
      %v1934 = vsel %vm871, %v1927, 0
      %v1936 = vsel %vm871, %v1929, 0
      %v1938 = vsel %vm871, %v1931, 0
      %v1940 = vsel %vm871, %v1933, 0
      %1942 = vmatprep.subr.mxu0 0.0
      %1943 = vmatpush1.xpose.msra.mxu0 %v1938
      %1944 = vmatprep.subr.mxu0 0.0
      %1945 = vmatpush1.xpose.msra.mxu0 %v1940
      %1946 = vmatprep.subr.mxu0 0.0
      %1947 = vmatpush1.xpose.msra.mxu0 0.0
      %1948 = vmatprep.subr.mxu0 0.0
      %1949 = vmatpush1.xpose.msra.mxu0 0.0
      %1950 = vmatprep.subr.mxu0 0.0
      %1951 = vmatpush1.xpose.msra.mxu0 0.0
      %1952 = vmatprep.subr.mxu0 0.0
      %1953 = vmatpush1.xpose.msra.mxu0 0.0
      %1954 = vmatprep.subr.mxu0 0.0
      %1955 = vmatpush1.xpose.msra.mxu0 0.0
      %1956 = vmatprep.subr.mxu0 0.0
      %1957 = vmatpush1.xpose.msra.mxu0 0.0
      %1958 = vmatprep.subr.mxu0 0.0
      %1959 = vmatpush1.xpose.msra.mxu0 0.0
      %1960 = vmatprep.subr.mxu0 0.0
      %1961 = vmatpush1.xpose.msra.mxu0 0.0
      %1962 = vmatprep.subr.mxu0 0.0
      %1963 = vmatpush1.xpose.msra.mxu0 0.0
      %1964 = vmatprep.subr.mxu0 0.0
      %1965 = vmatpush1.xpose.msra.mxu0 0.0
      %1966 = vmatprep.subr.mxu0 0.0
      %1967 = vmatpush1.xpose.msra.mxu0 0.0
      %1968 = vmatprep.subr.mxu0 0.0
      %1969 = vmatpush1.xpose.msra.mxu0 0.0
      %1970 = vmatprep.subr.mxu0 0.0
      %1971 = vmatpush1.xpose.msra.mxu0 0.0
      %1972 = vmatprep.subr.mxu0 0.0
      %1973 = vmatpush1.xpose.msra.mxu0 0.0
      %1974 = vmatprep.subr.mxu0 0.0
      %1975 = vmatpush1.xpose.msra.mxu0 0.0
      %1976 = vmatprep.subr.mxu0 0.0
      %1977 = vmatpush1.xpose.msra.mxu0 0.0
      %1978 = vmatprep.subr.mxu0 0.0
      %1979 = vmatpush1.xpose.msra.mxu0 0.0
      %1980 = vmatprep.subr.mxu0 0.0
      %1981 = vmatpush1.xpose.msra.mxu0 0.0
      %1982 = vmatprep.subr.mxu0 0.0
      %1983 = vmatpush1.xpose.msra.mxu0 0.0
      %1984 = vmatprep.subr.mxu0 0.0
      %1985 = vmatpush1.xpose.msra.mxu0 0.0
      %1986 = vmatprep.subr.mxu0 0.0
      %1987 = vmatpush1.xpose.msra.mxu0 0.0
      %1988 = vmatprep.subr.mxu0 0.0
      %1989 = vmatpush1.xpose.msra.mxu0 0.0
      %1990 = vmatprep.subr.mxu0 0.0
      %1991 = vmatpush1.xpose.msra.mxu0 0.0
      %1992 = vmatprep.subr.mxu0 0.0
      %1993 = vmatpush1.xpose.msra.mxu0 0.0
      %1994 = vmatprep.subr.mxu0 0.0
      %1995 = vmatpush1.xpose.msra.mxu0 0.0
      %1996 = vmatprep.subr.mxu0 0.0
      %1997 = vmatpush1.xpose.msra.mxu0 0.0
      %1998 = vmatprep.subr.mxu0 0.0
      %1999 = vmatpush1.xpose.msra.mxu0 0.0
      %2000 = vmatprep.subr.mxu0 0.0
      %2001 = vmatpush1.xpose.msra.mxu0 0.0
      %2002 = vmatprep.subr.mxu0 0.0
      %2003 = vmatpush1.xpose.msra.mxu0 0.0
      %2004 = vmatprep.subr.mxu0 0.0
      %2005 = vmatpush1.xpose.msra.mxu0 0.0
      %2006 = vmatprep.mubr.f32.mxu0 0.0
      %2007 = vmatmul.mubr.f32.gmra.mrb[0].mxu0 %v1934
      %v2008 = vpop.f32.mrb[0].mxu0
      %v2009 = vadd.f32 0.0, %v2008
      %v2010 = vpop.f32.mrb[0].mxu0
      %2011 = vmatprep.mubr.f32.mxu0 0.0
      %2012 = vmatmul.mubr.f32.gmra.mrb[0].mxu0 %v1936
      %v2013 = vpop.f32.mrb[0].mxu0
      %v2014 = vadd.f32 0.0, %v2013
      %v2015 = vpop.f32.mrb[0].mxu0
      %2016 = vdwg.mxu0
      %v2017 = vmul.f32 %v2009, 0.35355338
      %v2018 = vmul.f32 %v2014, 0.35355338
      %v2019 = vsel %vm1814, -1e+09, %v2017
      %v2020 = vsel %vm1814, -1e+09, %v2018
      %v2021 = vsel %vm966, %v2019, -inf
      %2022 = vmax.xlane.f32.xlu0 %v2021
      %v2023 = vpop.xlane.xlu0 %2022
      %v2024 = vsel %vm966, %v2020, -inf
      %2025 = vmax.xlane.f32.xlu0 %v2024
      %v2026 = vpop.xlane.xlu0 %2025
      %v2027 = vsub.f32 %v2019, %v2023
      %v2028 = vsub.f32 %v2020, %v2026
      %v2029 = vmul.f32 %v2027, 1.442695
      %v2030 = vpow.pop %v2029
      %v2031 = vmul.f32 %v2028, 1.442695
      %v2032 = vpow.pop %v2031
      %v2033 = vsel %vm966, %v2030, 0.0
      %2034 = vadd.xlane.f32.xlu0 %v2033
      %v2035 = vpop.xlane.xlu0 %2034
      %v2036 = vsel %vm966, %v2032, 0.0
      %2037 = vadd.xlane.f32.xlu0 %v2036
      %v2038 = vpop.xlane.xlu0 %2037
      %2039 = vrot.lane.b32.xlu0 %v857, 56
      %v2040 = vpop.permute.xlu0 %2039
      %2041 = vrot.lane.b32.xlu0 %v862, 56
      %v2042 = vpop.permute.xlu0 %2041
      %v2046 = vsel %vm966, %v2030, 0
      %v2049 = vsel %vm966, %v2032, 0
      %2051 = vmatprep.subr.mxu0 0.0
      %2052 = vmatpush1.msra.mxu0 %v2040
      %2053 = vmatprep.subr.mxu0 0.0
      %2054 = vmatpush1.msra.mxu0 %v2042
      %2055 = vmatprep.subr.mxu0 0.0
      %2056 = vmatpush1.msra.mxu0 0.0
      %2057 = vmatprep.subr.mxu0 0.0
      %2058 = vmatpush1.msra.mxu0 0.0
      %2059 = vmatprep.subr.mxu0 0.0
      %2060 = vmatpush1.msra.mxu0 0.0
      %2061 = vmatprep.subr.mxu0 0.0
      %2062 = vmatpush1.msra.mxu0 0.0
      %2063 = vmatprep.subr.mxu0 0.0
      %2064 = vmatpush1.msra.mxu0 0.0
      %2065 = vmatprep.subr.mxu0 0.0
      %2066 = vmatpush1.msra.mxu0 0.0
      %2067 = vmatprep.subr.mxu0 0.0
      %2068 = vmatpush1.msra.mxu0 0.0
      %2069 = vmatprep.subr.mxu0 0.0
      %2070 = vmatpush1.msra.mxu0 0.0
      %2071 = vmatprep.subr.mxu0 0.0
      %2072 = vmatpush1.msra.mxu0 0.0
      %2073 = vmatprep.subr.mxu0 0.0
      %2074 = vmatpush1.msra.mxu0 0.0
      %2075 = vmatprep.subr.mxu0 0.0
      %2076 = vmatpush1.msra.mxu0 0.0
      %2077 = vmatprep.subr.mxu0 0.0
      %2078 = vmatpush1.msra.mxu0 0.0
      %2079 = vmatprep.subr.mxu0 0.0
      %2080 = vmatpush1.msra.mxu0 0.0
      %2081 = vmatprep.subr.mxu0 0.0
      %2082 = vmatpush1.msra.mxu0 0.0
      %2083 = vmatprep.subr.mxu0 0.0
      %2084 = vmatpush1.msra.mxu0 0.0
      %2085 = vmatprep.subr.mxu0 0.0
      %2086 = vmatpush1.msra.mxu0 0.0
      %2087 = vmatprep.subr.mxu0 0.0
      %2088 = vmatpush1.msra.mxu0 0.0
      %2089 = vmatprep.subr.mxu0 0.0
      %2090 = vmatpush1.msra.mxu0 0.0
      %2091 = vmatprep.subr.mxu0 0.0
      %2092 = vmatpush1.msra.mxu0 0.0
      %2093 = vmatprep.subr.mxu0 0.0
      %2094 = vmatpush1.msra.mxu0 0.0
      %2095 = vmatprep.subr.mxu0 0.0
      %2096 = vmatpush1.msra.mxu0 0.0
      %2097 = vmatprep.subr.mxu0 0.0
      %2098 = vmatpush1.msra.mxu0 0.0
      %2099 = vmatprep.subr.mxu0 0.0
      %2100 = vmatpush1.msra.mxu0 0.0
      %2101 = vmatprep.subr.mxu0 0.0
      %2102 = vmatpush1.msra.mxu0 0.0
      %2103 = vmatprep.subr.mxu0 0.0
      %2104 = vmatpush1.msra.mxu0 0.0
      %2105 = vmatprep.subr.mxu0 0.0
      %2106 = vmatpush1.msra.mxu0 0.0
      %2107 = vmatprep.subr.mxu0 0.0
      %2108 = vmatpush1.msra.mxu0 0.0
      %2109 = vmatprep.subr.mxu0 0.0
      %2110 = vmatpush1.msra.mxu0 0.0
      %2111 = vmatprep.subr.mxu0 0.0
      %2112 = vmatpush1.msra.mxu0 0.0
      %2113 = vmatprep.subr.mxu0 0.0
      %2114 = vmatpush1.msra.mxu0 0.0
      %2115 = vmatprep.mubr.f32.mxu0 0.0
      %2116 = vmatmul.mubr.f32.gmra.mrb[0].mxu0 %v2046
      %v2117 = vpop.f32.mrb[0].mxu0
      %v2118 = vadd.f32 0.0, %v2117
      %v2119 = vpop.f32.mrb[0].mxu0
      %2120 = vmatprep.mubr.f32.mxu0 0.0
      %2121 = vmatmul.mubr.f32.gmra.mrb[0].mxu0 %v2049
      %v2122 = vpop.f32.mrb[0].mxu0
      %v2123 = vadd.f32 0.0, %v2122
      %v2124 = vpop.f32.mrb[0].mxu0
      %2125 = vdwg.mxu0
      %v2126 = vrcp.pop %v2035
      %v2127 = vrcp.pop %v2038
      %v2128 = vmul.f32 %v2118, %v2126
      %v2129 = vmul.f32 %v2123, %v2127
      %2130 = vrot.lane.b32.xlu0 %v857, 112
      %v2131 = vpop.permute.xlu0 %2130
      %2132 = vrot.lane.b32.xlu0 %v862, 112
      %v2133 = vpop.permute.xlu0 %2132
      %2134 = vrot.lane.b32.xlu0 %v857, 80
      %v2135 = vpop.permute.xlu0 %2134
      %2136 = vrot.lane.b32.xlu0 %v862, 80
      %v2137 = vpop.permute.xlu0 %2136
      %v2138 = vsel %vm871, %v2131, 0
      %v2140 = vsel %vm871, %v2133, 0
      %v2142 = vsel %vm871, %v2135, 0
      %v2144 = vsel %vm871, %v2137, 0
      %2146 = vmatprep.subr.mxu0 0.0
      %2147 = vmatpush1.xpose.msra.mxu0 %v2142
      %2148 = vmatprep.subr.mxu0 0.0
      %2149 = vmatpush1.xpose.msra.mxu0 %v2144
      %2150 = vmatprep.subr.mxu0 0.0
      %2151 = vmatpush1.xpose.msra.mxu0 0.0
      %2152 = vmatprep.subr.mxu0 0.0
      %2153 = vmatpush1.xpose.msra.mxu0 0.0
      %2154 = vmatprep.subr.mxu0 0.0
      %2155 = vmatpush1.xpose.msra.mxu0 0.0
      %2156 = vmatprep.subr.mxu0 0.0
      %2157 = vmatpush1.xpose.msra.mxu0 0.0
      %2158 = vmatprep.subr.mxu0 0.0
      %2159 = vmatpush1.xpose.msra.mxu0 0.0
      %2160 = vmatprep.subr.mxu0 0.0
      %2161 = vmatpush1.xpose.msra.mxu0 0.0
      %2162 = vmatprep.subr.mxu0 0.0
      %2163 = vmatpush1.xpose.msra.mxu0 0.0
      %2164 = vmatprep.subr.mxu0 0.0
      %2165 = vmatpush1.xpose.msra.mxu0 0.0
      %2166 = vmatprep.subr.mxu0 0.0
      %2167 = vmatpush1.xpose.msra.mxu0 0.0
      %2168 = vmatprep.subr.mxu0 0.0
      %2169 = vmatpush1.xpose.msra.mxu0 0.0
      %2170 = vmatprep.subr.mxu0 0.0
      %2171 = vmatpush1.xpose.msra.mxu0 0.0
      %2172 = vmatprep.subr.mxu0 0.0
      %2173 = vmatpush1.xpose.msra.mxu0 0.0
      %2174 = vmatprep.subr.mxu0 0.0
      %2175 = vmatpush1.xpose.msra.mxu0 0.0
      %2176 = vmatprep.subr.mxu0 0.0
      %2177 = vmatpush1.xpose.msra.mxu0 0.0
      %2178 = vmatprep.subr.mxu0 0.0
      %2179 = vmatpush1.xpose.msra.mxu0 0.0
      %2180 = vmatprep.subr.mxu0 0.0
      %2181 = vmatpush1.xpose.msra.mxu0 0.0
      %2182 = vmatprep.subr.mxu0 0.0
      %2183 = vmatpush1.xpose.msra.mxu0 0.0
      %2184 = vmatprep.subr.mxu0 0.0
      %2185 = vmatpush1.xpose.msra.mxu0 0.0
      %2186 = vmatprep.subr.mxu0 0.0
      %2187 = vmatpush1.xpose.msra.mxu0 0.0
      %2188 = vmatprep.subr.mxu0 0.0
      %2189 = vmatpush1.xpose.msra.mxu0 0.0
      %2190 = vmatprep.subr.mxu0 0.0
      %2191 = vmatpush1.xpose.msra.mxu0 0.0
      %2192 = vmatprep.subr.mxu0 0.0
      %2193 = vmatpush1.xpose.msra.mxu0 0.0
      %2194 = vmatprep.subr.mxu0 0.0
      %2195 = vmatpush1.xpose.msra.mxu0 0.0
      %2196 = vmatprep.subr.mxu0 0.0
      %2197 = vmatpush1.xpose.msra.mxu0 0.0
      %2198 = vmatprep.subr.mxu0 0.0
      %2199 = vmatpush1.xpose.msra.mxu0 0.0
      %2200 = vmatprep.subr.mxu0 0.0
      %2201 = vmatpush1.xpose.msra.mxu0 0.0
      %2202 = vmatprep.subr.mxu0 0.0
      %2203 = vmatpush1.xpose.msra.mxu0 0.0
      %2204 = vmatprep.subr.mxu0 0.0
      %2205 = vmatpush1.xpose.msra.mxu0 0.0
      %2206 = vmatprep.subr.mxu0 0.0
      %2207 = vmatpush1.xpose.msra.mxu0 0.0
      %2208 = vmatprep.subr.mxu0 0.0
      %2209 = vmatpush1.xpose.msra.mxu0 0.0
      %2210 = vmatprep.mubr.f32.mxu0 0.0
      %2211 = vmatmul.mubr.f32.gmra.mrb[0].mxu0 %v2138
      %v2212 = vpop.f32.mrb[0].mxu0
      %v2213 = vadd.f32 0.0, %v2212
      %v2214 = vpop.f32.mrb[0].mxu0
      %2215 = vmatprep.mubr.f32.mxu0 0.0
      %2216 = vmatmul.mubr.f32.gmra.mrb[0].mxu0 %v2140
      %v2217 = vpop.f32.mrb[0].mxu0
      %v2218 = vadd.f32 0.0, %v2217
      %v2219 = vpop.f32.mrb[0].mxu0
      %2220 = vdwg.mxu0
      %v2221 = vmul.f32 %v2213, 0.35355338
      %v2222 = vmul.f32 %v2218, 0.35355338
      %v2223 = vsel %vm1814, -1e+09, %v2221
      %v2224 = vsel %vm1814, -1e+09, %v2222
      %v2225 = vsel %vm966, %v2223, -inf
      %2226 = vmax.xlane.f32.xlu0 %v2225
      %v2227 = vpop.xlane.xlu0 %2226
      %v2228 = vsel %vm966, %v2224, -inf
      %2229 = vmax.xlane.f32.xlu0 %v2228
      %v2230 = vpop.xlane.xlu0 %2229
      %v2231 = vsub.f32 %v2223, %v2227
      %v2232 = vsub.f32 %v2224, %v2230
      %v2233 = vmul.f32 %v2231, 1.442695
      %v2234 = vpow.pop %v2233
      %v2235 = vmul.f32 %v2232, 1.442695
      %v2236 = vpow.pop %v2235
      %v2237 = vsel %vm966, %v2234, 0.0
      %2238 = vadd.xlane.f32.xlu0 %v2237
      %v2239 = vpop.xlane.xlu0 %2238
      %v2240 = vsel %vm966, %v2236, 0.0
      %2241 = vadd.xlane.f32.xlu0 %v2240
      %v2242 = vpop.xlane.xlu0 %2241
      %2243 = vrot.lane.b32.xlu0 %v857, 48
      %v2244 = vpop.permute.xlu0 %2243
      %2245 = vrot.lane.b32.xlu0 %v862, 48
      %v2246 = vpop.permute.xlu0 %2245
      %v2250 = vsel %vm966, %v2234, 0
      %v2253 = vsel %vm966, %v2236, 0
      %2255 = vmatprep.subr.mxu0 0.0
      %2256 = vmatpush1.msra.mxu0 %v2244
      %2257 = vmatprep.subr.mxu0 0.0
      %2258 = vmatpush1.msra.mxu0 %v2246
      %2259 = vmatprep.subr.mxu0 0.0
      %2260 = vmatpush1.msra.mxu0 0.0
      %2261 = vmatprep.subr.mxu0 0.0
      %2262 = vmatpush1.msra.mxu0 0.0
      %2263 = vmatprep.subr.mxu0 0.0
      %2264 = vmatpush1.msra.mxu0 0.0
      %2265 = vmatprep.subr.mxu0 0.0
      %2266 = vmatpush1.msra.mxu0 0.0
      %2267 = vmatprep.subr.mxu0 0.0
      %2268 = vmatpush1.msra.mxu0 0.0
      %2269 = vmatprep.subr.mxu0 0.0
      %2270 = vmatpush1.msra.mxu0 0.0
      %2271 = vmatprep.subr.mxu0 0.0
      %2272 = vmatpush1.msra.mxu0 0.0
      %2273 = vmatprep.subr.mxu0 0.0
      %2274 = vmatpush1.msra.mxu0 0.0
      %2275 = vmatprep.subr.mxu0 0.0
      %2276 = vmatpush1.msra.mxu0 0.0
      %2277 = vmatprep.subr.mxu0 0.0
      %2278 = vmatpush1.msra.mxu0 0.0
      %2279 = vmatprep.subr.mxu0 0.0
      %2280 = vmatpush1.msra.mxu0 0.0
      %2281 = vmatprep.subr.mxu0 0.0
      %2282 = vmatpush1.msra.mxu0 0.0
      %2283 = vmatprep.subr.mxu0 0.0
      %2284 = vmatpush1.msra.mxu0 0.0
      %2285 = vmatprep.subr.mxu0 0.0
      %2286 = vmatpush1.msra.mxu0 0.0
      %2287 = vmatprep.subr.mxu0 0.0
      %2288 = vmatpush1.msra.mxu0 0.0
      %2289 = vmatprep.subr.mxu0 0.0
      %2290 = vmatpush1.msra.mxu0 0.0
      %2291 = vmatprep.subr.mxu0 0.0
      %2292 = vmatpush1.msra.mxu0 0.0
      %2293 = vmatprep.subr.mxu0 0.0
      %2294 = vmatpush1.msra.mxu0 0.0
      %2295 = vmatprep.subr.mxu0 0.0
      %2296 = vmatpush1.msra.mxu0 0.0
      %2297 = vmatprep.subr.mxu0 0.0
      %2298 = vmatpush1.msra.mxu0 0.0
      %2299 = vmatprep.subr.mxu0 0.0
      %2300 = vmatpush1.msra.mxu0 0.0
      %2301 = vmatprep.subr.mxu0 0.0
      %2302 = vmatpush1.msra.mxu0 0.0
      %2303 = vmatprep.subr.mxu0 0.0
      %2304 = vmatpush1.msra.mxu0 0.0
      %2305 = vmatprep.subr.mxu0 0.0
      %2306 = vmatpush1.msra.mxu0 0.0
      %2307 = vmatprep.subr.mxu0 0.0
      %2308 = vmatpush1.msra.mxu0 0.0
      %2309 = vmatprep.subr.mxu0 0.0
      %2310 = vmatpush1.msra.mxu0 0.0
      %2311 = vmatprep.subr.mxu0 0.0
      %2312 = vmatpush1.msra.mxu0 0.0
      %2313 = vmatprep.subr.mxu0 0.0
      %2314 = vmatpush1.msra.mxu0 0.0
      %2315 = vmatprep.subr.mxu0 0.0
      %2316 = vmatpush1.msra.mxu0 0.0
      %2317 = vmatprep.subr.mxu0 0.0
      %2318 = vmatpush1.msra.mxu0 0.0
      %2319 = vmatprep.mubr.f32.mxu0 0.0
      %2320 = vmatmul.mubr.f32.gmra.mrb[0].mxu0 %v2250
      %v2321 = vpop.f32.mrb[0].mxu0
      %v2322 = vadd.f32 0.0, %v2321
      %v2323 = vpop.f32.mrb[0].mxu0
      %2324 = vmatprep.mubr.f32.mxu0 0.0
      %2325 = vmatmul.mubr.f32.gmra.mrb[0].mxu0 %v2253
      %v2326 = vpop.f32.mrb[0].mxu0
      %v2327 = vadd.f32 0.0, %v2326
      %v2328 = vpop.f32.mrb[0].mxu0
      %2329 = vdwg.mxu0
      %v2330 = vrcp.pop %v2239
      %v2331 = vrcp.pop %v2242
      %v2332 = vmul.f32 %v2322, %v2330
      %v2333 = vmul.f32 %v2327, %v2331
      %2334 = vrot.lane.b32.xlu0 %v857, 104
      %v2335 = vpop.permute.xlu0 %2334
      %2336 = vrot.lane.b32.xlu0 %v862, 104
      %v2337 = vpop.permute.xlu0 %2336
      %2338 = vrot.lane.b32.xlu0 %v857, 72
      %v2339 = vpop.permute.xlu0 %2338
      %2340 = vrot.lane.b32.xlu0 %v862, 72
      %v2341 = vpop.permute.xlu0 %2340
      %v2342 = vsel %vm871, %v2335, 0
      %v2344 = vsel %vm871, %v2337, 0
      %v2346 = vsel %vm871, %v2339, 0
      %v2348 = vsel %vm871, %v2341, 0
      %2350 = vmatprep.subr.mxu0 0.0
      %2351 = vmatpush1.xpose.msra.mxu0 %v2346
      %2352 = vmatprep.subr.mxu0 0.0
      %2353 = vmatpush1.xpose.msra.mxu0 %v2348
      %2354 = vmatprep.subr.mxu0 0.0
      %2355 = vmatpush1.xpose.msra.mxu0 0.0
      %2356 = vmatprep.subr.mxu0 0.0
      %2357 = vmatpush1.xpose.msra.mxu0 0.0
      %2358 = vmatprep.subr.mxu0 0.0
      %2359 = vmatpush1.xpose.msra.mxu0 0.0
      %2360 = vmatprep.subr.mxu0 0.0
      %2361 = vmatpush1.xpose.msra.mxu0 0.0
      %2362 = vmatprep.subr.mxu0 0.0
      %2363 = vmatpush1.xpose.msra.mxu0 0.0
      %2364 = vmatprep.subr.mxu0 0.0
      %2365 = vmatpush1.xpose.msra.mxu0 0.0
      %2366 = vmatprep.subr.mxu0 0.0
      %2367 = vmatpush1.xpose.msra.mxu0 0.0
      %2368 = vmatprep.subr.mxu0 0.0
      %2369 = vmatpush1.xpose.msra.mxu0 0.0
      %2370 = vmatprep.subr.mxu0 0.0
      %2371 = vmatpush1.xpose.msra.mxu0 0.0
      %2372 = vmatprep.subr.mxu0 0.0
      %2373 = vmatpush1.xpose.msra.mxu0 0.0
      %2374 = vmatprep.subr.mxu0 0.0
      %2375 = vmatpush1.xpose.msra.mxu0 0.0
      %2376 = vmatprep.subr.mxu0 0.0
      %2377 = vmatpush1.xpose.msra.mxu0 0.0
      %2378 = vmatprep.subr.mxu0 0.0
      %2379 = vmatpush1.xpose.msra.mxu0 0.0
      %2380 = vmatprep.subr.mxu0 0.0
      %2381 = vmatpush1.xpose.msra.mxu0 0.0
      %2382 = vmatprep.subr.mxu0 0.0
      %2383 = vmatpush1.xpose.msra.mxu0 0.0
      %2384 = vmatprep.subr.mxu0 0.0
      %2385 = vmatpush1.xpose.msra.mxu0 0.0
      %2386 = vmatprep.subr.mxu0 0.0
      %2387 = vmatpush1.xpose.msra.mxu0 0.0
      %2388 = vmatprep.subr.mxu0 0.0
      %2389 = vmatpush1.xpose.msra.mxu0 0.0
      %2390 = vmatprep.subr.mxu0 0.0
      %2391 = vmatpush1.xpose.msra.mxu0 0.0
      %2392 = vmatprep.subr.mxu0 0.0
      %2393 = vmatpush1.xpose.msra.mxu0 0.0
      %2394 = vmatprep.subr.mxu0 0.0
      %2395 = vmatpush1.xpose.msra.mxu0 0.0
      %2396 = vmatprep.subr.mxu0 0.0
      %2397 = vmatpush1.xpose.msra.mxu0 0.0
      %2398 = vmatprep.subr.mxu0 0.0
      %2399 = vmatpush1.xpose.msra.mxu0 0.0
      %2400 = vmatprep.subr.mxu0 0.0
      %2401 = vmatpush1.xpose.msra.mxu0 0.0
      %2402 = vmatprep.subr.mxu0 0.0
      %2403 = vmatpush1.xpose.msra.mxu0 0.0
      %2404 = vmatprep.subr.mxu0 0.0
      %2405 = vmatpush1.xpose.msra.mxu0 0.0
      %2406 = vmatprep.subr.mxu0 0.0
      %2407 = vmatpush1.xpose.msra.mxu0 0.0
      %2408 = vmatprep.subr.mxu0 0.0
      %2409 = vmatpush1.xpose.msra.mxu0 0.0
      %2410 = vmatprep.subr.mxu0 0.0
      %2411 = vmatpush1.xpose.msra.mxu0 0.0
      %2412 = vmatprep.subr.mxu0 0.0
      %2413 = vmatpush1.xpose.msra.mxu0 0.0
      %2414 = vmatprep.mubr.f32.mxu0 0.0
      %2415 = vmatmul.mubr.f32.gmra.mrb[0].mxu0 %v2342
      %v2416 = vpop.f32.mrb[0].mxu0
      %v2417 = vadd.f32 0.0, %v2416
      %v2418 = vpop.f32.mrb[0].mxu0
      %2419 = vmatprep.mubr.f32.mxu0 0.0
      %2420 = vmatmul.mubr.f32.gmra.mrb[0].mxu0 %v2344
      %v2421 = vpop.f32.mrb[0].mxu0
      %v2422 = vadd.f32 0.0, %v2421
      %v2423 = vpop.f32.mrb[0].mxu0
      %2424 = vdwg.mxu0
      %v2425 = vmul.f32 %v2417, 0.35355338
      %v2426 = vmul.f32 %v2422, 0.35355338
      %v2427 = vsel %vm1814, -1e+09, %v2425
      %v2428 = vsel %vm1814, -1e+09, %v2426
      %v2429 = vsel %vm966, %v2427, -inf
      %2430 = vmax.xlane.f32.xlu0 %v2429
      %v2431 = vpop.xlane.xlu0 %2430
      %v2432 = vsel %vm966, %v2428, -inf
      %2433 = vmax.xlane.f32.xlu0 %v2432
      %v2434 = vpop.xlane.xlu0 %2433
      %v2435 = vsub.f32 %v2427, %v2431
      %v2436 = vsub.f32 %v2428, %v2434
      %v2437 = vmul.f32 %v2435, 1.442695
      %v2438 = vpow.pop %v2437
      %v2439 = vmul.f32 %v2436, 1.442695
      %v2440 = vpow.pop %v2439
      %v2441 = vsel %vm966, %v2438, 0.0
      %2442 = vadd.xlane.f32.xlu0 %v2441
      %v2443 = vpop.xlane.xlu0 %2442
      %v2444 = vsel %vm966, %v2440, 0.0
      %2445 = vadd.xlane.f32.xlu0 %v2444
      %v2446 = vpop.xlane.xlu0 %2445
      %2447 = vrot.lane.b32.xlu0 %v857, 40
      %v2448 = vpop.permute.xlu0 %2447
      %2449 = vrot.lane.b32.xlu0 %v862, 40
      %v2450 = vpop.permute.xlu0 %2449
      %v2454 = vsel %vm966, %v2438, 0
      %v2457 = vsel %vm966, %v2440, 0
      %2459 = vmatprep.subr.mxu0 0.0
      %2460 = vmatpush1.msra.mxu0 %v2448
      %2461 = vmatprep.subr.mxu0 0.0
      %2462 = vmatpush1.msra.mxu0 %v2450
      %2463 = vmatprep.subr.mxu0 0.0
      %2464 = vmatpush1.msra.mxu0 0.0
      %2465 = vmatprep.subr.mxu0 0.0
      %2466 = vmatpush1.msra.mxu0 0.0
      %2467 = vmatprep.subr.mxu0 0.0
      %2468 = vmatpush1.msra.mxu0 0.0
      %2469 = vmatprep.subr.mxu0 0.0
      %2470 = vmatpush1.msra.mxu0 0.0
      %2471 = vmatprep.subr.mxu0 0.0
      %2472 = vmatpush1.msra.mxu0 0.0
      %2473 = vmatprep.subr.mxu0 0.0
      %2474 = vmatpush1.msra.mxu0 0.0
      %2475 = vmatprep.subr.mxu0 0.0
      %2476 = vmatpush1.msra.mxu0 0.0
      %2477 = vmatprep.subr.mxu0 0.0
      %2478 = vmatpush1.msra.mxu0 0.0
      %2479 = vmatprep.subr.mxu0 0.0
      %2480 = vmatpush1.msra.mxu0 0.0
      %2481 = vmatprep.subr.mxu0 0.0
      %2482 = vmatpush1.msra.mxu0 0.0
      %2483 = vmatprep.subr.mxu0 0.0
      %2484 = vmatpush1.msra.mxu0 0.0
      %2485 = vmatprep.subr.mxu0 0.0
      %2486 = vmatpush1.msra.mxu0 0.0
      %2487 = vmatprep.subr.mxu0 0.0
      %2488 = vmatpush1.msra.mxu0 0.0
      %2489 = vmatprep.subr.mxu0 0.0
      %2490 = vmatpush1.msra.mxu0 0.0
      %2491 = vmatprep.subr.mxu0 0.0
      %2492 = vmatpush1.msra.mxu0 0.0
      %2493 = vmatprep.subr.mxu0 0.0
      %2494 = vmatpush1.msra.mxu0 0.0
      %2495 = vmatprep.subr.mxu0 0.0
      %2496 = vmatpush1.msra.mxu0 0.0
      %2497 = vmatprep.subr.mxu0 0.0
      %2498 = vmatpush1.msra.mxu0 0.0
      %2499 = vmatprep.subr.mxu0 0.0
      %2500 = vmatpush1.msra.mxu0 0.0
      %2501 = vmatprep.subr.mxu0 0.0
      %2502 = vmatpush1.msra.mxu0 0.0
      %2503 = vmatprep.subr.mxu0 0.0
      %2504 = vmatpush1.msra.mxu0 0.0
      %2505 = vmatprep.subr.mxu0 0.0
      %2506 = vmatpush1.msra.mxu0 0.0
      %2507 = vmatprep.subr.mxu0 0.0
      %2508 = vmatpush1.msra.mxu0 0.0
      %2509 = vmatprep.subr.mxu0 0.0
      %2510 = vmatpush1.msra.mxu0 0.0
      %2511 = vmatprep.subr.mxu0 0.0
      %2512 = vmatpush1.msra.mxu0 0.0
      %2513 = vmatprep.subr.mxu0 0.0
      %2514 = vmatpush1.msra.mxu0 0.0
      %2515 = vmatprep.subr.mxu0 0.0
      %2516 = vmatpush1.msra.mxu0 0.0
      %2517 = vmatprep.subr.mxu0 0.0
      %2518 = vmatpush1.msra.mxu0 0.0
      %2519 = vmatprep.subr.mxu0 0.0
      %2520 = vmatpush1.msra.mxu0 0.0
      %2521 = vmatprep.subr.mxu0 0.0
      %2522 = vmatpush1.msra.mxu0 0.0
      %2523 = vmatprep.mubr.f32.mxu0 0.0
      %2524 = vmatmul.mubr.f32.gmra.mrb[0].mxu0 %v2454
      %v2525 = vpop.f32.mrb[0].mxu0
      %v2526 = vadd.f32 0.0, %v2525
      %v2527 = vpop.f32.mrb[0].mxu0
      %2528 = vmatprep.mubr.f32.mxu0 0.0
      %2529 = vmatmul.mubr.f32.gmra.mrb[0].mxu0 %v2457
      %v2530 = vpop.f32.mrb[0].mxu0
      %v2531 = vadd.f32 0.0, %v2530
      %v2532 = vpop.f32.mrb[0].mxu0
      %2533 = vdwg.mxu0
      %v2534 = vrcp.pop %v2443
      %v2535 = vrcp.pop %v2446
      %v2536 = vmul.f32 %v2526, %v2534
      %v2537 = vmul.f32 %v2531, %v2535
      %2540 = vrot.lane.b32.xlu0 %v2128, 8
      %v2541 = vpop.permute.xlu0 %2540
      %2542 = vrot.lane.b32.xlu0 %v2129, 8
      %v2543 = vpop.permute.xlu0 %2542
      %2548 = vrot.lane.b32.xlu0 %v2332, 16
      %v2549 = vpop.permute.xlu0 %2548
      %2550 = vrot.lane.b32.xlu0 %v2333, 16
      %v2551 = vpop.permute.xlu0 %2550
      %2556 = vrot.lane.b32.xlu0 %v2536, 24
      %v2557 = vpop.permute.xlu0 %2556
      %2558 = vrot.lane.b32.xlu0 %v2537, 24
      %v2559 = vpop.permute.xlu0 %2558
      %v2562 = vsel %vm871, %v1924, %v2541
      %v2563 = vsel %vm871, %v1925, %v2543
      %v2564 = vsel %vm966, %v2562, %v2549
      %v2565 = vsel %vm966, %v2563, %v2551
      %v2566 = vsel %vm1716, %v2564, %v2557
      %v2567 = vsel %vm1716, %v2565, %v2559
      %v2568 = vld [vmem:[%s620] sm:$0xff]
      %v2569 = vld [vmem:[%s620 + $0x8] sm:$0xff]
      %v2570 = vld [vmem:[%s620 + $0x10] sm:$0xff]
      %v2571 = vld [vmem:[%s620 + $0x18] sm:$0xff]
      %v2572 = vld [vmem:[%s623] sm:$0x1]
      %v2574 = vlaneseq
      %v2575 = vshrl.u32 %v2574, 7
      %v2576 = vsub.s32 0, %v2575
      %v2577 = vrot.slane %v2572, %v2576
      %v2580 = vsel %vm659, %v1717, 0
      %v2583 = vsel %vm659, %v1718, 0
      %v2586 = vsel %vm659, %v2566, 0
      %v2589 = vsel %vm659, %v2567, 0
      %2591 = vmatprep.subr.mxu0 0.0
      %2592 = vmatpush1.msra.mxu0 %v2568
      %2593 = vmatprep.subr.mxu0 0.0
      %2594 = vmatpush1.msra.mxu0 %v2569
      %2595 = vmatprep.subr.mxu0 0.0
      %2596 = vmatpush1.msra.mxu0 %v2570
      %2597 = vmatprep.subr.mxu0 0.0
      %2598 = vmatpush1.msra.mxu0 %v2571
      %2599 = vmatprep.subr.mxu0 0.0
      %2600 = vmatpush1.msra.mxu0 0.0
      %2601 = vmatprep.subr.mxu0 0.0
      %2602 = vmatpush1.msra.mxu0 0.0
      %2603 = vmatprep.subr.mxu0 0.0
      %2604 = vmatpush1.msra.mxu0 0.0
      %2605 = vmatprep.subr.mxu0 0.0
      %2606 = vmatpush1.msra.mxu0 0.0
      %2607 = vmatprep.subr.mxu0 0.0
      %2608 = vmatpush1.msra.mxu0 0.0
      %2609 = vmatprep.subr.mxu0 0.0
      %2610 = vmatpush1.msra.mxu0 0.0
      %2611 = vmatprep.subr.mxu0 0.0
      %2612 = vmatpush1.msra.mxu0 0.0
      %2613 = vmatprep.subr.mxu0 0.0
      %2614 = vmatpush1.msra.mxu0 0.0
      %2615 = vmatprep.subr.mxu0 0.0
      %2616 = vmatpush1.msra.mxu0 0.0
      %2617 = vmatprep.subr.mxu0 0.0
      %2618 = vmatpush1.msra.mxu0 0.0
      %2619 = vmatprep.subr.mxu0 0.0
      %2620 = vmatpush1.msra.mxu0 0.0
      %2621 = vmatprep.subr.mxu0 0.0
      %2622 = vmatpush1.msra.mxu0 0.0
      %2623 = vmatprep.subr.mxu0 0.0
      %2624 = vmatpush1.msra.mxu0 0.0
      %2625 = vmatprep.subr.mxu0 0.0
      %2626 = vmatpush1.msra.mxu0 0.0
      %2627 = vmatprep.subr.mxu0 0.0
      %2628 = vmatpush1.msra.mxu0 0.0
      %2629 = vmatprep.subr.mxu0 0.0
      %2630 = vmatpush1.msra.mxu0 0.0
      %2631 = vmatprep.subr.mxu0 0.0
      %2632 = vmatpush1.msra.mxu0 0.0
      %2633 = vmatprep.subr.mxu0 0.0
      %2634 = vmatpush1.msra.mxu0 0.0
      %2635 = vmatprep.subr.mxu0 0.0
      %2636 = vmatpush1.msra.mxu0 0.0
      %2637 = vmatprep.subr.mxu0 0.0
      %2638 = vmatpush1.msra.mxu0 0.0
      %2639 = vmatprep.subr.mxu0 0.0
      %2640 = vmatpush1.msra.mxu0 0.0
      %2641 = vmatprep.subr.mxu0 0.0
      %2642 = vmatpush1.msra.mxu0 0.0
      %2643 = vmatprep.subr.mxu0 0.0
      %2644 = vmatpush1.msra.mxu0 0.0
      %2645 = vmatprep.subr.mxu0 0.0
      %2646 = vmatpush1.msra.mxu0 0.0
      %2647 = vmatprep.subr.mxu0 0.0
      %2648 = vmatpush1.msra.mxu0 0.0
      %2649 = vmatprep.subr.mxu0 0.0
      %2650 = vmatpush1.msra.mxu0 0.0
      %2651 = vmatprep.subr.mxu0 0.0
      %2652 = vmatpush1.msra.mxu0 0.0
      %2653 = vmatprep.subr.mxu0 0.0
      %2654 = vmatpush1.msra.mxu0 0.0
      %2655 = vmatprep.mubr.f32.mxu0 0.0
      %2656 = vmatmul.mubr.f32.gmra.mrb[0].mxu0 %v2580
      %v2657 = vpop.f32.mrb[0].mxu0
      %v2658 = vadd.f32 %v2577, %v2657
      %v2659 = vpop.f32.mrb[0].mxu0
      %2660 = vmatprep.mubr.f32.mxu0 0.0
      %2661 = vmatmul.mubr.f32.gmra.mrb[0].mxu0 %v2583
      %v2662 = vpop.f32.mrb[0].mxu0
      %v2663 = vadd.f32 %v2577, %v2662
      %v2664 = vpop.f32.mrb[0].mxu0
      %2665 = vmatprep.mubr.f32.mxu0 0.0
      %2666 = vmatmul.mubr.f32.gmra.mrb[0].mxu0 %v2586
      %v2667 = vpop.f32.mrb[0].mxu0
      %v2668 = vadd.f32 %v2577, %v2667
      %v2669 = vpop.f32.mrb[0].mxu0
      %2670 = vmatprep.mubr.f32.mxu0 0.0
      %2671 = vmatmul.mubr.f32.gmra.mrb[0].mxu0 %v2589
      %v2672 = vpop.f32.mrb[0].mxu0
      %v2673 = vadd.f32 %v2577, %v2672
      %v2674 = vpop.f32.mrb[0].mxu0
      %2675 = vdwg.mxu0
      %v2676 = vadd.f32 %v653, %v2658
      %v2677 = vadd.f32 %v654, %v2663
      %v2678 = vadd.f32 %v655, %v2668
      %v2679 = vadd.f32 %v656, %v2673
      %v2680 = vsel %vm659, %v2676, 0.0
      %2681 = vadd.xlane.f32.xlu0 %v2680
      %v2682 = vpop.xlane.xlu0 %2681
      %v2683 = vsel %vm659, %v2677, 0.0
      %2684 = vadd.xlane.f32.xlu0 %v2683
      %v2685 = vpop.xlane.xlu0 %2684
      %v2686 = vsel %vm659, %v2678, 0.0
      %2687 = vadd.xlane.f32.xlu0 %v2686
      %v2688 = vpop.xlane.xlu0 %2687
      %v2689 = vsel %vm659, %v2679, 0.0
      %2690 = vadd.xlane.f32.xlu0 %v2689
      %v2691 = vpop.xlane.xlu0 %2690
      %v2692 = vmul.f32 %v2682, %v672
      %v2693 = vmul.f32 %v2685, %v672
      %v2694 = vmul.f32 %v2688, %v672
      %v2695 = vmul.f32 %v2691, %v672
      %v2696 = vsub.f32 %v2676, %v2692
      %v2697 = vsub.f32 %v2677, %v2693
      %v2698 = vsub.f32 %v2678, %v2694
      %v2699 = vsub.f32 %v2679, %v2695
      %v2700 = vmul.f32 %v2696, %v2696
      %v2701 = vmul.f32 %v2697, %v2697
      %v2702 = vmul.f32 %v2698, %v2698
      %v2703 = vmul.f32 %v2699, %v2699
      %v2704 = vsel %vm659, %v2700, 0.0
      %2705 = vadd.xlane.f32.xlu0 %v2704
      %v2706 = vpop.xlane.xlu0 %2705
      %v2707 = vsel %vm659, %v2701, 0.0
      %2708 = vadd.xlane.f32.xlu0 %v2707
      %v2709 = vpop.xlane.xlu0 %2708
      %v2710 = vsel %vm659, %v2702, 0.0
      %2711 = vadd.xlane.f32.xlu0 %v2710
      %v2712 = vpop.xlane.xlu0 %2711
      %v2713 = vsel %vm659, %v2703, 0.0
      %2714 = vadd.xlane.f32.xlu0 %v2713
      %v2715 = vpop.xlane.xlu0 %2714
      %v2716 = vmul.f32 %v2706, 0.032258064
      %v2717 = vmul.f32 %v2709, 0.032258064
      %v2718 = vmul.f32 %v2712, 0.032258064
      %v2719 = vmul.f32 %v2715, 0.032258064
      %v2720 = vrsqrt.pop %v2716
      %v2721 = vmul.f32 %v2716, %v2720
      %vm2722 = vcmp.eq.f32.partialorder %v2716, inf
      %v2723 = vsel %vm2722, %v2716, %v2721
      %vm2724 = vcmp.eq.f32.partialorder %v2716, 0.0
      %v2725 = vand.u32 %v2716, 2147483648
      %v2726 = vsel %vm2724, %v2725, %v2723
      %v2727 = vrsqrt.pop %v2717
      %v2728 = vmul.f32 %v2717, %v2727
      %vm2729 = vcmp.eq.f32.partialorder %v2717, inf
      %v2730 = vsel %vm2729, %v2717, %v2728
      %vm2731 = vcmp.eq.f32.partialorder %v2717, 0.0
      %v2732 = vand.u32 %v2717, 2147483648
      %v2733 = vsel %vm2731, %v2732, %v2730
      %v2734 = vrsqrt.pop %v2718
      %v2735 = vmul.f32 %v2718, %v2734
      %vm2736 = vcmp.eq.f32.partialorder %v2718, inf
      %v2737 = vsel %vm2736, %v2718, %v2735
      %vm2738 = vcmp.eq.f32.partialorder %v2718, 0.0
      %v2739 = vand.u32 %v2718, 2147483648
      %v2740 = vsel %vm2738, %v2739, %v2737
      %v2741 = vrsqrt.pop %v2719
      %v2742 = vmul.f32 %v2719, %v2741
      %vm2743 = vcmp.eq.f32.partialorder %v2719, inf
      %v2744 = vsel %vm2743, %v2719, %v2742
      %vm2745 = vcmp.eq.f32.partialorder %v2719, 0.0
      %v2746 = vand.u32 %v2719, 2147483648
      %v2747 = vsel %vm2745, %v2746, %v2744
      %v2748 = vadd.f32 %v2726, 1e-06
      %v2749 = vadd.f32 %v2733, 1e-06
      %v2750 = vadd.f32 %v2740, 1e-06
      %v2751 = vadd.f32 %v2747, 1e-06
      %v2752 = vrcp.pop %v2748
      %v2753 = vrcp.pop %v2749
      %v2754 = vrcp.pop %v2750
      %v2755 = vrcp.pop %v2751
      %v2756 = vlaneseq
      %v2757 = vshrl.u32 %v2756, 7
      %v2758 = vsub.s32 2, %v2757
      %v2759 = vrot.slane %v657, %v2758
      %v2760 = vmul.f32 %v2759, %v2696
      %v2761 = vmul.f32 %v2759, %v2697
      %v2762 = vmul.f32 %v2759, %v2698
      %v2763 = vmul.f32 %v2759, %v2699
      %v2764 = vmul.f32 %v2760, %v2752
      %v2765 = vmul.f32 %v2761, %v2753
      %v2766 = vmul.f32 %v2762, %v2754
      %v2767 = vmul.f32 %v2763, %v2755
      %v2768 = vlaneseq
      %v2769 = vshrl.u32 %v2768, 7
      %v2770 = vsub.s32 3, %v2769
      %v2771 = vrot.slane %v657, %v2770
      %v2772 = vadd.f32 %v2764, %v2771
      %v2773 = vadd.f32 %v2765, %v2771
      %v2774 = vadd.f32 %v2766, %v2771
      %v2775 = vadd.f32 %v2767, %v2771
      %v2776 = vld [vmem:[%s628] sm:$0xff]
      %v2777 = vld [vmem:[%s628 + $0x8] sm:$0xff]
      %v2778 = vld [vmem:[%s628 + $0x10] sm:$0xff]
      %v2779 = vld [vmem:[%s628 + $0x18] sm:$0xff]
      %v2780 = vld [vmem:[%s631] sm:$0x1]
      %v2782 = vlaneseq
      %v2783 = vshrl.u32 %v2782, 7
      %v2784 = vsub.s32 0, %v2783
      %v2785 = vrot.slane %v2780, %v2784
      %v2788 = vsel %vm659, %v2772, 0
      %v2791 = vsel %vm659, %v2773, 0
      %v2794 = vsel %vm659, %v2774, 0
      %v2797 = vsel %vm659, %v2775, 0
      %2799 = vmatprep.subr.mxu0 0.0
      %2800 = vmatpush1.msra.mxu0 %v2776
      %2801 = vmatprep.subr.mxu0 0.0
      %2802 = vmatpush1.msra.mxu0 %v2777
      %2803 = vmatprep.subr.mxu0 0.0
      %2804 = vmatpush1.msra.mxu0 %v2778
      %2805 = vmatprep.subr.mxu0 0.0
      %2806 = vmatpush1.msra.mxu0 %v2779
      %2807 = vmatprep.subr.mxu0 0.0
      %2808 = vmatpush1.msra.mxu0 0.0
      %2809 = vmatprep.subr.mxu0 0.0
      %2810 = vmatpush1.msra.mxu0 0.0
      %2811 = vmatprep.subr.mxu0 0.0
      %2812 = vmatpush1.msra.mxu0 0.0
      %2813 = vmatprep.subr.mxu0 0.0
      %2814 = vmatpush1.msra.mxu0 0.0
      %2815 = vmatprep.subr.mxu0 0.0
      %2816 = vmatpush1.msra.mxu0 0.0
      %2817 = vmatprep.subr.mxu0 0.0
      %2818 = vmatpush1.msra.mxu0 0.0
      %2819 = vmatprep.subr.mxu0 0.0
      %2820 = vmatpush1.msra.mxu0 0.0
      %2821 = vmatprep.subr.mxu0 0.0
      %2822 = vmatpush1.msra.mxu0 0.0
      %2823 = vmatprep.subr.mxu0 0.0
      %2824 = vmatpush1.msra.mxu0 0.0
      %2825 = vmatprep.subr.mxu0 0.0
      %2826 = vmatpush1.msra.mxu0 0.0
      %2827 = vmatprep.subr.mxu0 0.0
      %2828 = vmatpush1.msra.mxu0 0.0
      %2829 = vmatprep.subr.mxu0 0.0
      %2830 = vmatpush1.msra.mxu0 0.0
      %2831 = vmatprep.subr.mxu0 0.0
      %2832 = vmatpush1.msra.mxu0 0.0
      %2833 = vmatprep.subr.mxu0 0.0
      %2834 = vmatpush1.msra.mxu0 0.0
      %2835 = vmatprep.subr.mxu0 0.0
      %2836 = vmatpush1.msra.mxu0 0.0
      %2837 = vmatprep.subr.mxu0 0.0
      %2838 = vmatpush1.msra.mxu0 0.0
      %2839 = vmatprep.subr.mxu0 0.0
      %2840 = vmatpush1.msra.mxu0 0.0
      %2841 = vmatprep.subr.mxu0 0.0
      %2842 = vmatpush1.msra.mxu0 0.0
      %2843 = vmatprep.subr.mxu0 0.0
      %2844 = vmatpush1.msra.mxu0 0.0
      %2845 = vmatprep.subr.mxu0 0.0
      %2846 = vmatpush1.msra.mxu0 0.0
      %2847 = vmatprep.subr.mxu0 0.0
      %2848 = vmatpush1.msra.mxu0 0.0
      %2849 = vmatprep.subr.mxu0 0.0
      %2850 = vmatpush1.msra.mxu0 0.0
      %2851 = vmatprep.subr.mxu0 0.0
      %2852 = vmatpush1.msra.mxu0 0.0
      %2853 = vmatprep.subr.mxu0 0.0
      %2854 = vmatpush1.msra.mxu0 0.0
      %2855 = vmatprep.subr.mxu0 0.0
      %2856 = vmatpush1.msra.mxu0 0.0
      %2857 = vmatprep.subr.mxu0 0.0
      %2858 = vmatpush1.msra.mxu0 0.0
      %2859 = vmatprep.subr.mxu0 0.0
      %2860 = vmatpush1.msra.mxu0 0.0
      %2861 = vmatprep.subr.mxu0 0.0
      %2862 = vmatpush1.msra.mxu0 0.0
      %2863 = vmatprep.mubr.f32.mxu0 0.0
      %2864 = vmatmul.mubr.f32.gmra.mrb[0].mxu0 %v2788
      %v2865 = vpop.f32.mrb[0].mxu0
      %v2866 = vadd.f32 %v2785, %v2865
      %v2867 = vpop.f32.mrb[0].mxu0
      %2868 = vmatprep.mubr.f32.mxu0 0.0
      %2869 = vmatmul.mubr.f32.gmra.mrb[0].mxu0 %v2791
      %v2870 = vpop.f32.mrb[0].mxu0
      %v2871 = vadd.f32 %v2785, %v2870
      %v2872 = vpop.f32.mrb[0].mxu0
      %2873 = vmatprep.mubr.f32.mxu0 0.0
      %2874 = vmatmul.mubr.f32.gmra.mrb[0].mxu0 %v2794
      %v2875 = vpop.f32.mrb[0].mxu0
      %v2876 = vadd.f32 %v2785, %v2875
      %v2877 = vpop.f32.mrb[0].mxu0
      %2878 = vmatprep.mubr.f32.mxu0 0.0
      %2879 = vmatmul.mubr.f32.gmra.mrb[0].mxu0 %v2797
      %v2880 = vpop.f32.mrb[0].mxu0
      %v2881 = vadd.f32 %v2785, %v2880
      %v2882 = vpop.f32.mrb[0].mxu0
      %2883 = vdwg.mxu0
      %v2884 = vmax.f32 %v2866, 0.0
      %v2885 = vmax.f32 %v2871, 0.0
      %v2886 = vmax.f32 %v2876, 0.0
      %v2887 = vmax.f32 %v2881, 0.0
      %v2888 = vld [vmem:[%s636] sm:$0xff]
      %v2889 = vld [vmem:[%s636 + $0x8] sm:$0xff]
      %v2890 = vld [vmem:[%s636 + $0x10] sm:$0xff]
      %v2891 = vld [vmem:[%s636 + $0x18] sm:$0xff]
      %v2892 = vld [vmem:[%s636 + $0x20] sm:$0xff]
      %v2893 = vld [vmem:[%s636 + $0x28] sm:$0xff]
      %v2894 = vld [vmem:[%s636 + $0x30] sm:$0xff]
      %v2895 = vld [vmem:[%s636 + $0x38] sm:$0xff]
      %v2896 = vld [vmem:[%s639] sm:$0x1]
      %v2898 = vlaneseq
      %v2899 = vshrl.u32 %v2898, 7
      %v2900 = vsub.s32 0, %v2899
      %v2901 = vrot.slane %v2896, %v2900
      %vm2903 = vcmask 523264
      %v2905 = vsel %vm2903, %v2884, 0
      %v2908 = vsel %vm2903, %v2885, 0
      %v2911 = vsel %vm2903, %v2886, 0
      %v2914 = vsel %vm2903, %v2887, 0
      %2916 = vmatprep.subr.mxu0 0.0
      %2917 = vmatpush1.msra.mxu0 %v2888
      %2918 = vmatprep.subr.mxu0 0.0
      %2919 = vmatpush1.msra.mxu0 %v2889
      %2920 = vmatprep.subr.mxu0 0.0
      %2921 = vmatpush1.msra.mxu0 %v2890
      %2922 = vmatprep.subr.mxu0 0.0
      %2923 = vmatpush1.msra.mxu0 %v2891
      %2924 = vmatprep.subr.mxu0 0.0
      %2925 = vmatpush1.msra.mxu0 %v2892
      %2926 = vmatprep.subr.mxu0 0.0
      %2927 = vmatpush1.msra.mxu0 %v2893
      %2928 = vmatprep.subr.mxu0 0.0
      %2929 = vmatpush1.msra.mxu0 %v2894
      %2930 = vmatprep.subr.mxu0 0.0
      %2931 = vmatpush1.msra.mxu0 %v2895
      %2932 = vmatprep.subr.mxu0 0.0
      %2933 = vmatpush1.msra.mxu0 0.0
      %2934 = vmatprep.subr.mxu0 0.0
      %2935 = vmatpush1.msra.mxu0 0.0
      %2936 = vmatprep.subr.mxu0 0.0
      %2937 = vmatpush1.msra.mxu0 0.0
      %2938 = vmatprep.subr.mxu0 0.0
      %2939 = vmatpush1.msra.mxu0 0.0
      %2940 = vmatprep.subr.mxu0 0.0
      %2941 = vmatpush1.msra.mxu0 0.0
      %2942 = vmatprep.subr.mxu0 0.0
      %2943 = vmatpush1.msra.mxu0 0.0
      %2944 = vmatprep.subr.mxu0 0.0
      %2945 = vmatpush1.msra.mxu0 0.0
      %2946 = vmatprep.subr.mxu0 0.0
      %2947 = vmatpush1.msra.mxu0 0.0
      %2948 = vmatprep.subr.mxu0 0.0
      %2949 = vmatpush1.msra.mxu0 0.0
      %2950 = vmatprep.subr.mxu0 0.0
      %2951 = vmatpush1.msra.mxu0 0.0
      %2952 = vmatprep.subr.mxu0 0.0
      %2953 = vmatpush1.msra.mxu0 0.0
      %2954 = vmatprep.subr.mxu0 0.0
      %2955 = vmatpush1.msra.mxu0 0.0
      %2956 = vmatprep.subr.mxu0 0.0
      %2957 = vmatpush1.msra.mxu0 0.0
      %2958 = vmatprep.subr.mxu0 0.0
      %2959 = vmatpush1.msra.mxu0 0.0
      %2960 = vmatprep.subr.mxu0 0.0
      %2961 = vmatpush1.msra.mxu0 0.0
      %2962 = vmatprep.subr.mxu0 0.0
      %2963 = vmatpush1.msra.mxu0 0.0
      %2964 = vmatprep.subr.mxu0 0.0
      %2965 = vmatpush1.msra.mxu0 0.0
      %2966 = vmatprep.subr.mxu0 0.0
      %2967 = vmatpush1.msra.mxu0 0.0
      %2968 = vmatprep.subr.mxu0 0.0
      %2969 = vmatpush1.msra.mxu0 0.0
      %2970 = vmatprep.subr.mxu0 0.0
      %2971 = vmatpush1.msra.mxu0 0.0
      %2972 = vmatprep.subr.mxu0 0.0
      %2973 = vmatpush1.msra.mxu0 0.0
      %2974 = vmatprep.subr.mxu0 0.0
      %2975 = vmatpush1.msra.mxu0 0.0
      %2976 = vmatprep.subr.mxu0 0.0
      %2977 = vmatpush1.msra.mxu0 0.0
      %2978 = vmatprep.subr.mxu0 0.0
      %2979 = vmatpush1.msra.mxu0 0.0
      %2980 = vmatprep.mubr.f32.mxu0 0.0
      %2981 = vmatmul.mubr.f32.gmra.mrb[0].mxu0 %v2905
      %v2982 = vpop.f32.mrb[0].mxu0
      %v2983 = vadd.f32 %v2901, %v2982
      %v2984 = vpop.f32.mrb[0].mxu0
      %2985 = vmatprep.mubr.f32.mxu0 0.0
      %2986 = vmatmul.mubr.f32.gmra.mrb[0].mxu0 %v2908
      %v2987 = vpop.f32.mrb[0].mxu0
      %v2988 = vadd.f32 %v2901, %v2987
      %v2989 = vpop.f32.mrb[0].mxu0
      %2990 = vmatprep.mubr.f32.mxu0 0.0
      %2991 = vmatmul.mubr.f32.gmra.mrb[0].mxu0 %v2911
      %v2992 = vpop.f32.mrb[0].mxu0
      %v2993 = vadd.f32 %v2901, %v2992
      %v2994 = vpop.f32.mrb[0].mxu0
      %2995 = vmatprep.mubr.f32.mxu0 0.0
      %2996 = vmatmul.mubr.f32.gmra.mrb[0].mxu0 %v2914
      %v2997 = vpop.f32.mrb[0].mxu0
      %v2998 = vadd.f32 %v2901, %v2997
      %v2999 = vpop.f32.mrb[0].mxu0
      %3000 = vdwg.mxu0
      %v3001 = vadd.f32 %v2676, %v2983
      %v3002 = vadd.f32 %v2677, %v2988
      %v3003 = vadd.f32 %v2678, %v2993
      %v3004 = vadd.f32 %v2679, %v2998
      %3005 = vst.msk [vmem:[#allocation2] sm:$0xff] %vm659, %v3001
      %3006 = vst.msk [vmem:[#allocation2 + $0x8] sm:$0xff] %vm659, %v3002
      %3007 = vst.msk [vmem:[#allocation2 + $0x10] sm:$0xff] %vm659, %v3003
      %3008 = vst.msk [vmem:[#allocation2 + $0x18] sm:$0xff] %vm659, %v3004
      %p3009 = scmp.eq.s32.totalorder %s27, 1
      // Predicated region
      $region89: #{encoder_edge_classify_forward.1} parent=83 // pred_check
        %p3010 = pneg %p3009
      $region90: #{encoder_edge_classify_forward.1} parent=83 // pred_check_branch
        %3012 = sbr.rel (%p3010) target = $region92
      $region91: #{encoder_edge_classify_forward.1} parent=83 // pred_region
        %v3013 = vld [vmem:[%s11] sm:$0x3]
        %v3014 = vsel %vm659, %v3001, 0.0
        %3015 = vadd.xlane.f32.xlu0 %v3014
        %v3016 = vpop.xlane.xlu0 %3015
        %v3017 = vsel %vm659, %v3002, 0.0
        %3018 = vadd.xlane.f32.xlu0 %v3017
        %v3019 = vpop.xlane.xlu0 %3018
        %v3020 = vsel %vm659, %v3003, 0.0
        %3021 = vadd.xlane.f32.xlu0 %v3020
        %v3022 = vpop.xlane.xlu0 %3021
        %v3023 = vsel %vm659, %v3004, 0.0
        %3024 = vadd.xlane.f32.xlu0 %v3023
        %v3025 = vpop.xlane.xlu0 %3024
        %v3026 = vmul.f32 %v3016, %v672
        %v3027 = vmul.f32 %v3019, %v672
        %v3028 = vmul.f32 %v3022, %v672
        %v3029 = vmul.f32 %v3025, %v672
        %v3030 = vsub.f32 %v3001, %v3026
        %v3031 = vsub.f32 %v3002, %v3027
        %v3032 = vsub.f32 %v3003, %v3028
        %v3033 = vsub.f32 %v3004, %v3029
        %v3034 = vmul.f32 %v3030, %v3030
        %v3035 = vmul.f32 %v3031, %v3031
        %v3036 = vmul.f32 %v3032, %v3032
        %v3037 = vmul.f32 %v3033, %v3033
        %v3038 = vsel %vm659, %v3034, 0.0
        %3039 = vadd.xlane.f32.xlu0 %v3038
        %v3040 = vpop.xlane.xlu0 %3039
        %v3041 = vsel %vm659, %v3035, 0.0
        %3042 = vadd.xlane.f32.xlu0 %v3041
        %v3043 = vpop.xlane.xlu0 %3042
        %v3044 = vsel %vm659, %v3036, 0.0
        %3045 = vadd.xlane.f32.xlu0 %v3044
        %v3046 = vpop.xlane.xlu0 %3045
        %v3047 = vsel %vm659, %v3037, 0.0
        %3048 = vadd.xlane.f32.xlu0 %v3047
        %v3049 = vpop.xlane.xlu0 %3048
        %v3050 = vmul.f32 %v3040, 0.032258064
        %v3051 = vmul.f32 %v3043, 0.032258064
        %v3052 = vmul.f32 %v3046, 0.032258064
        %v3053 = vmul.f32 %v3049, 0.032258064
        %v3054 = vrsqrt.pop %v3050
        %v3055 = vmul.f32 %v3050, %v3054
        %vm3056 = vcmp.eq.f32.partialorder %v3050, inf
        %v3057 = vsel %vm3056, %v3050, %v3055
        %vm3058 = vcmp.eq.f32.partialorder %v3050, 0.0
        %v3059 = vand.u32 %v3050, 2147483648
        %v3060 = vsel %vm3058, %v3059, %v3057
        %v3061 = vrsqrt.pop %v3051
        %v3062 = vmul.f32 %v3051, %v3061
        %vm3063 = vcmp.eq.f32.partialorder %v3051, inf
        %v3064 = vsel %vm3063, %v3051, %v3062
        %vm3065 = vcmp.eq.f32.partialorder %v3051, 0.0
        %v3066 = vand.u32 %v3051, 2147483648
        %v3067 = vsel %vm3065, %v3066, %v3064
        %v3068 = vrsqrt.pop %v3052
        %v3069 = vmul.f32 %v3052, %v3068
        %vm3070 = vcmp.eq.f32.partialorder %v3052, inf
        %v3071 = vsel %vm3070, %v3052, %v3069
        %vm3072 = vcmp.eq.f32.partialorder %v3052, 0.0
        %v3073 = vand.u32 %v3052, 2147483648
        %v3074 = vsel %vm3072, %v3073, %v3071
        %v3075 = vrsqrt.pop %v3053
        %v3076 = vmul.f32 %v3053, %v3075
        %vm3077 = vcmp.eq.f32.partialorder %v3053, inf
        %v3078 = vsel %vm3077, %v3053, %v3076
        %vm3079 = vcmp.eq.f32.partialorder %v3053, 0.0
        %v3080 = vand.u32 %v3053, 2147483648
        %v3081 = vsel %vm3079, %v3080, %v3078
        %v3082 = vadd.f32 %v3060, 1e-06
        %v3083 = vadd.f32 %v3067, 1e-06
        %v3084 = vadd.f32 %v3074, 1e-06
        %v3085 = vadd.f32 %v3081, 1e-06
        %v3086 = vrcp.pop %v3082
        %v3087 = vrcp.pop %v3083
        %v3088 = vrcp.pop %v3084
        %v3089 = vrcp.pop %v3085
        %v3090 = vlaneseq
        %v3091 = vshrl.u32 %v3090, 7
        %v3092 = vsub.s32 0, %v3091
        %v3093 = vrot.slane %v3013, %v3092
        %v3094 = vmul.f32 %v3093, %v3030
        %v3095 = vmul.f32 %v3093, %v3031
        %v3096 = vmul.f32 %v3093, %v3032
        %v3097 = vmul.f32 %v3093, %v3033
        %v3098 = vmul.f32 %v3094, %v3086
        %v3099 = vmul.f32 %v3095, %v3087
        %v3100 = vmul.f32 %v3096, %v3088
        %v3101 = vmul.f32 %v3097, %v3089
        %v3102 = vlaneseq
        %v3103 = vshrl.u32 %v3102, 7
        %v3104 = vsub.s32 1, %v3103
        %v3105 = vrot.slane %v3013, %v3104
        %v3106 = vadd.f32 %v3098, %v3105
        %v3107 = vadd.f32 %v3099, %v3105
        %v3108 = vadd.f32 %v3100, %v3105
        %v3109 = vadd.f32 %v3101, %v3105
        %v3110 = vld [vmem:[%s12] sm:$0xff]
        %v3111 = vld [vmem:[%s13] sm:$0xff]
        %v3112 = vld [vmem:[%s14] sm:$0xff]
        %v3113 = vld [vmem:[%s14 + $0x8] sm:$0xff]
        %v3114 = vld [vmem:[%s14 + $0x10] sm:$0xff]
        %v3115 = vld [vmem:[%s14 + $0x18] sm:$0xff]
        %v3116 = vld [vmem:[%s14 + $0x20] sm:$0xff]
        %v3117 = vld [vmem:[%s14 + $0x28] sm:$0xff]
        %v3118 = vld [vmem:[%s14 + $0x30] sm:$0xff]
        %v3119 = vld [vmem:[%s14 + $0x38] sm:$0xff]
        %v3120 = vld [vmem:[%s15] sm:$0x1]
        %3122 = vset.pattern.permute.xlu0 0
        %3123 = vperm.xlu0 %3122, %v3111
        %v3124 = vpop.permute.xlu0 %3123
        %v3127 = vsel %vm966, %v3110, 0
        %3129 = vmatprep.subr.mxu0 0.0
        %3130 = vmatpush1.msra.mxu0 %v3106
        %3131 = vmatprep.subr.mxu0 0.0
        %3132 = vmatpush1.msra.mxu0 %v3107
        %3133 = vmatprep.subr.mxu0 0.0
        %3134 = vmatpush1.msra.mxu0 0.0
        %3135 = vmatprep.subr.mxu0 0.0
        %3136 = vmatpush1.msra.mxu0 0.0
        %3137 = vmatprep.subr.mxu0 0.0
        %3138 = vmatpush1.msra.mxu0 0.0
        %3139 = vmatprep.subr.mxu0 0.0
        %3140 = vmatpush1.msra.mxu0 0.0
        %3141 = vmatprep.subr.mxu0 0.0
        %3142 = vmatpush1.msra.mxu0 0.0
        %3143 = vmatprep.subr.mxu0 0.0
        %3144 = vmatpush1.msra.mxu0 0.0
        %3145 = vmatprep.subr.mxu0 0.0
        %3146 = vmatpush1.msra.mxu0 0.0
        %3147 = vmatprep.subr.mxu0 0.0
        %3148 = vmatpush1.msra.mxu0 0.0
        %3149 = vmatprep.subr.mxu0 0.0
        %3150 = vmatpush1.msra.mxu0 0.0
        %3151 = vmatprep.subr.mxu0 0.0
        %3152 = vmatpush1.msra.mxu0 0.0
        %3153 = vmatprep.subr.mxu0 0.0
        %3154 = vmatpush1.msra.mxu0 0.0
        %3155 = vmatprep.subr.mxu0 0.0
        %3156 = vmatpush1.msra.mxu0 0.0
        %3157 = vmatprep.subr.mxu0 0.0
        %3158 = vmatpush1.msra.mxu0 0.0
        %3159 = vmatprep.subr.mxu0 0.0
        %3160 = vmatpush1.msra.mxu0 0.0
        %3161 = vmatprep.subr.mxu0 0.0
        %3162 = vmatpush1.msra.mxu0 0.0
        %3163 = vmatprep.subr.mxu0 0.0
        %3164 = vmatpush1.msra.mxu0 0.0
        %3165 = vmatprep.subr.mxu0 0.0
        %3166 = vmatpush1.msra.mxu0 0.0
        %3167 = vmatprep.subr.mxu0 0.0
        %3168 = vmatpush1.msra.mxu0 0.0
        %3169 = vmatprep.subr.mxu0 0.0
        %3170 = vmatpush1.msra.mxu0 0.0
        %3171 = vmatprep.subr.mxu0 0.0
        %3172 = vmatpush1.msra.mxu0 0.0
        %3173 = vmatprep.subr.mxu0 0.0
        %3174 = vmatpush1.msra.mxu0 0.0
        %3175 = vmatprep.subr.mxu0 0.0
        %3176 = vmatpush1.msra.mxu0 0.0
        %3177 = vmatprep.subr.mxu0 0.0
        %3178 = vmatpush1.msra.mxu0 0.0
        %3179 = vmatprep.subr.mxu0 0.0
        %3180 = vmatpush1.msra.mxu0 0.0
        %3181 = vmatprep.subr.mxu0 0.0
        %3182 = vmatpush1.msra.mxu0 0.0
        %3183 = vmatprep.subr.mxu0 0.0
        %3184 = vmatpush1.msra.mxu0 0.0
        %3185 = vmatprep.subr.mxu0 0.0
        %3186 = vmatpush1.msra.mxu0 0.0
        %3187 = vmatprep.subr.mxu0 0.0
        %3188 = vmatpush1.msra.mxu0 0.0
        %3189 = vmatprep.subr.mxu0 0.0
        %3190 = vmatpush1.msra.mxu0 0.0
        %3191 = vmatprep.subr.mxu0 0.0
        %3192 = vmatpush1.msra.mxu0 0.0
        %3193 = vmatprep.mubr.f32.mxu0 0.0
        %3194 = vmatmul.mubr.f32.gmra.mrb[0].mxu0 %v3127
        %v3195 = vpop.f32.mrb[0].mxu0
        %v3196 = vadd.f32 %v3124, %v3195
        %v3197 = vpop.f32.mrb[0].mxu0
        %3198 = vdwg.mxu0
        %3200 = vrot.lane.b32.xlu0 %v3196, 32
        %v3201 = vpop.permute.xlu0 %3200
        %v3203 = vsel %vm659, %v3196, %v3201
        %v3205 = vlaneseq
        %v3206 = vshrl.u32 %v3205, 7
        %v3207 = vsub.s32 0, %v3206
        %v3208 = vrot.slane %v3120, %v3207
        %v3211 = vsel %vm2903, %v3203, 0
        %3213 = vmatprep.subr.mxu0 0.0
        %3214 = vmatpush1.msra.mxu0 %v3112
        %3215 = vmatprep.subr.mxu0 0.0
        %3216 = vmatpush1.msra.mxu0 %v3113
        %3217 = vmatprep.subr.mxu0 0.0
        %3218 = vmatpush1.msra.mxu0 %v3114
        %3219 = vmatprep.subr.mxu0 0.0
        %3220 = vmatpush1.msra.mxu0 %v3115
        %3221 = vmatprep.subr.mxu0 0.0
        %3222 = vmatpush1.msra.mxu0 %v3116
        %3223 = vmatprep.subr.mxu0 0.0
        %3224 = vmatpush1.msra.mxu0 %v3117
        %3225 = vmatprep.subr.mxu0 0.0
        %3226 = vmatpush1.msra.mxu0 %v3118
        %3227 = vmatprep.subr.mxu0 0.0
        %3228 = vmatpush1.msra.mxu0 %v3119
        %3229 = vmatprep.subr.mxu0 0.0
        %3230 = vmatpush1.msra.mxu0 0.0
        %3231 = vmatprep.subr.mxu0 0.0
        %3232 = vmatpush1.msra.mxu0 0.0
        %3233 = vmatprep.subr.mxu0 0.0
        %3234 = vmatpush1.msra.mxu0 0.0
        %3235 = vmatprep.subr.mxu0 0.0
        %3236 = vmatpush1.msra.mxu0 0.0
        %3237 = vmatprep.subr.mxu0 0.0
        %3238 = vmatpush1.msra.mxu0 0.0
        %3239 = vmatprep.subr.mxu0 0.0
        %3240 = vmatpush1.msra.mxu0 0.0
        %3241 = vmatprep.subr.mxu0 0.0
        %3242 = vmatpush1.msra.mxu0 0.0
        %3243 = vmatprep.subr.mxu0 0.0
        %3244 = vmatpush1.msra.mxu0 0.0
        %3245 = vmatprep.subr.mxu0 0.0
        %3246 = vmatpush1.msra.mxu0 0.0
        %3247 = vmatprep.subr.mxu0 0.0
        %3248 = vmatpush1.msra.mxu0 0.0
        %3249 = vmatprep.subr.mxu0 0.0
        %3250 = vmatpush1.msra.mxu0 0.0
        %3251 = vmatprep.subr.mxu0 0.0
        %3252 = vmatpush1.msra.mxu0 0.0
        %3253 = vmatprep.subr.mxu0 0.0
        %3254 = vmatpush1.msra.mxu0 0.0
        %3255 = vmatprep.subr.mxu0 0.0
        %3256 = vmatpush1.msra.mxu0 0.0
        %3257 = vmatprep.subr.mxu0 0.0
        %3258 = vmatpush1.msra.mxu0 0.0
        %3259 = vmatprep.subr.mxu0 0.0
        %3260 = vmatpush1.msra.mxu0 0.0
        %3261 = vmatprep.subr.mxu0 0.0
        %3262 = vmatpush1.msra.mxu0 0.0
        %3263 = vmatprep.subr.mxu0 0.0
        %3264 = vmatpush1.msra.mxu0 0.0
        %3265 = vmatprep.subr.mxu0 0.0
        %3266 = vmatpush1.msra.mxu0 0.0
        %3267 = vmatprep.subr.mxu0 0.0
        %3268 = vmatpush1.msra.mxu0 0.0
        %3269 = vmatprep.subr.mxu0 0.0
        %3270 = vmatpush1.msra.mxu0 0.0
        %3271 = vmatprep.subr.mxu0 0.0
        %3272 = vmatpush1.msra.mxu0 0.0
        %3273 = vmatprep.subr.mxu0 0.0
        %3274 = vmatpush1.msra.mxu0 0.0
        %3275 = vmatprep.subr.mxu0 0.0
        %3276 = vmatpush1.msra.mxu0 0.0
        %3277 = vmatprep.mubr.f32.mxu0 0.0
        %3278 = vmatmul.mubr.f32.gmra.mrb[0].mxu0 %v3211
        %v3279 = vpop.f32.mrb[0].mxu0
        %v3280 = vadd.f32 %v3208, %v3279
        %v3281 = vpop.f32.mrb[0].mxu0
        %3282 = vdwg.mxu0
        %vm3283 = vcmask 39936
        %3284 = vst.msk [vmem:[%s16] sm:$0xff] %vm3283, %v3280
        %3285 = vmatprep.subr.mxu0 0.0
        %3286 = vmatpush1.msra.mxu0 %v3108
        %3287 = vmatprep.subr.mxu0 0.0
        %3288 = vmatpush1.msra.mxu0 %v3109
        %3289 = vmatprep.subr.mxu0 0.0
        %3290 = vmatpush1.msra.mxu0 0.0
        %3291 = vmatprep.subr.mxu0 0.0
        %3292 = vmatpush1.msra.mxu0 0.0
        %3293 = vmatprep.subr.mxu0 0.0
        %3294 = vmatpush1.msra.mxu0 0.0
        %3295 = vmatprep.subr.mxu0 0.0
        %3296 = vmatpush1.msra.mxu0 0.0
        %3297 = vmatprep.subr.mxu0 0.0
        %3298 = vmatpush1.msra.mxu0 0.0
        %3299 = vmatprep.subr.mxu0 0.0
        %3300 = vmatpush1.msra.mxu0 0.0
        %3301 = vmatprep.subr.mxu0 0.0
        %3302 = vmatpush1.msra.mxu0 0.0
        %3303 = vmatprep.subr.mxu0 0.0
        %3304 = vmatpush1.msra.mxu0 0.0
        %3305 = vmatprep.subr.mxu0 0.0
        %3306 = vmatpush1.msra.mxu0 0.0
        %3307 = vmatprep.subr.mxu0 0.0
        %3308 = vmatpush1.msra.mxu0 0.0
        %3309 = vmatprep.subr.mxu0 0.0
        %3310 = vmatpush1.msra.mxu0 0.0
        %3311 = vmatprep.subr.mxu0 0.0
        %3312 = vmatpush1.msra.mxu0 0.0
        %3313 = vmatprep.subr.mxu0 0.0
        %3314 = vmatpush1.msra.mxu0 0.0
        %3315 = vmatprep.subr.mxu0 0.0
        %3316 = vmatpush1.msra.mxu0 0.0
        %3317 = vmatprep.subr.mxu0 0.0
        %3318 = vmatpush1.msra.mxu0 0.0
        %3319 = vmatprep.subr.mxu0 0.0
        %3320 = vmatpush1.msra.mxu0 0.0
        %3321 = vmatprep.subr.mxu0 0.0
        %3322 = vmatpush1.msra.mxu0 0.0
        %3323 = vmatprep.subr.mxu0 0.0
        %3324 = vmatpush1.msra.mxu0 0.0
        %3325 = vmatprep.subr.mxu0 0.0
        %3326 = vmatpush1.msra.mxu0 0.0
        %3327 = vmatprep.subr.mxu0 0.0
        %3328 = vmatpush1.msra.mxu0 0.0
        %3329 = vmatprep.subr.mxu0 0.0
        %3330 = vmatpush1.msra.mxu0 0.0
        %3331 = vmatprep.subr.mxu0 0.0
        %3332 = vmatpush1.msra.mxu0 0.0
        %3333 = vmatprep.subr.mxu0 0.0
        %3334 = vmatpush1.msra.mxu0 0.0
        %3335 = vmatprep.subr.mxu0 0.0
        %3336 = vmatpush1.msra.mxu0 0.0
        %3337 = vmatprep.subr.mxu0 0.0
        %3338 = vmatpush1.msra.mxu0 0.0
        %3339 = vmatprep.subr.mxu0 0.0
        %3340 = vmatpush1.msra.mxu0 0.0
        %3341 = vmatprep.subr.mxu0 0.0
        %3342 = vmatpush1.msra.mxu0 0.0
        %3343 = vmatprep.subr.mxu0 0.0
        %3344 = vmatpush1.msra.mxu0 0.0
        %3345 = vmatprep.subr.mxu0 0.0
        %3346 = vmatpush1.msra.mxu0 0.0
        %3347 = vmatprep.subr.mxu0 0.0
        %3348 = vmatpush1.msra.mxu0 0.0
        %3349 = vmatprep.mubr.f32.mxu0 0.0
        %3350 = vmatmul.mubr.f32.gmra.mrb[0].mxu0 %v3127
        %v3351 = vpop.f32.mrb[0].mxu0
        %v3352 = vadd.f32 %v3124, %v3351
        %v3353 = vpop.f32.mrb[0].mxu0
        %3354 = vdwg.mxu0
        %3356 = vrot.lane.b32.xlu0 %v3352, 32
        %v3357 = vpop.permute.xlu0 %3356
        %v3359 = vsel %vm659, %v3352, %v3357
        %v3361 = vsel %vm2903, %v3359, 0
        %3363 = vmatprep.subr.mxu0 0.0
        %3364 = vmatpush1.msra.mxu0 %v3112
        %3365 = vmatprep.subr.mxu0 0.0
        %3366 = vmatpush1.msra.mxu0 %v3113
        %3367 = vmatprep.subr.mxu0 0.0
        %3368 = vmatpush1.msra.mxu0 %v3114
        %3369 = vmatprep.subr.mxu0 0.0
        %3370 = vmatpush1.msra.mxu0 %v3115
        %3371 = vmatprep.subr.mxu0 0.0
        %3372 = vmatpush1.msra.mxu0 %v3116
        %3373 = vmatprep.subr.mxu0 0.0
        %3374 = vmatpush1.msra.mxu0 %v3117
        %3375 = vmatprep.subr.mxu0 0.0
        %3376 = vmatpush1.msra.mxu0 %v3118
        %3377 = vmatprep.subr.mxu0 0.0
        %3378 = vmatpush1.msra.mxu0 %v3119
        %3379 = vmatprep.subr.mxu0 0.0
        %3380 = vmatpush1.msra.mxu0 0.0
        %3381 = vmatprep.subr.mxu0 0.0
        %3382 = vmatpush1.msra.mxu0 0.0
        %3383 = vmatprep.subr.mxu0 0.0
        %3384 = vmatpush1.msra.mxu0 0.0
        %3385 = vmatprep.subr.mxu0 0.0
        %3386 = vmatpush1.msra.mxu0 0.0
        %3387 = vmatprep.subr.mxu0 0.0
        %3388 = vmatpush1.msra.mxu0 0.0
        %3389 = vmatprep.subr.mxu0 0.0
        %3390 = vmatpush1.msra.mxu0 0.0
        %3391 = vmatprep.subr.mxu0 0.0
        %3392 = vmatpush1.msra.mxu0 0.0
        %3393 = vmatprep.subr.mxu0 0.0
        %3394 = vmatpush1.msra.mxu0 0.0
        %3395 = vmatprep.subr.mxu0 0.0
        %3396 = vmatpush1.msra.mxu0 0.0
        %3397 = vmatprep.subr.mxu0 0.0
        %3398 = vmatpush1.msra.mxu0 0.0
        %3399 = vmatprep.subr.mxu0 0.0
        %3400 = vmatpush1.msra.mxu0 0.0
        %3401 = vmatprep.subr.mxu0 0.0
        %3402 = vmatpush1.msra.mxu0 0.0
        %3403 = vmatprep.subr.mxu0 0.0
        %3404 = vmatpush1.msra.mxu0 0.0
        %3405 = vmatprep.subr.mxu0 0.0
        %3406 = vmatpush1.msra.mxu0 0.0
        %3407 = vmatprep.subr.mxu0 0.0
        %3408 = vmatpush1.msra.mxu0 0.0
        %3409 = vmatprep.subr.mxu0 0.0
        %3410 = vmatpush1.msra.mxu0 0.0
        %3411 = vmatprep.subr.mxu0 0.0
        %3412 = vmatpush1.msra.mxu0 0.0
        %3413 = vmatprep.subr.mxu0 0.0
        %3414 = vmatpush1.msra.mxu0 0.0
        %3415 = vmatprep.subr.mxu0 0.0
        %3416 = vmatpush1.msra.mxu0 0.0
        %3417 = vmatprep.subr.mxu0 0.0
        %3418 = vmatpush1.msra.mxu0 0.0
        %3419 = vmatprep.subr.mxu0 0.0
        %3420 = vmatpush1.msra.mxu0 0.0
        %3421 = vmatprep.subr.mxu0 0.0
        %3422 = vmatpush1.msra.mxu0 0.0
        %3423 = vmatprep.subr.mxu0 0.0
        %3424 = vmatpush1.msra.mxu0 0.0
        %3425 = vmatprep.subr.mxu0 0.0
        %3426 = vmatpush1.msra.mxu0 0.0
        %3427 = vmatprep.mubr.f32.mxu0 0.0
        %3428 = vmatmul.mubr.f32.gmra.mrb[0].mxu0 %v3361
        %v3429 = vpop.f32.mrb[0].mxu0
        %v3430 = vadd.f32 %v3208, %v3429
        %v3431 = vpop.f32.mrb[0].mxu0
        %3432 = vdwg.mxu0
        %s3433 = scalar_lea.vmem %s16, 8
        %3434 = vst.msk [vmem:[%s3433] sm:$0xff] %vm3283, %v3430
      $region92: #{encoder_edge_classify_forward.1} parent=83 // pred_fallthru
        _
      // Predicated region
      $region93: #{encoder_edge_classify_forward.1} parent=83 // pred_check
        %p3435 = pneg %p421
      $region94: #{encoder_edge_classify_forward.1} parent=83 // pred_check_branch
        %3437 = sbr.rel (%p3435) target = $region96
      $region95: #{encoder_edge_classify_forward.1} parent=83 // pred_region
        _
      $region96: #{encoder_edge_classify_forward.1} parent=83 // pred_fallthru
        _
      // Predicated region
      $region97: #{encoder_edge_classify_forward.1} parent=83 // pred_check
        %p3438 = pneg %p421
      $region98: #{encoder_edge_classify_forward.1} parent=83 // pred_check_branch
        %3440 = sbr.rel (%p3438) target = $region100
      $region99: #{encoder_edge_classify_forward.1} parent=83 // pred_region
        _
      $region100: #{encoder_edge_classify_forward.1} parent=83 // pred_fallthru
        _
    $region84: #{encoder_edge_classify_forward.1} parent=5 // pred_fallthru
      _
    %p3441 = scmp.le.s32.totalorder 2, %s22
    // Predicated region
    $region101: #{encoder_edge_classify_forward.1} parent=5 // pred_check
      %p3442 = pneg %p3441
    $region102: #{encoder_edge_classify_forward.1} parent=5 // pred_check_branch
      %3444 = sbr.rel (%p3442) target = $region104
    $region103: #{encoder_edge_classify_forward.1} parent=5 // pred_region
      %s3445 = ssub.s32 %s22, 2
    $region104: #{encoder_edge_classify_forward.1} parent=5 // pred_fallthru
      _
  $region6: #{encoder_edge_classify_forward.1} parent=0 // loop_footer
    %s26 = sadd.s32 1, %s22
  $region7: #{encoder_edge_classify_forward.1} parent=0 // loop_footer_branch
    %21 = sbr.rel target = $region3
  $region8: #{encoder_edge_classify_forward.1} parent=0 // loop_exit
    _

</llo_original>
